<compile_context>
chip_gen: v5e
topology: v5e:2x2
jax: 0.10.0
libtpu: 0.0.40
codegen_flags: <defaults>
</compile_context>

<pallas_src>
import functools

import jax
import jax.numpy as jnp
import numpy as np
from jax.experimental import pallas as pl
from jax.experimental.pallas import tpu as pltpu

LANE = 128      # channel (lane) dims are padded up to a multiple of this
SUBLANE = 16    # bf16 sublane packing; time dim & left halo rounded to this


def _round_up(x, m):
    return (x + m - 1) // m * m


def _pick_bt(B, t_pad):
    """Batch-tile heuristic: prefer >=4 grid steps with M=bt*t_pad>=512
    (2 steps/core on v7x, full MXU M on v6e/v7x); else >=2 steps with M>=256;
    else just keep >=2 grid steps when B allows it."""
    divs = [d for d in range(1, B + 1) if B % d == 0]
    for d in divs:
        if d * t_pad >= 512 and B // d >= 4:
            return d
    for d in divs:
        if d * t_pad >= 256 and B // d >= 2:
            return d
    for d in reversed(divs):
        if B // d >= 2:
            return d
    return B


def _tcn_kernel(x_ref, *refs, meta, k, t_pad, t_real, bt, hl):
    """Fused TemporalConvNet forward for one batch tile.

    meta: per-level static tuple (cin_p, cout_p, dilation, half, has_down).
    refs layout: [per-level param refs...], out_ref, shared pad-scratch ref.
    """
    n_params = sum(8 if m[4] else 6 for m in meta)
    params = refs[:n_params]
    out_ref = refs[n_params]
    buf_ref = refs[n_params + 1]            # (bt, hl + t_pad + half_max, c_max)
    c_max = buf_ref.shape[2]
    cdt = buf_ref.dtype

    # Zero the halo / tail rows of the shared pad buffer once per grid step.
    # Body stores below only ever write rows [hl, hl + t_real), so this single
    # zeroing covers every level and both convs of this step.
    if hl > 0:
        buf_ref[:, pl.ds(0, hl), :] = jnp.zeros((bt, hl, c_max), cdt)
    tail = buf_ref.shape[1] - (hl + t_real)
    if tail > 0:
        buf_ref[:, pl.ds(hl + t_real, tail), :] = jnp.zeros((bt, tail, c_max), cdt)

    c0p = meta[0][0]
    act = x_ref[...].astype(jnp.float32).reshape(bt * t_pad, c0p)   # f32 master

    pi = 0
    for (cin, cout, d, half, has_down) in meta:
        w1, s1, t1, w2, s2, t2 = params[pi:pi + 6]
        pi += 6
        if has_down:
            wd, bd = params[pi:pi + 2]
            pi += 2

        def dilated_conv(val2d_c, w_ref, c_in, d=d, half=half):
            # Store the (time-unpadded) operand body into the halo-zeroed
            # scratch, then accumulate the k dilated taps as k MXU dots against
            # per-tap weight slices (no im2col concat temp).
            val3 = val2d_c.reshape(bt, t_pad, c_in)
            body = val3 if t_real == t_pad else val3[:, :t_real, :]
            buf_ref[:, pl.ds(hl, t_real), pl.ds(0, c_in)] = body
            acc = None
            base = hl - half
            for j in range(k):
                tap = buf_ref[:, pl.ds(base + j * d, t_pad), pl.ds(0, c_in)]
                part = jnp.dot(tap.reshape(bt * t_pad, c_in), w_ref[j],
                               preferred_element_type=jnp.float32)
                acc = part if acc is None else acc + part
            return acc                      # (bt*t_pad, cout) f32

        act_c = act.astype(cdt)             # bf16 MXU operand (conv1 / downsample)
        # conv1 (+bias folded into t1) -> BN1 -> ReLU
        h = dilated_conv(act_c, w1, cin)
        h = jnp.maximum(h * s1[...] + t1[...], 0.0)
        # TODO(synk): dropout is identity (eval mode); no stochastic dropout.
        # conv2 (+bias folded into t2) -> BN2 -> ReLU
        h = dilated_conv(h.astype(cdt), w2, cout)
        h = jnp.maximum(h * s2[...] + t2[...], 0.0)
        # residual (1x1 conv iff channel count changes) + final ReLU
        if has_down:
            res = jnp.dot(act_c, wd[...],
                          preferred_element_type=jnp.float32) + bd[...]
        else:
            res = act
        act = jnp.maximum(h + res, 0.0)

    out_ref[...] = act.reshape(bt, t_pad, meta[-1][1]).astype(out_ref.dtype)


@functools.partial(jax.jit, static_argnames=("k", "compute_dtype", "batch_tile"))
def temporal_conv_net(x_nct, params, *, k, compute_dtype=jnp.bfloat16,
                      batch_tile=None):
    """PyTorch-style (N, C_in, T) input -> (N, C_last, T) output.

    All TCN levels are fused into one pallas_call; dilation of level i is 2**i.
    """
    B, c0, T = x_nct.shape
    t_pad = _round_up(T, SUBLANE)
    if batch_tile is None:
        bt = _pick_bt(B, t_pad)
    else:
        bt = min(batch_tile, B)
        while B % bt:                       # ensure bt divides B
            bt -= 1

    c0p = _round_up(c0, LANE)
    # NCT -> (B, Tpad, Cpad): time on sublanes (padded to 16), lane-dense
    # (128-multiple) channels, bf16 so the input DMA is half the HBM traffic.
    x = jnp.transpose(x_nct, (0, 2, 1)).astype(compute_dtype)
    x = jnp.pad(x, ((0, 0), (0, t_pad - T), (0, c0p - c0)))

    args = [x]
    in_specs = [pl.BlockSpec((bt, t_pad, c0p), lambda b: (b, 0, 0))]
    meta = []

    def add_const(a):
        # Constant parameter: the same block every grid step -> single buffer.
        args.append(a)
        in_specs.append(pl.BlockSpec(a.shape, lambda b, n=a.ndim: (0,) * n,
                                     pipeline_mode=pl.Buffered(1)))

    cin, cin_p = c0, c0p
    half_max, c_max = 0, c0p
    for i, p in enumerate(params):
        d = 2 ** i
        padlen = (k - 1) * d
        assert padlen % 2 == 0, "symmetric chomp needs (k-1)*dilation even"
        half = padlen // 2
        cout = p["w1"].shape[2]
        cout_p = _round_up(cout, LANE)
        has_down = "wd" in p
        dci, dco = cin_p - cin, cout_p - cout

        # conv weights kept as (k, Ci, Co); kernel slices one tap at a time.
        add_const(jnp.pad(p["w1"], ((0, 0), (0, dci), (0, dco))).astype(compute_dtype))
        add_const(jnp.pad(p["s1"], ((0, 0), (0, dco))))
        add_const(jnp.pad(p["t1"] + p["b1"] * p["s1"], ((0, 0), (0, dco))))  # bias folded
        add_const(jnp.pad(p["w2"], ((0, 0), (0, dco), (0, dco))).astype(compute_dtype))
        add_const(jnp.pad(p["s2"], ((0, 0), (0, dco))))
        add_const(jnp.pad(p["t2"] + p["b2"] * p["s2"], ((0, 0), (0, dco))))
        if has_down:
            add_const(jnp.pad(p["wd"], ((0, dci), (0, dco))).astype(compute_dtype))
            add_const(jnp.pad(p["bd"], ((0, 0), (0, dco))))

        meta.append((cin_p, cout_p, d, half, has_down))
        half_max = max(half_max, half)
        c_max = max(c_max, cout_p)
        cin, cin_p = cout, cout_p

    c_last, c_last_p = cin, cin_p
    hl = _round_up(half_max, SUBLANE) if half_max > 0 else 0
    rows = hl + t_pad + half_max
    itemsize = jnp.dtype(compute_dtype).itemsize
    scratch_shapes = [pltpu.VMEM((bt, rows, c_max), compute_dtype)]

    # Explicit scoped-VMEM limit: single-buffered params + double-buffered
    # in/out blocks + shared scratch + headroom for in-kernel temporaries.
    param_bytes = sum(int(np.prod(a.shape)) * a.dtype.itemsize for a in args[1:])
    io_bytes = 2 * bt * t_pad * (c0p * itemsize + c_last_p * 4)
    scratch_bytes = bt * rows * c_max * itemsize
    temp_bytes = 10 * bt * t_pad * c_max * 4
    vmem_limit = int(min(64 * 2 ** 20,
                         max(32 * 2 ** 20,
                             2 * (param_bytes + io_bytes + scratch_bytes + temp_bytes))))

    kernel = functools.partial(_tcn_kernel, meta=tuple(meta), k=k,
                               t_pad=t_pad, t_real=T, bt=bt, hl=hl)

    grid_spec = pltpu.PrefetchScalarGridSpec(
        num_scalar_prefetch=0,
        grid=(B // bt,),
        in_specs=in_specs,
        out_specs=pl.BlockSpec((bt, t_pad, c_last_p), lambda b: (b, 0, 0)),
        scratch_shapes=scratch_shapes,
    )
    out = pl.pallas_call(
        kernel,
        out_shape=jax.ShapeDtypeStruct((B, t_pad, c_last_p), jnp.float32),
        grid_spec=grid_spec,
        compiler_params=pltpu.CompilerParams(
            dimension_semantics=("parallel",),
            vmem_limit_bytes=vmem_limit),
    )(*args)

    # drop the time & channel padding, back to NCT
    return jnp.transpose(out[:, :T, :c_last], (0, 2, 1))


# ----------------------------- parameter setup ------------------------------
def init_params(key, num_inputs, num_channels, k):
    eps = 1e-5
    layers = []
    for i, cout in enumerate(num_channels):
        cin = num_inputs if i == 0 else num_channels[i - 1]
        keys = jax.random.split(jax.random.fold_in(key, i), 14)

        def bn(k1, k2, k3, k4, c):
            gamma = 1.0 + 0.1 * jax.random.normal(k1, (1, c))
            beta = 0.1 * jax.random.normal(k2, (1, c))
            mean = 0.1 * jax.random.normal(k3, (1, c))
            var = 1.0 + 0.1 * jnp.abs(jax.random.normal(k4, (1, c)))
            scale = gamma / jnp.sqrt(var + eps)
            shift = beta - mean * scale
            return scale.astype(jnp.float32), shift.astype(jnp.float32)

        p = {}
        p["w1"] = (jax.random.normal(keys[0], (k, cin, cout))
                   / np.sqrt(k * cin)).astype(jnp.float32)
        p["b1"] = (0.1 * jax.random.normal(keys[1], (1, cout))).astype(jnp.float32)
        p["s1"], p["t1"] = bn(keys[2], keys[3], keys[4], keys[5], cout)
        p["w2"] = (jax.random.normal(keys[6], (k, cout, cout))
                   / np.sqrt(k * cout)).astype(jnp.float32)
        p["b2"] = (0.1 * jax.random.normal(keys[7], (1, cout))).astype(jnp.float32)
        p["s2"], p["t2"] = bn(keys[8], keys[9], keys[10], keys[11], cout)
        if cin != cout:  # PyTorch: downsample = Conv1d(cin, cout, 1) (with bias)
            p["wd"] = (jax.random.normal(keys[12], (cin, cout))
                       / np.sqrt(cin)).astype(jnp.float32)
            p["bd"] = (0.1 * jax.random.normal(keys[13], (1, cout))).astype(jnp.float32)
        layers.append(p)
    return layers


# --------------------------- pure-JAX reference -----------------------------
def _ref_block(x, p, *, k, d, qdt=None):
    """One TemporalBlock in plain JAX (f32 math). If qdt is set, the conv
    operands are rounded through qdt to mirror the kernel's bf16 MXU operands
    (accumulation stays f32), so the comparison is tight."""
    B, T, cin = x.shape
    half = (k - 1) * d // 2
    q = (lambda a: a) if qdt is None else (lambda a: a.astype(qdt).astype(jnp.float32))

    def conv(xx, w, b):
        xp = jnp.pad(q(xx), ((0, 0), (half, half), (0, 0)))
        wq = q(w)
        out = jnp.zeros((B, T, w.shape[2]), jnp.float32) + b[None]
        for j in range(k):
            out = out + jnp.einsum("btc,cd->btd", xp[:, j * d:j * d + T, :], wq[j])
        return out

    h1 = jnp.maximum(conv(x, p["w1"], p["b1"]) * p["s1"][None] + p["t1"][None], 0.0)
    h2 = jnp.maximum(conv(h1, p["w2"], p["b2"]) * p["s2"][None] + p["t2"][None], 0.0)
    if "wd" in p:
        res = jnp.einsum("btc,cd->btd", q(x), q(p["wd"])) + p["bd"][None]
    else:
        res = x
    return jnp.maximum(h2 + res, 0.0)


if __name__ == "__main__":
    key = jax.random.PRNGKey(0)
    B, Cin, T = 4, 8, 29                # T=29 frames exercises the time-pad path
    num_channels = [16, 16, 8]          # 3 levels: dilations 1, 2, 4
    ksize = 3                           # tcn_options = {'kernel_size': [3]}

    x = jax.random.normal(jax.random.fold_in(key, 100), (B, Cin, T), jnp.float32)
    params = init_params(key, Cin, num_channels, ksize)

    out = temporal_conv_net(x, params, k=ksize)
    out = jax.block_until_ready(out)

    # sanity check vs. pure-JAX reference (input + conv operands rounded through
    # bf16 to mirror the kernel's MXU operands; accumulation / epilogue in f32)
    xr = jnp.transpose(x, (0, 2, 1)).astype(jnp.bfloat16).astype(jnp.float32)
    for i, p in enumerate(params):
        xr = _ref_block(xr, p, k=ksize, d=2 ** i, qdt=jnp.bfloat16)
    ref = jnp.transpose(xr, (0, 2, 1))

    assert out.shape == (B, num_channels[-1], T), out.shape
    np.testing.assert_allclose(np.asarray(out), np.asarray(ref),
                               rtol=2e-2, atol=2e-2)
    print("KERNEL_OK")
</pallas_src>

<mosaic_0001>
module attributes {stable_mosaic.version = 11 : i64} {
  func.func @_tcn_kernel(%arg0: i32, %arg1: memref<2x32x128xbf16, #tpu.memory_space<vmem>>, %arg2: memref<3x128x128xbf16, #tpu.memory_space<vmem>>, %arg3: memref<1x128xf32, #tpu.memory_space<vmem>>, %arg4: memref<1x128xf32, #tpu.memory_space<vmem>>, %arg5: memref<3x128x128xbf16, #tpu.memory_space<vmem>>, %arg6: memref<1x128xf32, #tpu.memory_space<vmem>>, %arg7: memref<1x128xf32, #tpu.memory_space<vmem>>, %arg8: memref<128x128xbf16, #tpu.memory_space<vmem>>, %arg9: memref<1x128xf32, #tpu.memory_space<vmem>>, %arg10: memref<3x128x128xbf16, #tpu.memory_space<vmem>>, %arg11: memref<1x128xf32, #tpu.memory_space<vmem>>, %arg12: memref<1x128xf32, #tpu.memory_space<vmem>>, %arg13: memref<3x128x128xbf16, #tpu.memory_space<vmem>>, %arg14: memref<1x128xf32, #tpu.memory_space<vmem>>, %arg15: memref<1x128xf32, #tpu.memory_space<vmem>>, %arg16: memref<3x128x128xbf16, #tpu.memory_space<vmem>>, %arg17: memref<1x128xf32, #tpu.memory_space<vmem>>, %arg18: memref<1x128xf32, #tpu.memory_space<vmem>>, %arg19: memref<3x128x128xbf16, #tpu.memory_space<vmem>>, %arg20: memref<1x128xf32, #tpu.memory_space<vmem>>, %arg21: memref<1x128xf32, #tpu.memory_space<vmem>>, %arg22: memref<128x128xbf16, #tpu.memory_space<vmem>>, %arg23: memref<1x128xf32, #tpu.memory_space<vmem>>, %arg24: memref<2x32x128xf32, #tpu.memory_space<vmem>>, %arg25: memref<2x52x128xbf16, #tpu.memory_space<vmem>>) attributes {dimension_semantics = [#tpu.dimension_semantics<parallel>], iteration_bounds = array<i64: 2>, scalar_prefetch = 0 : i64, scratch_operands = 1 : i64, tpu.core_type = #tpu.core_type<tc>, window_params = [{transform_indices = @transform_0, window_bounds = array<i64: 2, 32, 128>}, {pipeline_mode = #tpu.pipeline_mode<synchronous>, transform_indices = @transform_1, window_bounds = array<i64: 3, 128, 128>}, {pipeline_mode = #tpu.pipeline_mode<synchronous>, transform_indices = @transform_2, window_bounds = array<i64: 1, 128>}, {pipeline_mode = #tpu.pipeline_mode<synchronous>, transform_indices = @transform_3, window_bounds = array<i64: 1, 128>}, {pipeline_mode = #tpu.pipeline_mode<synchronous>, transform_indices = @transform_4, window_bounds = array<i64: 3, 128, 128>}, {pipeline_mode = #tpu.pipeline_mode<synchronous>, transform_indices = @transform_5, window_bounds = array<i64: 1, 128>}, {pipeline_mode = #tpu.pipeline_mode<synchronous>, transform_indices = @transform_6, window_bounds = array<i64: 1, 128>}, {pipeline_mode = #tpu.pipeline_mode<synchronous>, transform_indices = @transform_7, window_bounds = array<i64: 128, 128>}, {pipeline_mode = #tpu.pipeline_mode<synchronous>, transform_indices = @transform_8, window_bounds = array<i64: 1, 128>}, {pipeline_mode = #tpu.pipeline_mode<synchronous>, transform_indices = @transform_9, window_bounds = array<i64: 3, 128, 128>}, {pipeline_mode = #tpu.pipeline_mode<synchronous>, transform_indices = @transform_10, window_bounds = array<i64: 1, 128>}, {pipeline_mode = #tpu.pipeline_mode<synchronous>, transform_indices = @transform_11, window_bounds = array<i64: 1, 128>}, {pipeline_mode = #tpu.pipeline_mode<synchronous>, transform_indices = @transform_12, window_bounds = array<i64: 3, 128, 128>}, {pipeline_mode = #tpu.pipeline_mode<synchronous>, transform_indices = @transform_13, window_bounds = array<i64: 1, 128>}, {pipeline_mode = #tpu.pipeline_mode<synchronous>, transform_indices = @transform_14, window_bounds = array<i64: 1, 128>}, {pipeline_mode = #tpu.pipeline_mode<synchronous>, transform_indices = @transform_15, window_bounds = array<i64: 3, 128, 128>}, {pipeline_mode = #tpu.pipeline_mode<synchronous>, transform_indices = @transform_16, window_bounds = array<i64: 1, 128>}, {pipeline_mode = #tpu.pipeline_mode<synchronous>, transform_indices = @transform_17, window_bounds = array<i64: 1, 128>}, {pipeline_mode = #tpu.pipeline_mode<synchronous>, transform_indices = @transform_18, window_bounds = array<i64: 3, 128, 128>}, {pipeline_mode = #tpu.pipeline_mode<synchronous>, transform_indices = @transform_19, window_bounds = array<i64: 1, 128>}, {pipeline_mode = #tpu.pipeline_mode<synchronous>, transform_indices = @transform_20, window_bounds = array<i64: 1, 128>}, {pipeline_mode = #tpu.pipeline_mode<synchronous>, transform_indices = @transform_21, window_bounds = array<i64: 128, 128>}, {pipeline_mode = #tpu.pipeline_mode<synchronous>, transform_indices = @transform_22, window_bounds = array<i64: 1, 128>}, {transform_indices = @transform_23, window_bounds = array<i64: 2, 32, 128>}]} {
    %cst = arith.constant 0.000000e+00 : bf16
    %0 = vector.broadcast %cst : bf16 to vector<2x16x128xbf16>
    %c0 = arith.constant 0 : index
    %c0_0 = arith.constant 0 : index
    %c0_1 = arith.constant 0 : index
    %1 = vector.load %arg25[%c0, %c0_0, %c0_1] : memref<2x52x128xbf16, #tpu.memory_space<vmem>>, vector<2x16x128xbf16>
    tpu.vector_store %arg25[%c0, %c0_0, %c0_1], %0 {strides = array<i32>} : memref<2x52x128xbf16, #tpu.memory_space<vmem>>, vector<2x16x128xbf16>,
    %cst_2 = arith.constant 0.000000e+00 : bf16
    %2 = vector.broadcast %cst_2 : bf16 to vector<2x7x128xbf16>
    %c0_3 = arith.constant 0 : index
    %c45 = arith.constant 45 : index
    %c0_4 = arith.constant 0 : index
    %3 = vector.load %arg25[%c0_3, %c45, %c0_4] : memref<2x52x128xbf16, #tpu.memory_space<vmem>>, vector<2x7x128xbf16>
    tpu.vector_store %arg25[%c0_3, %c45, %c0_4], %2 {strides = array<i32>} : memref<2x52x128xbf16, #tpu.memory_space<vmem>>, vector<2x7x128xbf16>,
    %c0_5 = arith.constant 0 : index
    %c0_6 = arith.constant 0 : index
    %c0_7 = arith.constant 0 : index
    %4 = vector.load %arg1[%c0_5, %c0_6, %c0_7] : memref<2x32x128xbf16, #tpu.memory_space<vmem>>, vector<2x32x128xbf16>
    %5 = arith.extf %4 : vector<2x32x128xbf16> to vector<2x32x128xf32>
    %6 = vector.shape_cast %5 : vector<2x32x128xf32> to vector<64x128xf32>
    %7 = arith.truncf %6 : vector<64x128xf32> to vector<64x128xbf16>
    %8 = vector.shape_cast %7 : vector<64x128xbf16> to vector<2x32x128xbf16>
    %9 = vector.extract_strided_slice %8 {offsets = [0, 0, 0], sizes = [2, 29, 128], strides = [1, 1, 1]} : vector<2x32x128xbf16> to vector<2x29x128xbf16>
    %c0_8 = arith.constant 0 : index
    %c16 = arith.constant 16 : index
    %c0_9 = arith.constant 0 : index
    %10 = vector.load %arg25[%c0_8, %c16, %c0_9] : memref<2x52x128xbf16, #tpu.memory_space<vmem>>, vector<2x29x128xbf16>
    tpu.vector_store %arg25[%c0_8, %c16, %c0_9], %9 {strides = array<i32>} : memref<2x52x128xbf16, #tpu.memory_space<vmem>>, vector<2x29x128xbf16>,
    %c0_10 = arith.constant 0 : index
    %c15 = arith.constant 15 : index
    %c0_11 = arith.constant 0 : index
    %11 = vector.load %arg25[%c0_10, %c15, %c0_11] : memref<2x52x128xbf16, #tpu.memory_space<vmem>>, vector<2x32x128xbf16>
    %12 = vector.shape_cast %11 : vector<2x32x128xbf16> to vector<64x128xbf16>
    %c0_12 = arith.constant 0 : index
    %c0_13 = arith.constant 0 : index
    %c0_14 = arith.constant 0 : index
    %13 = vector.load %arg2[%c0_12, %c0_13, %c0_14] : memref<3x128x128xbf16, #tpu.memory_space<vmem>>, vector<1x128x128xbf16>
    %14 = vector.shape_cast %13 : vector<1x128x128xbf16> to vector<128x128xbf16>
    %cst_15 = arith.constant dense<0.000000e+00> : vector<64x128xf32>
    %15 = tpu.matmul %12, %14, %cst_15 {dimension_numbers = #tpu.dot_dimension_numbers<[1], [0], [0], [1], [0, 0, 1, 1], [], []>} : vector<64x128xbf16>, vector<128x128xbf16>, vector<64x128xf32> -> vector<64x128xf32>
    %c0_16 = arith.constant 0 : index
    %c16_17 = arith.constant 16 : index
    %c0_18 = arith.constant 0 : index
    %16 = vector.load %arg25[%c0_16, %c16_17, %c0_18] : memref<2x52x128xbf16, #tpu.memory_space<vmem>>, vector<2x32x128xbf16>
    %17 = vector.shape_cast %16 : vector<2x32x128xbf16> to vector<64x128xbf16>
    %c1 = arith.constant 1 : index
    %c0_19 = arith.constant 0 : index
    %c0_20 = arith.constant 0 : index
    %18 = vector.load %arg2[%c1, %c0_19, %c0_20] : memref<3x128x128xbf16, #tpu.memory_space<vmem>>, vector<1x128x128xbf16>
    %19 = vector.shape_cast %18 : vector<1x128x128xbf16> to vector<128x128xbf16>
    %cst_21 = arith.constant dense<0.000000e+00> : vector<64x128xf32>
    %20 = tpu.matmul %17, %19, %cst_21 {dimension_numbers = #tpu.dot_dimension_numbers<[1], [0], [0], [1], [0, 0, 1, 1], [], []>} : vector<64x128xbf16>, vector<128x128xbf16>, vector<64x128xf32> -> vector<64x128xf32>
    %21 = arith.addf %15, %20 : vector<64x128xf32>
    %c0_22 = arith.constant 0 : index
    %c17 = arith.constant 17 : index
    %c0_23 = arith.constant 0 : index
    %22 = vector.load %arg25[%c0_22, %c17, %c0_23] : memref<2x52x128xbf16, #tpu.memory_space<vmem>>, vector<2x32x128xbf16>
    %23 = vector.shape_cast %22 : vector<2x32x128xbf16> to vector<64x128xbf16>
    %c2 = arith.constant 2 : index
    %c0_24 = arith.constant 0 : index
    %c0_25 = arith.constant 0 : index
    %24 = vector.load %arg2[%c2, %c0_24, %c0_25] : memref<3x128x128xbf16, #tpu.memory_space<vmem>>, vector<1x128x128xbf16>
    %25 = vector.shape_cast %24 : vector<1x128x128xbf16> to vector<128x128xbf16>
    %cst_26 = arith.constant dense<0.000000e+00> : vector<64x128xf32>
    %26 = tpu.matmul %23, %25, %cst_26 {dimension_numbers = #tpu.dot_dimension_numbers<[1], [0], [0], [1], [0, 0, 1, 1], [], []>} : vector<64x128xbf16>, vector<128x128xbf16>, vector<64x128xf32> -> vector<64x128xf32>
    %27 = arith.addf %21, %26 : vector<64x128xf32>
    %c0_27 = arith.constant 0 : index
    %c0_28 = arith.constant 0 : index
    %28 = vector.load %arg3[%c0_27, %c0_28] : memref<1x128xf32, #tpu.memory_space<vmem>>, vector<1x128xf32>
    %29 = vector.broadcast %28 : vector<1x128xf32> to vector<64x128xf32>
    %30 = arith.mulf %27, %29 : vector<64x128xf32>
    %c0_29 = arith.constant 0 : index
    %c0_30 = arith.constant 0 : index
    %31 = vector.load %arg4[%c0_29, %c0_30] : memref<1x128xf32, #tpu.memory_space<vmem>>, vector<1x128xf32>
    %32 = vector.broadcast %31 : vector<1x128xf32> to vector<64x128xf32>
    %33 = arith.addf %30, %32 : vector<64x128xf32>
    %cst_31 = arith.constant 0.000000e+00 : f32
    %34 = vector.broadcast %cst_31 : f32 to vector<64x128xf32>
    %35 = arith.maximumf %33, %34 : vector<64x128xf32>
    %36 = arith.truncf %35 : vector<64x128xf32> to vector<64x128xbf16>
    %37 = vector.shape_cast %36 : vector<64x128xbf16> to vector<2x32x128xbf16>
    %38 = vector.extract_strided_slice %37 {offsets = [0, 0, 0], sizes = [2, 29, 128], strides = [1, 1, 1]} : vector<2x32x128xbf16> to vector<2x29x128xbf16>
    %c0_32 = arith.constant 0 : index
    %c16_33 = arith.constant 16 : index
    %c0_34 = arith.constant 0 : index
    %39 = vector.load %arg25[%c0_32, %c16_33, %c0_34] : memref<2x52x128xbf16, #tpu.memory_space<vmem>>, vector<2x29x128xbf16>
    tpu.vector_store %arg25[%c0_32, %c16_33, %c0_34], %38 {strides = array<i32>} : memref<2x52x128xbf16, #tpu.memory_space<vmem>>, vector<2x29x128xbf16>,
    %c0_35 = arith.constant 0 : index
    %c15_36 = arith.constant 15 : index
    %c0_37 = arith.constant 0 : index
    %40 = vector.load %arg25[%c0_35, %c15_36, %c0_37] : memref<2x52x128xbf16, #tpu.memory_space<vmem>>, vector<2x32x128xbf16>
    %41 = vector.shape_cast %40 : vector<2x32x128xbf16> to vector<64x128xbf16>
    %c0_38 = arith.constant 0 : index
    %c0_39 = arith.constant 0 : index
    %c0_40 = arith.constant 0 : index
    %42 = vector.load %arg5[%c0_38, %c0_39, %c0_40] : memref<3x128x128xbf16, #tpu.memory_space<vmem>>, vector<1x128x128xbf16>
    %43 = vector.shape_cast %42 : vector<1x128x128xbf16> to vector<128x128xbf16>
    %cst_41 = arith.constant dense<0.000000e+00> : vector<64x128xf32>
    %44 = tpu.matmul %41, %43, %cst_41 {dimension_numbers = #tpu.dot_dimension_numbers<[1], [0], [0], [1], [0, 0, 1, 1], [], []>} : vector<64x128xbf16>, vector<128x128xbf16>, vector<64x128xf32> -> vector<64x128xf32>
    %c0_42 = arith.constant 0 : index
    %c16_43 = arith.constant 16 : index
    %c0_44 = arith.constant 0 : index
    %45 = vector.load %arg25[%c0_42, %c16_43, %c0_44] : memref<2x52x128xbf16, #tpu.memory_space<vmem>>, vector<2x32x128xbf16>
    %46 = vector.shape_cast %45 : vector<2x32x128xbf16> to vector<64x128xbf16>
    %c1_45 = arith.constant 1 : index
    %c0_46 = arith.constant 0 : index
    %c0_47 = arith.constant 0 : index
    %47 = vector.load %arg5[%c1_45, %c0_46, %c0_47] : memref<3x128x128xbf16, #tpu.memory_space<vmem>>, vector<1x128x128xbf16>
    %48 = vector.shape_cast %47 : vector<1x128x128xbf16> to vector<128x128xbf16>
    %cst_48 = arith.constant dense<0.000000e+00> : vector<64x128xf32>
    %49 = tpu.matmul %46, %48, %cst_48 {dimension_numbers = #tpu.dot_dimension_numbers<[1], [0], [0], [1], [0, 0, 1, 1], [], []>} : vector<64x128xbf16>, vector<128x128xbf16>, vector<64x128xf32> -> vector<64x128xf32>
    %50 = arith.addf %44, %49 : vector<64x128xf32>
    %c0_49 = arith.constant 0 : index
    %c17_50 = arith.constant 17 : index
    %c0_51 = arith.constant 0 : index
    %51 = vector.load %arg25[%c0_49, %c17_50, %c0_51] : memref<2x52x128xbf16, #tpu.memory_space<vmem>>, vector<2x32x128xbf16>
    %52 = vector.shape_cast %51 : vector<2x32x128xbf16> to vector<64x128xbf16>
    %c2_52 = arith.constant 2 : index
    %c0_53 = arith.constant 0 : index
    %c0_54 = arith.constant 0 : index
    %53 = vector.load %arg5[%c2_52, %c0_53, %c0_54] : memref<3x128x128xbf16, #tpu.memory_space<vmem>>, vector<1x128x128xbf16>
    %54 = vector.shape_cast %53 : vector<1x128x128xbf16> to vector<128x128xbf16>
    %cst_55 = arith.constant dense<0.000000e+00> : vector<64x128xf32>
    %55 = tpu.matmul %52, %54, %cst_55 {dimension_numbers = #tpu.dot_dimension_numbers<[1], [0], [0], [1], [0, 0, 1, 1], [], []>} : vector<64x128xbf16>, vector<128x128xbf16>, vector<64x128xf32> -> vector<64x128xf32>
    %56 = arith.addf %50, %55 : vector<64x128xf32>
    %c0_56 = arith.constant 0 : index
    %c0_57 = arith.constant 0 : index
    %57 = vector.load %arg6[%c0_56, %c0_57] : memref<1x128xf32, #tpu.memory_space<vmem>>, vector<1x128xf32>
    %58 = vector.broadcast %57 : vector<1x128xf32> to vector<64x128xf32>
    %59 = arith.mulf %56, %58 : vector<64x128xf32>
    %c0_58 = arith.constant 0 : index
    %c0_59 = arith.constant 0 : index
    %60 = vector.load %arg7[%c0_58, %c0_59] : memref<1x128xf32, #tpu.memory_space<vmem>>, vector<1x128xf32>
    %61 = vector.broadcast %60 : vector<1x128xf32> to vector<64x128xf32>
    %62 = arith.addf %59, %61 : vector<64x128xf32>
    %cst_60 = arith.constant 0.000000e+00 : f32
    %63 = vector.broadcast %cst_60 : f32 to vector<64x128xf32>
    %64 = arith.maximumf %62, %63 : vector<64x128xf32>
    %c0_61 = arith.constant 0 : index
    %c0_62 = arith.constant 0 : index
    %65 = vector.load %arg8[%c0_61, %c0_62] : memref<128x128xbf16, #tpu.memory_space<vmem>>, vector<128x128xbf16>
    %cst_63 = arith.constant dense<0.000000e+00> : vector<64x128xf32>
    %66 = tpu.matmul %7, %65, %cst_63 {dimension_numbers = #tpu.dot_dimension_numbers<[1], [0], [0], [1], [0, 0, 1, 1], [], []>} : vector<64x128xbf16>, vector<128x128xbf16>, vector<64x128xf32> -> vector<64x128xf32>
    %c0_64 = arith.constant 0 : index
    %c0_65 = arith.constant 0 : index
    %67 = vector.load %arg9[%c0_64, %c0_65] : memref<1x128xf32, #tpu.memory_space<vmem>>, vector<1x128xf32>
    %68 = vector.broadcast %67 : vector<1x128xf32> to vector<64x128xf32>
    %69 = arith.addf %66, %68 : vector<64x128xf32>
    %70 = arith.addf %64, %69 : vector<64x128xf32>
    %cst_66 = arith.constant 0.000000e+00 : f32
    %71 = vector.broadcast %cst_66 : f32 to vector<64x128xf32>
    %72 = arith.maximumf %70, %71 : vector<64x128xf32>
    %73 = arith.truncf %72 : vector<64x128xf32> to vector<64x128xbf16>
    %74 = vector.shape_cast %73 : vector<64x128xbf16> to vector<2x32x128xbf16>
    %75 = vector.extract_strided_slice %74 {offsets = [0, 0, 0], sizes = [2, 29, 128], strides = [1, 1, 1]} : vector<2x32x128xbf16> to vector<2x29x128xbf16>
    %c0_67 = arith.constant 0 : index
    %c16_68 = arith.constant 16 : index
    %c0_69 = arith.constant 0 : index
    %76 = vector.load %arg25[%c0_67, %c16_68, %c0_69] : memref<2x52x128xbf16, #tpu.memory_space<vmem>>, vector<2x29x128xbf16>
    tpu.vector_store %arg25[%c0_67, %c16_68, %c0_69], %75 {strides = array<i32>} : memref<2x52x128xbf16, #tpu.memory_space<vmem>>, vector<2x29x128xbf16>,
    %c0_70 = arith.constant 0 : index
    %c14 = arith.constant 14 : index
    %c0_71 = arith.constant 0 : index
    %77 = vector.load %arg25[%c0_70, %c14, %c0_71] : memref<2x52x128xbf16, #tpu.memory_space<vmem>>, vector<2x32x128xbf16>
    %78 = vector.shape_cast %77 : vector<2x32x128xbf16> to vector<64x128xbf16>
    %c0_72 = arith.constant 0 : index
    %c0_73 = arith.constant 0 : index
    %c0_74 = arith.constant 0 : index
    %79 = vector.load %arg10[%c0_72, %c0_73, %c0_74] : memref<3x128x128xbf16, #tpu.memory_space<vmem>>, vector<1x128x128xbf16>
    %80 = vector.shape_cast %79 : vector<1x128x128xbf16> to vector<128x128xbf16>
    %cst_75 = arith.constant dense<0.000000e+00> : vector<64x128xf32>
    %81 = tpu.matmul %78, %80, %cst_75 {dimension_numbers = #tpu.dot_dimension_numbers<[1], [0], [0], [1], [0, 0, 1, 1], [], []>} : vector<64x128xbf16>, vector<128x128xbf16>, vector<64x128xf32> -> vector<64x128xf32>
    %c0_76 = arith.constant 0 : index
    %c16_77 = arith.constant 16 : index
    %c0_78 = arith.constant 0 : index
    %82 = vector.load %arg25[%c0_76, %c16_77, %c0_78] : memref<2x52x128xbf16, #tpu.memory_space<vmem>>, vector<2x32x128xbf16>
    %83 = vector.shape_cast %82 : vector<2x32x128xbf16> to vector<64x128xbf16>
    %c1_79 = arith.constant 1 : index
    %c0_80 = arith.constant 0 : index
    %c0_81 = arith.constant 0 : index
    %84 = vector.load %arg10[%c1_79, %c0_80, %c0_81] : memref<3x128x128xbf16, #tpu.memory_space<vmem>>, vector<1x128x128xbf16>
    %85 = vector.shape_cast %84 : vector<1x128x128xbf16> to vector<128x128xbf16>
    %cst_82 = arith.constant dense<0.000000e+00> : vector<64x128xf32>
    %86 = tpu.matmul %83, %85, %cst_82 {dimension_numbers = #tpu.dot_dimension_numbers<[1], [0], [0], [1], [0, 0, 1, 1], [], []>} : vector<64x128xbf16>, vector<128x128xbf16>, vector<64x128xf32> -> vector<64x128xf32>
    %87 = arith.addf %81, %86 : vector<64x128xf32>
    %c0_83 = arith.constant 0 : index
    %c18 = arith.constant 18 : index
    %c0_84 = arith.constant 0 : index
    %88 = vector.load %arg25[%c0_83, %c18, %c0_84] : memref<2x52x128xbf16, #tpu.memory_space<vmem>>, vector<2x32x128xbf16>
    %89 = vector.shape_cast %88 : vector<2x32x128xbf16> to vector<64x128xbf16>
    %c2_85 = arith.constant 2 : index
    %c0_86 = arith.constant 0 : index
    %c0_87 = arith.constant 0 : index
    %90 = vector.load %arg10[%c2_85, %c0_86, %c0_87] : memref<3x128x128xbf16, #tpu.memory_space<vmem>>, vector<1x128x128xbf16>
    %91 = vector.shape_cast %90 : vector<1x128x128xbf16> to vector<128x128xbf16>
    %cst_88 = arith.constant dense<0.000000e+00> : vector<64x128xf32>
    %92 = tpu.matmul %89, %91, %cst_88 {dimension_numbers = #tpu.dot_dimension_numbers<[1], [0], [0], [1], [0, 0, 1, 1], [], []>} : vector<64x128xbf16>, vector<128x128xbf16>, vector<64x128xf32> -> vector<64x128xf32>
    %93 = arith.addf %87, %92 : vector<64x128xf32>
    %c0_89 = arith.constant 0 : index
    %c0_90 = arith.constant 0 : index
    %94 = vector.load %arg11[%c0_89, %c0_90] : memref<1x128xf32, #tpu.memory_space<vmem>>, vector<1x128xf32>
    %95 = vector.broadcast %94 : vector<1x128xf32> to vector<64x128xf32>
    %96 = arith.mulf %93, %95 : vector<64x128xf32>
    %c0_91 = arith.constant 0 : index
    %c0_92 = arith.constant 0 : index
    %97 = vector.load %arg12[%c0_91, %c0_92] : memref<1x128xf32, #tpu.memory_space<vmem>>, vector<1x128xf32>
    %98 = vector.broadcast %97 : vector<1x128xf32> to vector<64x128xf32>
    %99 = arith.addf %96, %98 : vector<64x128xf32>
    %cst_93 = arith.constant 0.000000e+00 : f32
    %100 = vector.broadcast %cst_93 : f32 to vector<64x128xf32>
    %101 = arith.maximumf %99, %100 : vector<64x128xf32>
    %102 = arith.truncf %101 : vector<64x128xf32> to vector<64x128xbf16>
    %103 = vector.shape_cast %102 : vector<64x128xbf16> to vector<2x32x128xbf16>
    %104 = vector.extract_strided_slice %103 {offsets = [0, 0, 0], sizes = [2, 29, 128], strides = [1, 1, 1]} : vector<2x32x128xbf16> to vector<2x29x128xbf16>
    %c0_94 = arith.constant 0 : index
    %c16_95 = arith.constant 16 : index
    %c0_96 = arith.constant 0 : index
    %105 = vector.load %arg25[%c0_94, %c16_95, %c0_96] : memref<2x52x128xbf16, #tpu.memory_space<vmem>>, vector<2x29x128xbf16>
    tpu.vector_store %arg25[%c0_94, %c16_95, %c0_96], %104 {strides = array<i32>} : memref<2x52x128xbf16, #tpu.memory_space<vmem>>, vector<2x29x128xbf16>,
    %c0_97 = arith.constant 0 : index
    %c14_98 = arith.constant 14 : index
    %c0_99 = arith.constant 0 : index
    %106 = vector.load %arg25[%c0_97, %c14_98, %c0_99] : memref<2x52x128xbf16, #tpu.memory_space<vmem>>, vector<2x32x128xbf16>
    %107 = vector.shape_cast %106 : vector<2x32x128xbf16> to vector<64x128xbf16>
    %c0_100 = arith.constant 0 : index
    %c0_101 = arith.constant 0 : index
    %c0_102 = arith.constant 0 : index
    %108 = vector.load %arg13[%c0_100, %c0_101, %c0_102] : memref<3x128x128xbf16, #tpu.memory_space<vmem>>, vector<1x128x128xbf16>
    %109 = vector.shape_cast %108 : vector<1x128x128xbf16> to vector<128x128xbf16>
    %cst_103 = arith.constant dense<0.000000e+00> : vector<64x128xf32>
    %110 = tpu.matmul %107, %109, %cst_103 {dimension_numbers = #tpu.dot_dimension_numbers<[1], [0], [0], [1], [0, 0, 1, 1], [], []>} : vector<64x128xbf16>, vector<128x128xbf16>, vector<64x128xf32> -> vector<64x128xf32>
    %c0_104 = arith.constant 0 : index
    %c16_105 = arith.constant 16 : index
    %c0_106 = arith.constant 0 : index
    %111 = vector.load %arg25[%c0_104, %c16_105, %c0_106] : memref<2x52x128xbf16, #tpu.memory_space<vmem>>, vector<2x32x128xbf16>
    %112 = vector.shape_cast %111 : vector<2x32x128xbf16> to vector<64x128xbf16>
    %c1_107 = arith.constant 1 : index
    %c0_108 = arith.constant 0 : index
    %c0_109 = arith.constant 0 : index
    %113 = vector.load %arg13[%c1_107, %c0_108, %c0_109] : memref<3x128x128xbf16, #tpu.memory_space<vmem>>, vector<1x128x128xbf16>
    %114 = vector.shape_cast %113 : vector<1x128x128xbf16> to vector<128x128xbf16>
    %cst_110 = arith.constant dense<0.000000e+00> : vector<64x128xf32>
    %115 = tpu.matmul %112, %114, %cst_110 {dimension_numbers = #tpu.dot_dimension_numbers<[1], [0], [0], [1], [0, 0, 1, 1], [], []>} : vector<64x128xbf16>, vector<128x128xbf16>, vector<64x128xf32> -> vector<64x128xf32>
    %116 = arith.addf %110, %115 : vector<64x128xf32>
    %c0_111 = arith.constant 0 : index
    %c18_112 = arith.constant 18 : index
    %c0_113 = arith.constant 0 : index
    %117 = vector.load %arg25[%c0_111, %c18_112, %c0_113] : memref<2x52x128xbf16, #tpu.memory_space<vmem>>, vector<2x32x128xbf16>
    %118 = vector.shape_cast %117 : vector<2x32x128xbf16> to vector<64x128xbf16>
    %c2_114 = arith.constant 2 : index
    %c0_115 = arith.constant 0 : index
    %c0_116 = arith.constant 0 : index
    %119 = vector.load %arg13[%c2_114, %c0_115, %c0_116] : memref<3x128x128xbf16, #tpu.memory_space<vmem>>, vector<1x128x128xbf16>
    %120 = vector.shape_cast %119 : vector<1x128x128xbf16> to vector<128x128xbf16>
    %cst_117 = arith.constant dense<0.000000e+00> : vector<64x128xf32>
    %121 = tpu.matmul %118, %120, %cst_117 {dimension_numbers = #tpu.dot_dimension_numbers<[1], [0], [0], [1], [0, 0, 1, 1], [], []>} : vector<64x128xbf16>, vector<128x128xbf16>, vector<64x128xf32> -> vector<64x128xf32>
    %122 = arith.addf %116, %121 : vector<64x128xf32>
    %c0_118 = arith.constant 0 : index
    %c0_119 = arith.constant 0 : index
    %123 = vector.load %arg14[%c0_118, %c0_119] : memref<1x128xf32, #tpu.memory_space<vmem>>, vector<1x128xf32>
    %124 = vector.broadcast %123 : vector<1x128xf32> to vector<64x128xf32>
    %125 = arith.mulf %122, %124 : vector<64x128xf32>
    %c0_120 = arith.constant 0 : index
    %c0_121 = arith.constant 0 : index
    %126 = vector.load %arg15[%c0_120, %c0_121] : memref<1x128xf32, #tpu.memory_space<vmem>>, vector<1x128xf32>
    %127 = vector.broadcast %126 : vector<1x128xf32> to vector<64x128xf32>
    %128 = arith.addf %125, %127 : vector<64x128xf32>
    %cst_122 = arith.constant 0.000000e+00 : f32
    %129 = vector.broadcast %cst_122 : f32 to vector<64x128xf32>
    %130 = arith.maximumf %128, %129 : vector<64x128xf32>
    %131 = arith.addf %130, %72 : vector<64x128xf32>
    %cst_123 = arith.constant 0.000000e+00 : f32
    %132 = vector.broadcast %cst_123 : f32 to vector<64x128xf32>
    %133 = arith.maximumf %131, %132 : vector<64x128xf32>
    %134 = arith.truncf %133 : vector<64x128xf32> to vector<64x128xbf16>
    %135 = vector.shape_cast %134 : vector<64x128xbf16> to vector<2x32x128xbf16>
    %136 = vector.extract_strided_slice %135 {offsets = [0, 0, 0], sizes = [2, 29, 128], strides = [1, 1, 1]} : vector<2x32x128xbf16> to vector<2x29x128xbf16>
    %c0_124 = arith.constant 0 : index
    %c16_125 = arith.constant 16 : index
    %c0_126 = arith.constant 0 : index
    %137 = vector.load %arg25[%c0_124, %c16_125, %c0_126] : memref<2x52x128xbf16, #tpu.memory_space<vmem>>, vector<2x29x128xbf16>
    tpu.vector_store %arg25[%c0_124, %c16_125, %c0_126], %136 {strides = array<i32>} : memref<2x52x128xbf16, #tpu.memory_space<vmem>>, vector<2x29x128xbf16>,
    %c0_127 = arith.constant 0 : index
    %c12 = arith.constant 12 : index
    %c0_128 = arith.constant 0 : index
    %138 = vector.load %arg25[%c0_127, %c12, %c0_128] : memref<2x52x128xbf16, #tpu.memory_space<vmem>>, vector<2x32x128xbf16>
    %139 = vector.shape_cast %138 : vector<2x32x128xbf16> to vector<64x128xbf16>
    %c0_129 = arith.constant 0 : index
    %c0_130 = arith.constant 0 : index
    %c0_131 = arith.constant 0 : index
    %140 = vector.load %arg16[%c0_129, %c0_130, %c0_131] : memref<3x128x128xbf16, #tpu.memory_space<vmem>>, vector<1x128x128xbf16>
    %141 = vector.shape_cast %140 : vector<1x128x128xbf16> to vector<128x128xbf16>
    %cst_132 = arith.constant dense<0.000000e+00> : vector<64x128xf32>
    %142 = tpu.matmul %139, %141, %cst_132 {dimension_numbers = #tpu.dot_dimension_numbers<[1], [0], [0], [1], [0, 0, 1, 1], [], []>} : vector<64x128xbf16>, vector<128x128xbf16>, vector<64x128xf32> -> vector<64x128xf32>
    %c0_133 = arith.constant 0 : index
    %c16_134 = arith.constant 16 : index
    %c0_135 = arith.constant 0 : index
    %143 = vector.load %arg25[%c0_133, %c16_134, %c0_135] : memref<2x52x128xbf16, #tpu.memory_space<vmem>>, vector<2x32x128xbf16>
    %144 = vector.shape_cast %143 : vector<2x32x128xbf16> to vector<64x128xbf16>
    %c1_136 = arith.constant 1 : index
    %c0_137 = arith.constant 0 : index
    %c0_138 = arith.constant 0 : index
    %145 = vector.load %arg16[%c1_136, %c0_137, %c0_138] : memref<3x128x128xbf16, #tpu.memory_space<vmem>>, vector<1x128x128xbf16>
    %146 = vector.shape_cast %145 : vector<1x128x128xbf16> to vector<128x128xbf16>
    %cst_139 = arith.constant dense<0.000000e+00> : vector<64x128xf32>
    %147 = tpu.matmul %144, %146, %cst_139 {dimension_numbers = #tpu.dot_dimension_numbers<[1], [0], [0], [1], [0, 0, 1, 1], [], []>} : vector<64x128xbf16>, vector<128x128xbf16>, vector<64x128xf32> -> vector<64x128xf32>
    %148 = arith.addf %142, %147 : vector<64x128xf32>
    %c0_140 = arith.constant 0 : index
    %c20 = arith.constant 20 : index
    %c0_141 = arith.constant 0 : index
    %149 = vector.load %arg25[%c0_140, %c20, %c0_141] : memref<2x52x128xbf16, #tpu.memory_space<vmem>>, vector<2x32x128xbf16>
    %150 = vector.shape_cast %149 : vector<2x32x128xbf16> to vector<64x128xbf16>
    %c2_142 = arith.constant 2 : index
    %c0_143 = arith.constant 0 : index
    %c0_144 = arith.constant 0 : index
    %151 = vector.load %arg16[%c2_142, %c0_143, %c0_144] : memref<3x128x128xbf16, #tpu.memory_space<vmem>>, vector<1x128x128xbf16>
    %152 = vector.shape_cast %151 : vector<1x128x128xbf16> to vector<128x128xbf16>
    %cst_145 = arith.constant dense<0.000000e+00> : vector<64x128xf32>
    %153 = tpu.matmul %150, %152, %cst_145 {dimension_numbers = #tpu.dot_dimension_numbers<[1], [0], [0], [1], [0, 0, 1, 1], [], []>} : vector<64x128xbf16>, vector<128x128xbf16>, vector<64x128xf32> -> vector<64x128xf32>
    %154 = arith.addf %148, %153 : vector<64x128xf32>
    %c0_146 = arith.constant 0 : index
    %c0_147 = arith.constant 0 : index
    %155 = vector.load %arg17[%c0_146, %c0_147] : memref<1x128xf32, #tpu.memory_space<vmem>>, vector<1x128xf32>
    %156 = vector.broadcast %155 : vector<1x128xf32> to vector<64x128xf32>
    %157 = arith.mulf %154, %156 : vector<64x128xf32>
    %c0_148 = arith.constant 0 : index
    %c0_149 = arith.constant 0 : index
    %158 = vector.load %arg18[%c0_148, %c0_149] : memref<1x128xf32, #tpu.memory_space<vmem>>, vector<1x128xf32>
    %159 = vector.broadcast %158 : vector<1x128xf32> to vector<64x128xf32>
    %160 = arith.addf %157, %159 : vector<64x128xf32>
    %cst_150 = arith.constant 0.000000e+00 : f32
    %161 = vector.broadcast %cst_150 : f32 to vector<64x128xf32>
    %162 = arith.maximumf %160, %161 : vector<64x128xf32>
    %163 = arith.truncf %162 : vector<64x128xf32> to vector<64x128xbf16>
    %164 = vector.shape_cast %163 : vector<64x128xbf16> to vector<2x32x128xbf16>
    %165 = vector.extract_strided_slice %164 {offsets = [0, 0, 0], sizes = [2, 29, 128], strides = [1, 1, 1]} : vector<2x32x128xbf16> to vector<2x29x128xbf16>
    %c0_151 = arith.constant 0 : index
    %c16_152 = arith.constant 16 : index
    %c0_153 = arith.constant 0 : index
    %166 = vector.load %arg25[%c0_151, %c16_152, %c0_153] : memref<2x52x128xbf16, #tpu.memory_space<vmem>>, vector<2x29x128xbf16>
    tpu.vector_store %arg25[%c0_151, %c16_152, %c0_153], %165 {strides = array<i32>} : memref<2x52x128xbf16, #tpu.memory_space<vmem>>, vector<2x29x128xbf16>,
    %c0_154 = arith.constant 0 : index
    %c12_155 = arith.constant 12 : index
    %c0_156 = arith.constant 0 : index
    %167 = vector.load %arg25[%c0_154, %c12_155, %c0_156] : memref<2x52x128xbf16, #tpu.memory_space<vmem>>, vector<2x32x128xbf16>
    %168 = vector.shape_cast %167 : vector<2x32x128xbf16> to vector<64x128xbf16>
    %c0_157 = arith.constant 0 : index
    %c0_158 = arith.constant 0 : index
    %c0_159 = arith.constant 0 : index
    %169 = vector.load %arg19[%c0_157, %c0_158, %c0_159] : memref<3x128x128xbf16, #tpu.memory_space<vmem>>, vector<1x128x128xbf16>
    %170 = vector.shape_cast %169 : vector<1x128x128xbf16> to vector<128x128xbf16>
    %cst_160 = arith.constant dense<0.000000e+00> : vector<64x128xf32>
    %171 = tpu.matmul %168, %170, %cst_160 {dimension_numbers = #tpu.dot_dimension_numbers<[1], [0], [0], [1], [0, 0, 1, 1], [], []>} : vector<64x128xbf16>, vector<128x128xbf16>, vector<64x128xf32> -> vector<64x128xf32>
    %c0_161 = arith.constant 0 : index
    %c16_162 = arith.constant 16 : index
    %c0_163 = arith.constant 0 : index
    %172 = vector.load %arg25[%c0_161, %c16_162, %c0_163] : memref<2x52x128xbf16, #tpu.memory_space<vmem>>, vector<2x32x128xbf16>
    %173 = vector.shape_cast %172 : vector<2x32x128xbf16> to vector<64x128xbf16>
    %c1_164 = arith.constant 1 : index
    %c0_165 = arith.constant 0 : index
    %c0_166 = arith.constant 0 : index
    %174 = vector.load %arg19[%c1_164, %c0_165, %c0_166] : memref<3x128x128xbf16, #tpu.memory_space<vmem>>, vector<1x128x128xbf16>
    %175 = vector.shape_cast %174 : vector<1x128x128xbf16> to vector<128x128xbf16>
    %cst_167 = arith.constant dense<0.000000e+00> : vector<64x128xf32>
    %176 = tpu.matmul %173, %175, %cst_167 {dimension_numbers = #tpu.dot_dimension_numbers<[1], [0], [0], [1], [0, 0, 1, 1], [], []>} : vector<64x128xbf16>, vector<128x128xbf16>, vector<64x128xf32> -> vector<64x128xf32>
    %177 = arith.addf %171, %176 : vector<64x128xf32>
    %c0_168 = arith.constant 0 : index
    %c20_169 = arith.constant 20 : index
    %c0_170 = arith.constant 0 : index
    %178 = vector.load %arg25[%c0_168, %c20_169, %c0_170] : memref<2x52x128xbf16, #tpu.memory_space<vmem>>, vector<2x32x128xbf16>
    %179 = vector.shape_cast %178 : vector<2x32x128xbf16> to vector<64x128xbf16>
    %c2_171 = arith.constant 2 : index
    %c0_172 = arith.constant 0 : index
    %c0_173 = arith.constant 0 : index
    %180 = vector.load %arg19[%c2_171, %c0_172, %c0_173] : memref<3x128x128xbf16, #tpu.memory_space<vmem>>, vector<1x128x128xbf16>
    %181 = vector.shape_cast %180 : vector<1x128x128xbf16> to vector<128x128xbf16>
    %cst_174 = arith.constant dense<0.000000e+00> : vector<64x128xf32>
    %182 = tpu.matmul %179, %181, %cst_174 {dimension_numbers = #tpu.dot_dimension_numbers<[1], [0], [0], [1], [0, 0, 1, 1], [], []>} : vector<64x128xbf16>, vector<128x128xbf16>, vector<64x128xf32> -> vector<64x128xf32>
    %183 = arith.addf %177, %182 : vector<64x128xf32>
    %c0_175 = arith.constant 0 : index
    %c0_176 = arith.constant 0 : index
    %184 = vector.load %arg20[%c0_175, %c0_176] : memref<1x128xf32, #tpu.memory_space<vmem>>, vector<1x128xf32>
    %185 = vector.broadcast %184 : vector<1x128xf32> to vector<64x128xf32>
    %186 = arith.mulf %183, %185 : vector<64x128xf32>
    %c0_177 = arith.constant 0 : index
    %c0_178 = arith.constant 0 : index
    %187 = vector.load %arg21[%c0_177, %c0_178] : memref<1x128xf32, #tpu.memory_space<vmem>>, vector<1x128xf32>
    %188 = vector.broadcast %187 : vector<1x128xf32> to vector<64x128xf32>
    %189 = arith.addf %186, %188 : vector<64x128xf32>
    %cst_179 = arith.constant 0.000000e+00 : f32
    %190 = vector.broadcast %cst_179 : f32 to vector<64x128xf32>
    %191 = arith.maximumf %189, %190 : vector<64x128xf32>
    %c0_180 = arith.constant 0 : index
    %c0_181 = arith.constant 0 : index
    %192 = vector.load %arg22[%c0_180, %c0_181] : memref<128x128xbf16, #tpu.memory_space<vmem>>, vector<128x128xbf16>
    %cst_182 = arith.constant dense<0.000000e+00> : vector<64x128xf32>
    %193 = tpu.matmul %134, %192, %cst_182 {dimension_numbers = #tpu.dot_dimension_numbers<[1], [0], [0], [1], [0, 0, 1, 1], [], []>} : vector<64x128xbf16>, vector<128x128xbf16>, vector<64x128xf32> -> vector<64x128xf32>
    %c0_183 = arith.constant 0 : index
    %c0_184 = arith.constant 0 : index
    %194 = vector.load %arg23[%c0_183, %c0_184] : memref<1x128xf32, #tpu.memory_space<vmem>>, vector<1x128xf32>
    %195 = vector.broadcast %194 : vector<1x128xf32> to vector<64x128xf32>
    %196 = arith.addf %193, %195 : vector<64x128xf32>
    %197 = arith.addf %191, %196 : vector<64x128xf32>
    %cst_185 = arith.constant 0.000000e+00 : f32
    %198 = vector.broadcast %cst_185 : f32 to vector<64x128xf32>
    %199 = arith.maximumf %197, %198 : vector<64x128xf32>
    %200 = vector.shape_cast %199 : vector<64x128xf32> to vector<2x32x128xf32>
    %c0_186 = arith.constant 0 : index
    %c0_187 = arith.constant 0 : index
    %c0_188 = arith.constant 0 : index
    %201 = vector.load %arg24[%c0_186, %c0_187, %c0_188] : memref<2x32x128xf32, #tpu.memory_space<vmem>>, vector<2x32x128xf32>
    tpu.vector_store %arg24[%c0_186, %c0_187, %c0_188], %200 {strides = array<i32>} : memref<2x32x128xf32, #tpu.memory_space<vmem>>, vector<2x32x128xf32>,
    return
  }
  func.func @transform_0(%arg0: i32) -> (i32, i32, i32) {
    %c0_i32 = arith.constant 0 : i32
    %c0_i32_0 = arith.constant 0 : i32
    %c0_i32_1 = arith.constant 0 : i32
    return %arg0, %c0_i32, %c0_i32_0 : i32, i32, i32
  }
  func.func @transform_1(%arg0: i32) -> (i32, i32, i32) {
    %c0_i32 = arith.constant 0 : i32
    %c0_i32_0 = arith.constant 0 : i32
    %c0_i32_1 = arith.constant 0 : i32
    %c0_i32_2 = arith.constant 0 : i32
    return %c0_i32, %c0_i32_0, %c0_i32_1 : i32, i32, i32
  }
  func.func @transform_2(%arg0: i32) -> (i32, i32) {
    %c0_i32 = arith.constant 0 : i32
    %c0_i32_0 = arith.constant 0 : i32
    %c0_i32_1 = arith.constant 0 : i32
    return %c0_i32, %c0_i32_0 : i32, i32
  }
  func.func @transform_3(%arg0: i32) -> (i32, i32) {
    %c0_i32 = arith.constant 0 : i32
    %c0_i32_0 = arith.constant 0 : i32
    %c0_i32_1 = arith.constant 0 : i32
    return %c0_i32, %c0_i32_0 : i32, i32
  }
  func.func @transform_4(%arg0: i32) -> (i32, i32, i32) {
    %c0_i32 = arith.constant 0 : i32
    %c0_i32_0 = arith.constant 0 : i32
    %c0_i32_1 = arith.constant 0 : i32
    %c0_i32_2 = arith.constant 0 : i32
    return %c0_i32, %c0_i32_0, %c0_i32_1 : i32, i32, i32
  }
  func.func @transform_5(%arg0: i32) -> (i32, i32) {
    %c0_i32 = arith.constant 0 : i32
    %c0_i32_0 = arith.constant 0 : i32
    %c0_i32_1 = arith.constant 0 : i32
    return %c0_i32, %c0_i32_0 : i32, i32
  }
  func.func @transform_6(%arg0: i32) -> (i32, i32) {
    %c0_i32 = arith.constant 0 : i32
    %c0_i32_0 = arith.constant 0 : i32
    %c0_i32_1 = arith.constant 0 : i32
    return %c0_i32, %c0_i32_0 : i32, i32
  }
  func.func @transform_7(%arg0: i32) -> (i32, i32) {
    %c0_i32 = arith.constant 0 : i32
    %c0_i32_0 = arith.constant 0 : i32
    %c0_i32_1 = arith.constant 0 : i32
    return %c0_i32, %c0_i32_0 : i32, i32
  }
  func.func @transform_8(%arg0: i32) -> (i32, i32) {
    %c0_i32 = arith.constant 0 : i32
    %c0_i32_0 = arith.constant 0 : i32
    %c0_i32_1 = arith.constant 0 : i32
    return %c0_i32, %c0_i32_0 : i32, i32
  }
  func.func @transform_9(%arg0: i32) -> (i32, i32, i32) {
    %c0_i32 = arith.constant 0 : i32
    %c0_i32_0 = arith.constant 0 : i32
    %c0_i32_1 = arith.constant 0 : i32
    %c0_i32_2 = arith.constant 0 : i32
    return %c0_i32, %c0_i32_0, %c0_i32_1 : i32, i32, i32
  }
  func.func @transform_10(%arg0: i32) -> (i32, i32) {
    %c0_i32 = arith.constant 0 : i32
    %c0_i32_0 = arith.constant 0 : i32
    %c0_i32_1 = arith.constant 0 : i32
    return %c0_i32, %c0_i32_0 : i32, i32
  }
  func.func @transform_11(%arg0: i32) -> (i32, i32) {
    %c0_i32 = arith.constant 0 : i32
    %c0_i32_0 = arith.constant 0 : i32
    %c0_i32_1 = arith.constant 0 : i32
    return %c0_i32, %c0_i32_0 : i32, i32
  }
  func.func @transform_12(%arg0: i32) -> (i32, i32, i32) {
    %c0_i32 = arith.constant 0 : i32
    %c0_i32_0 = arith.constant 0 : i32
    %c0_i32_1 = arith.constant 0 : i32
    %c0_i32_2 = arith.constant 0 : i32
    return %c0_i32, %c0_i32_0, %c0_i32_1 : i32, i32, i32
  }
  func.func @transform_13(%arg0: i32) -> (i32, i32) {
    %c0_i32 = arith.constant 0 : i32
    %c0_i32_0 = arith.constant 0 : i32
    %c0_i32_1 = arith.constant 0 : i32
    return %c0_i32, %c0_i32_0 : i32, i32
  }
  func.func @transform_14(%arg0: i32) -> (i32, i32) {
    %c0_i32 = arith.constant 0 : i32
    %c0_i32_0 = arith.constant 0 : i32
    %c0_i32_1 = arith.constant 0 : i32
    return %c0_i32, %c0_i32_0 : i32, i32
  }
  func.func @transform_15(%arg0: i32) -> (i32, i32, i32) {
    %c0_i32 = arith.constant 0 : i32
    %c0_i32_0 = arith.constant 0 : i32
    %c0_i32_1 = arith.constant 0 : i32
    %c0_i32_2 = arith.constant 0 : i32
    return %c0_i32, %c0_i32_0, %c0_i32_1 : i32, i32, i32
  }
  func.func @transform_16(%arg0: i32) -> (i32, i32) {
    %c0_i32 = arith.constant 0 : i32
    %c0_i32_0 = arith.constant 0 : i32
    %c0_i32_1 = arith.constant 0 : i32
    return %c0_i32, %c0_i32_0 : i32, i32
  }
  func.func @transform_17(%arg0: i32) -> (i32, i32) {
    %c0_i32 = arith.constant 0 : i32
    %c0_i32_0 = arith.constant 0 : i32
    %c0_i32_1 = arith.constant 0 : i32
    return %c0_i32, %c0_i32_0 : i32, i32
  }
  func.func @transform_18(%arg0: i32) -> (i32, i32, i32) {
    %c0_i32 = arith.constant 0 : i32
    %c0_i32_0 = arith.constant 0 : i32
    %c0_i32_1 = arith.constant 0 : i32
    %c0_i32_2 = arith.constant 0 : i32
    return %c0_i32, %c0_i32_0, %c0_i32_1 : i32, i32, i32
  }
  func.func @transform_19(%arg0: i32) -> (i32, i32) {
    %c0_i32 = arith.constant 0 : i32
    %c0_i32_0 = arith.constant 0 : i32
    %c0_i32_1 = arith.constant 0 : i32
    return %c0_i32, %c0_i32_0 : i32, i32
  }
  func.func @transform_20(%arg0: i32) -> (i32, i32) {
    %c0_i32 = arith.constant 0 : i32
    %c0_i32_0 = arith.constant 0 : i32
    %c0_i32_1 = arith.constant 0 : i32
    return %c0_i32, %c0_i32_0 : i32, i32
  }
  func.func @transform_21(%arg0: i32) -> (i32, i32) {
    %c0_i32 = arith.constant 0 : i32
    %c0_i32_0 = arith.constant 0 : i32
    %c0_i32_1 = arith.constant 0 : i32
    return %c0_i32, %c0_i32_0 : i32, i32
  }
  func.func @transform_22(%arg0: i32) -> (i32, i32) {
    %c0_i32 = arith.constant 0 : i32
    %c0_i32_0 = arith.constant 0 : i32
    %c0_i32_1 = arith.constant 0 : i32
    return %c0_i32, %c0_i32_0 : i32, i32
  }
  func.func @transform_23(%arg0: i32) -> (i32, i32, i32) {
    %c0_i32 = arith.constant 0 : i32
    %c0_i32_0 = arith.constant 0 : i32
    %c0_i32_1 = arith.constant 0 : i32
    return %arg0, %c0_i32, %c0_i32_0 : i32, i32, i32
  }
}

</mosaic_0001>

<llo_original>
// kernel: temporal_conv_net.1
$region0: #{temporal_conv_net.1}
  #allocation0 [shape = 'u32[]', space=smem, size = 0x4, offset = 0x4, fixed_abs, tag = 'smem constant byte address 0x4 - core index']
  #allocation1 [shape = 'u32[72,128]{1,0:T(1,128)}', space=vmem, size = 0x9000, scoped, tag = 'internal scratch']
  #allocation2 [shape = 'bf16[2,52,128]{2,1,0:T(8,128)(2,1)}', space=vmem, size = 0x7000, scoped, tag = 'scratch operand']
  %s0 = inlined_call_operand.vmem [shape: bf16[4,32,128], index: 0, kind: input, shape index: {}]
  %s1 = inlined_call_operand.vmem [shape: bf16[3,128,128], index: 1, kind: input, shape index: {}]
  %s2 = inlined_call_operand.vmem [shape: f32[1,128], index: 2, kind: input, shape index: {}]
  %s3 = inlined_call_operand.vmem [shape: f32[1,128], index: 3, kind: input, shape index: {}]
  %s4 = inlined_call_operand.vmem [shape: bf16[3,128,128], index: 4, kind: input, shape index: {}]
  %s5 = inlined_call_operand.vmem [shape: f32[1,128], index: 5, kind: input, shape index: {}]
  %s6 = inlined_call_operand.vmem [shape: f32[1,128], index: 6, kind: input, shape index: {}]
  %s7 = inlined_call_operand.vmem [shape: bf16[128,128], index: 7, kind: input, shape index: {}]
  %s8 = inlined_call_operand.vmem [shape: f32[1,128], index: 8, kind: input, shape index: {}]
  %s9 = inlined_call_operand.vmem [shape: bf16[3,128,128], index: 9, kind: input, shape index: {}]
  %s10 = inlined_call_operand.vmem [shape: f32[1,128], index: 10, kind: input, shape index: {}]
  %s11 = inlined_call_operand.vmem [shape: f32[1,128], index: 11, kind: input, shape index: {}]
  %s12 = inlined_call_operand.vmem [shape: bf16[3,128,128], index: 12, kind: input, shape index: {}]
  %s13 = inlined_call_operand.vmem [shape: f32[1,128], index: 13, kind: input, shape index: {}]
  %s14 = inlined_call_operand.vmem [shape: f32[1,128], index: 14, kind: input, shape index: {}]
  %s15 = inlined_call_operand.vmem [shape: bf16[3,128,128], index: 15, kind: input, shape index: {}]
  %s16 = inlined_call_operand.vmem [shape: f32[1,128], index: 16, kind: input, shape index: {}]
  %s17 = inlined_call_operand.vmem [shape: f32[1,128], index: 17, kind: input, shape index: {}]
  %s18 = inlined_call_operand.vmem [shape: bf16[3,128,128], index: 18, kind: input, shape index: {}]
  %s19 = inlined_call_operand.vmem [shape: f32[1,128], index: 19, kind: input, shape index: {}]
  %s20 = inlined_call_operand.vmem [shape: f32[1,128], index: 20, kind: input, shape index: {}]
  %s21 = inlined_call_operand.vmem [shape: bf16[128,128], index: 21, kind: input, shape index: {}]
  %s22 = inlined_call_operand.vmem [shape: f32[1,128], index: 22, kind: input, shape index: {}]
  %s23 = inlined_call_operand.vmem [shape: f32[4,32,128], index: 23, kind: output, shape index: {}]
  %s24 = sld [smem:[#allocation0]]
  $region125: #{temporal_conv_net.1} parent=0
    _
  %s26 = ssub.s32 1, %s24
  %s27 = scalar_select 0, %s26, %s24
  loop: start=0, step=1, limit=4
  $region2: #{temporal_conv_net.1} parent=0 // loop_pre_header
    _
  $region3: #{temporal_conv_net.1} parent=0 // loop_header
    %s29 = sphi 0, %s33
    %p30 = scmp.ge.s32.totalorder %s29, 4
    %s39 = sphi 0, %s41
    %s42 = sphi 0, %s39
    %s43 = sphi 0, %s42
    %s59 = sphi 0, %s43
    %s63 = sphi 0, %s63
    %s65 = sphi 0, %s63
    %s66 = sphi 0, %s65
    %s80 = sphi 0, %s66
    %s84 = sphi 0, %s84
    %s86 = sphi 0, %s84
    %s87 = sphi 0, %s86
    %s101 = sphi 0, %s87
    %s105 = sphi 0, %s105
    %s107 = sphi 0, %s105
    %s108 = sphi 0, %s107
    %s122 = sphi 0, %s108
    %s126 = sphi 0, %s126
    %s128 = sphi 0, %s126
    %s129 = sphi 0, %s128
    %s143 = sphi 0, %s129
    %s147 = sphi 0, %s147
    %s149 = sphi 0, %s147
    %s150 = sphi 0, %s149
    %s164 = sphi 0, %s150
    %s168 = sphi 0, %s168
    %s170 = sphi 0, %s168
    %s171 = sphi 0, %s170
    %s185 = sphi 0, %s171
    %s189 = sphi 0, %s189
    %s191 = sphi 0, %s189
    %s192 = sphi 0, %s191
    %s206 = sphi 0, %s192
    %s210 = sphi 0, %s210
    %s212 = sphi 0, %s210
    %s213 = sphi 0, %s212
    %s227 = sphi 0, %s213
    %s231 = sphi 0, %s231
    %s233 = sphi 0, %s231
    %s234 = sphi 0, %s233
    %s248 = sphi 0, %s234
    %s252 = sphi 0, %s252
    %s254 = sphi 0, %s252
    %s255 = sphi 0, %s254
    %s269 = sphi 0, %s255
    %s273 = sphi 0, %s273
    %s275 = sphi 0, %s273
    %s276 = sphi 0, %s275
    %s290 = sphi 0, %s276
    %s294 = sphi 0, %s294
    %s296 = sphi 0, %s294
    %s297 = sphi 0, %s296
    %s311 = sphi 0, %s297
    %s315 = sphi 0, %s315
    %s317 = sphi 0, %s315
    %s318 = sphi 0, %s317
    %s332 = sphi 0, %s318
    %s336 = sphi 0, %s336
    %s338 = sphi 0, %s336
    %s339 = sphi 0, %s338
    %s353 = sphi 0, %s339
    %s357 = sphi 0, %s357
    %s359 = sphi 0, %s357
    %s360 = sphi 0, %s359
    %s374 = sphi 0, %s360
    %s378 = sphi 0, %s378
    %s380 = sphi 0, %s378
    %s381 = sphi 0, %s380
    %s395 = sphi 0, %s381
    %s399 = sphi 0, %s399
    %s401 = sphi 0, %s399
    %s402 = sphi 0, %s401
    %s416 = sphi 0, %s402
    %s420 = sphi 0, %s420
    %s422 = sphi 0, %s420
    %s423 = sphi 0, %s422
    %s437 = sphi 0, %s423
    %s441 = sphi 0, %s441
    %s443 = sphi 0, %s441
    %s444 = sphi 0, %s443
    %s458 = sphi 0, %s444
    %s462 = sphi 0, %s462
    %s464 = sphi 0, %s462
    %s465 = sphi 0, %s464
    %s479 = sphi 0, %s465
    %s483 = sphi 0, %s483
    %s485 = sphi 0, %s483
    %s486 = sphi 0, %s485
    %s500 = sphi 0, %s486
    %s504 = sphi 0, %s504
    %s506 = sphi 0, %s504
    %s507 = sphi 0, %s506
    %s521 = sphi 0, %s507
    %s527 = sphi 0, %s529
    %s530 = sphi 0, %s527
    %s531 = sphi 0, %s530
    %s547 = sphi 0, %s531
  $region4: #{temporal_conv_net.1} parent=0 // loop_header_branch
    %32 = sbr.rel (%p30) target = $region8
  $region5: #{temporal_conv_net.1} parent=0 // loop_body
    %s34 = ssub.s32 %s29, 1
    %s35 = ssub.s32 %s29, 2
    %s36 = sadd.s32 %s29, 1
    %s37 = ssub.s32 %s29, %s36
    %p38 = scmp.eq.s32.totalorder %s37, 0
    %s40 = sadd.s32 %s39, 1
    %s41 = scalar_select %p38, %s39, %s40
    %p44 = pneg %p38
    %p45 = scmp.eq.s32.totalorder %s29, 1
    %p46 = por %p44, %p45
    %p47 = scmp.ne.s32.totalorder %s39, %s42
    %p48 = scmp.eq.s32.totalorder %s29, 0
    %p49 = por %p47, %p48
    %p50 = scmp.ne.s32.totalorder %s39, %s42
    %p51 = scmp.eq.s32.totalorder %s34, 1
    %p52 = por %p50, %p51
    %p53 = scmp.ne.s32.totalorder %s42, %s43
    %p54 = scmp.eq.s32.totalorder %s34, 0
    %p55 = por %p53, %p54
    %p56 = scmp.ne.s32.totalorder %s42, %s43
    %p57 = scmp.eq.s32.totalorder %s35, 1
    %p58 = por %p56, %p57
    %p60 = scmp.ne.s32.totalorder %s43, %s59
    %p61 = scmp.eq.s32.totalorder %s35, 0
    %p62 = por %p60, %p61
    %s64 = sadd.s32 %s63, 1
    %p67 = scmp.eq.s32.totalorder %s29, 1
    %p68 = scmp.ne.s32.totalorder %s63, %s65
    %p69 = scmp.eq.s32.totalorder %s29, 0
    %p70 = por %p68, %p69
    %p71 = scmp.ne.s32.totalorder %s63, %s65
    %p72 = scmp.eq.s32.totalorder %s34, 1
    %p73 = por %p71, %p72
    %p74 = scmp.ne.s32.totalorder %s65, %s66
    %p75 = scmp.eq.s32.totalorder %s34, 0
    %p76 = por %p74, %p75
    %p77 = scmp.ne.s32.totalorder %s65, %s66
    %p78 = scmp.eq.s32.totalorder %s35, 1
    %p79 = por %p77, %p78
    %p81 = scmp.ne.s32.totalorder %s66, %s80
    %p82 = scmp.eq.s32.totalorder %s35, 0
    %p83 = por %p81, %p82
    %s85 = sadd.s32 %s84, 1
    %p88 = scmp.eq.s32.totalorder %s29, 1
    %p89 = scmp.ne.s32.totalorder %s84, %s86
    %p90 = scmp.eq.s32.totalorder %s29, 0
    %p91 = por %p89, %p90
    %p92 = scmp.ne.s32.totalorder %s84, %s86
    %p93 = scmp.eq.s32.totalorder %s34, 1
    %p94 = por %p92, %p93
    %p95 = scmp.ne.s32.totalorder %s86, %s87
    %p96 = scmp.eq.s32.totalorder %s34, 0
    %p97 = por %p95, %p96
    %p98 = scmp.ne.s32.totalorder %s86, %s87
    %p99 = scmp.eq.s32.totalorder %s35, 1
    %p100 = por %p98, %p99
    %p102 = scmp.ne.s32.totalorder %s87, %s101
    %p103 = scmp.eq.s32.totalorder %s35, 0
    %p104 = por %p102, %p103
    %s106 = sadd.s32 %s105, 1
    %p109 = scmp.eq.s32.totalorder %s29, 1
    %p110 = scmp.ne.s32.totalorder %s105, %s107
    %p111 = scmp.eq.s32.totalorder %s29, 0
    %p112 = por %p110, %p111
    %p113 = scmp.ne.s32.totalorder %s105, %s107
    %p114 = scmp.eq.s32.totalorder %s34, 1
    %p115 = por %p113, %p114
    %p116 = scmp.ne.s32.totalorder %s107, %s108
    %p117 = scmp.eq.s32.totalorder %s34, 0
    %p118 = por %p116, %p117
    %p119 = scmp.ne.s32.totalorder %s107, %s108
    %p120 = scmp.eq.s32.totalorder %s35, 1
    %p121 = por %p119, %p120
    %p123 = scmp.ne.s32.totalorder %s108, %s122
    %p124 = scmp.eq.s32.totalorder %s35, 0
    %p125 = por %p123, %p124
    %s127 = sadd.s32 %s126, 1
    %p130 = scmp.eq.s32.totalorder %s29, 1
    %p131 = scmp.ne.s32.totalorder %s126, %s128
    %p132 = scmp.eq.s32.totalorder %s29, 0
    %p133 = por %p131, %p132
    %p134 = scmp.ne.s32.totalorder %s126, %s128
    %p135 = scmp.eq.s32.totalorder %s34, 1
    %p136 = por %p134, %p135
    %p137 = scmp.ne.s32.totalorder %s128, %s129
    %p138 = scmp.eq.s32.totalorder %s34, 0
    %p139 = por %p137, %p138
    %p140 = scmp.ne.s32.totalorder %s128, %s129
    %p141 = scmp.eq.s32.totalorder %s35, 1
    %p142 = por %p140, %p141
    %p144 = scmp.ne.s32.totalorder %s129, %s143
    %p145 = scmp.eq.s32.totalorder %s35, 0
    %p146 = por %p144, %p145
    %s148 = sadd.s32 %s147, 1
    %p151 = scmp.eq.s32.totalorder %s29, 1
    %p152 = scmp.ne.s32.totalorder %s147, %s149
    %p153 = scmp.eq.s32.totalorder %s29, 0
    %p154 = por %p152, %p153
    %p155 = scmp.ne.s32.totalorder %s147, %s149
    %p156 = scmp.eq.s32.totalorder %s34, 1
    %p157 = por %p155, %p156
    %p158 = scmp.ne.s32.totalorder %s149, %s150
    %p159 = scmp.eq.s32.totalorder %s34, 0
    %p160 = por %p158, %p159
    %p161 = scmp.ne.s32.totalorder %s149, %s150
    %p162 = scmp.eq.s32.totalorder %s35, 1
    %p163 = por %p161, %p162
    %p165 = scmp.ne.s32.totalorder %s150, %s164
    %p166 = scmp.eq.s32.totalorder %s35, 0
    %p167 = por %p165, %p166
    %s169 = sadd.s32 %s168, 1
    %p172 = scmp.eq.s32.totalorder %s29, 1
    %p173 = scmp.ne.s32.totalorder %s168, %s170
    %p174 = scmp.eq.s32.totalorder %s29, 0
    %p175 = por %p173, %p174
    %p176 = scmp.ne.s32.totalorder %s168, %s170
    %p177 = scmp.eq.s32.totalorder %s34, 1
    %p178 = por %p176, %p177
    %p179 = scmp.ne.s32.totalorder %s170, %s171
    %p180 = scmp.eq.s32.totalorder %s34, 0
    %p181 = por %p179, %p180
    %p182 = scmp.ne.s32.totalorder %s170, %s171
    %p183 = scmp.eq.s32.totalorder %s35, 1
    %p184 = por %p182, %p183
    %p186 = scmp.ne.s32.totalorder %s171, %s185
    %p187 = scmp.eq.s32.totalorder %s35, 0
    %p188 = por %p186, %p187
    %s190 = sadd.s32 %s189, 1
    %p193 = scmp.eq.s32.totalorder %s29, 1
    %p194 = scmp.ne.s32.totalorder %s189, %s191
    %p195 = scmp.eq.s32.totalorder %s29, 0
    %p196 = por %p194, %p195
    %p197 = scmp.ne.s32.totalorder %s189, %s191
    %p198 = scmp.eq.s32.totalorder %s34, 1
    %p199 = por %p197, %p198
    %p200 = scmp.ne.s32.totalorder %s191, %s192
    %p201 = scmp.eq.s32.totalorder %s34, 0
    %p202 = por %p200, %p201
    %p203 = scmp.ne.s32.totalorder %s191, %s192
    %p204 = scmp.eq.s32.totalorder %s35, 1
    %p205 = por %p203, %p204
    %p207 = scmp.ne.s32.totalorder %s192, %s206
    %p208 = scmp.eq.s32.totalorder %s35, 0
    %p209 = por %p207, %p208
    %s211 = sadd.s32 %s210, 1
    %p214 = scmp.eq.s32.totalorder %s29, 1
    %p215 = scmp.ne.s32.totalorder %s210, %s212
    %p216 = scmp.eq.s32.totalorder %s29, 0
    %p217 = por %p215, %p216
    %p218 = scmp.ne.s32.totalorder %s210, %s212
    %p219 = scmp.eq.s32.totalorder %s34, 1
    %p220 = por %p218, %p219
    %p221 = scmp.ne.s32.totalorder %s212, %s213
    %p222 = scmp.eq.s32.totalorder %s34, 0
    %p223 = por %p221, %p222
    %p224 = scmp.ne.s32.totalorder %s212, %s213
    %p225 = scmp.eq.s32.totalorder %s35, 1
    %p226 = por %p224, %p225
    %p228 = scmp.ne.s32.totalorder %s213, %s227
    %p229 = scmp.eq.s32.totalorder %s35, 0
    %p230 = por %p228, %p229
    %s232 = sadd.s32 %s231, 1
    %p235 = scmp.eq.s32.totalorder %s29, 1
    %p236 = scmp.ne.s32.totalorder %s231, %s233
    %p237 = scmp.eq.s32.totalorder %s29, 0
    %p238 = por %p236, %p237
    %p239 = scmp.ne.s32.totalorder %s231, %s233
    %p240 = scmp.eq.s32.totalorder %s34, 1
    %p241 = por %p239, %p240
    %p242 = scmp.ne.s32.totalorder %s233, %s234
    %p243 = scmp.eq.s32.totalorder %s34, 0
    %p244 = por %p242, %p243
    %p245 = scmp.ne.s32.totalorder %s233, %s234
    %p246 = scmp.eq.s32.totalorder %s35, 1
    %p247 = por %p245, %p246
    %p249 = scmp.ne.s32.totalorder %s234, %s248
    %p250 = scmp.eq.s32.totalorder %s35, 0
    %p251 = por %p249, %p250
    %s253 = sadd.s32 %s252, 1
    %p256 = scmp.eq.s32.totalorder %s29, 1
    %p257 = scmp.ne.s32.totalorder %s252, %s254
    %p258 = scmp.eq.s32.totalorder %s29, 0
    %p259 = por %p257, %p258
    %p260 = scmp.ne.s32.totalorder %s252, %s254
    %p261 = scmp.eq.s32.totalorder %s34, 1
    %p262 = por %p260, %p261
    %p263 = scmp.ne.s32.totalorder %s254, %s255
    %p264 = scmp.eq.s32.totalorder %s34, 0
    %p265 = por %p263, %p264
    %p266 = scmp.ne.s32.totalorder %s254, %s255
    %p267 = scmp.eq.s32.totalorder %s35, 1
    %p268 = por %p266, %p267
    %p270 = scmp.ne.s32.totalorder %s255, %s269
    %p271 = scmp.eq.s32.totalorder %s35, 0
    %p272 = por %p270, %p271
    %s274 = sadd.s32 %s273, 1
    %p277 = scmp.eq.s32.totalorder %s29, 1
    %p278 = scmp.ne.s32.totalorder %s273, %s275
    %p279 = scmp.eq.s32.totalorder %s29, 0
    %p280 = por %p278, %p279
    %p281 = scmp.ne.s32.totalorder %s273, %s275
    %p282 = scmp.eq.s32.totalorder %s34, 1
    %p283 = por %p281, %p282
    %p284 = scmp.ne.s32.totalorder %s275, %s276
    %p285 = scmp.eq.s32.totalorder %s34, 0
    %p286 = por %p284, %p285
    %p287 = scmp.ne.s32.totalorder %s275, %s276
    %p288 = scmp.eq.s32.totalorder %s35, 1
    %p289 = por %p287, %p288
    %p291 = scmp.ne.s32.totalorder %s276, %s290
    %p292 = scmp.eq.s32.totalorder %s35, 0
    %p293 = por %p291, %p292
    %s295 = sadd.s32 %s294, 1
    %p298 = scmp.eq.s32.totalorder %s29, 1
    %p299 = scmp.ne.s32.totalorder %s294, %s296
    %p300 = scmp.eq.s32.totalorder %s29, 0
    %p301 = por %p299, %p300
    %p302 = scmp.ne.s32.totalorder %s294, %s296
    %p303 = scmp.eq.s32.totalorder %s34, 1
    %p304 = por %p302, %p303
    %p305 = scmp.ne.s32.totalorder %s296, %s297
    %p306 = scmp.eq.s32.totalorder %s34, 0
    %p307 = por %p305, %p306
    %p308 = scmp.ne.s32.totalorder %s296, %s297
    %p309 = scmp.eq.s32.totalorder %s35, 1
    %p310 = por %p308, %p309
    %p312 = scmp.ne.s32.totalorder %s297, %s311
    %p313 = scmp.eq.s32.totalorder %s35, 0
    %p314 = por %p312, %p313
    %s316 = sadd.s32 %s315, 1
    %p319 = scmp.eq.s32.totalorder %s29, 1
    %p320 = scmp.ne.s32.totalorder %s315, %s317
    %p321 = scmp.eq.s32.totalorder %s29, 0
    %p322 = por %p320, %p321
    %p323 = scmp.ne.s32.totalorder %s315, %s317
    %p324 = scmp.eq.s32.totalorder %s34, 1
    %p325 = por %p323, %p324
    %p326 = scmp.ne.s32.totalorder %s317, %s318
    %p327 = scmp.eq.s32.totalorder %s34, 0
    %p328 = por %p326, %p327
    %p329 = scmp.ne.s32.totalorder %s317, %s318
    %p330 = scmp.eq.s32.totalorder %s35, 1
    %p331 = por %p329, %p330
    %p333 = scmp.ne.s32.totalorder %s318, %s332
    %p334 = scmp.eq.s32.totalorder %s35, 0
    %p335 = por %p333, %p334
    %s337 = sadd.s32 %s336, 1
    %p340 = scmp.eq.s32.totalorder %s29, 1
    %p341 = scmp.ne.s32.totalorder %s336, %s338
    %p342 = scmp.eq.s32.totalorder %s29, 0
    %p343 = por %p341, %p342
    %p344 = scmp.ne.s32.totalorder %s336, %s338
    %p345 = scmp.eq.s32.totalorder %s34, 1
    %p346 = por %p344, %p345
    %p347 = scmp.ne.s32.totalorder %s338, %s339
    %p348 = scmp.eq.s32.totalorder %s34, 0
    %p349 = por %p347, %p348
    %p350 = scmp.ne.s32.totalorder %s338, %s339
    %p351 = scmp.eq.s32.totalorder %s35, 1
    %p352 = por %p350, %p351
    %p354 = scmp.ne.s32.totalorder %s339, %s353
    %p355 = scmp.eq.s32.totalorder %s35, 0
    %p356 = por %p354, %p355
    %s358 = sadd.s32 %s357, 1
    %p361 = scmp.eq.s32.totalorder %s29, 1
    %p362 = scmp.ne.s32.totalorder %s357, %s359
    %p363 = scmp.eq.s32.totalorder %s29, 0
    %p364 = por %p362, %p363
    %p365 = scmp.ne.s32.totalorder %s357, %s359
    %p366 = scmp.eq.s32.totalorder %s34, 1
    %p367 = por %p365, %p366
    %p368 = scmp.ne.s32.totalorder %s359, %s360
    %p369 = scmp.eq.s32.totalorder %s34, 0
    %p370 = por %p368, %p369
    %p371 = scmp.ne.s32.totalorder %s359, %s360
    %p372 = scmp.eq.s32.totalorder %s35, 1
    %p373 = por %p371, %p372
    %p375 = scmp.ne.s32.totalorder %s360, %s374
    %p376 = scmp.eq.s32.totalorder %s35, 0
    %p377 = por %p375, %p376
    %s379 = sadd.s32 %s378, 1
    %p382 = scmp.eq.s32.totalorder %s29, 1
    %p383 = scmp.ne.s32.totalorder %s378, %s380
    %p384 = scmp.eq.s32.totalorder %s29, 0
    %p385 = por %p383, %p384
    %p386 = scmp.ne.s32.totalorder %s378, %s380
    %p387 = scmp.eq.s32.totalorder %s34, 1
    %p388 = por %p386, %p387
    %p389 = scmp.ne.s32.totalorder %s380, %s381
    %p390 = scmp.eq.s32.totalorder %s34, 0
    %p391 = por %p389, %p390
    %p392 = scmp.ne.s32.totalorder %s380, %s381
    %p393 = scmp.eq.s32.totalorder %s35, 1
    %p394 = por %p392, %p393
    %p396 = scmp.ne.s32.totalorder %s381, %s395
    %p397 = scmp.eq.s32.totalorder %s35, 0
    %p398 = por %p396, %p397
    %s400 = sadd.s32 %s399, 1
    %p403 = scmp.eq.s32.totalorder %s29, 1
    %p404 = scmp.ne.s32.totalorder %s399, %s401
    %p405 = scmp.eq.s32.totalorder %s29, 0
    %p406 = por %p404, %p405
    %p407 = scmp.ne.s32.totalorder %s399, %s401
    %p408 = scmp.eq.s32.totalorder %s34, 1
    %p409 = por %p407, %p408
    %p410 = scmp.ne.s32.totalorder %s401, %s402
    %p411 = scmp.eq.s32.totalorder %s34, 0
    %p412 = por %p410, %p411
    %p413 = scmp.ne.s32.totalorder %s401, %s402
    %p414 = scmp.eq.s32.totalorder %s35, 1
    %p415 = por %p413, %p414
    %p417 = scmp.ne.s32.totalorder %s402, %s416
    %p418 = scmp.eq.s32.totalorder %s35, 0
    %p419 = por %p417, %p418
    %s421 = sadd.s32 %s420, 1
    %p424 = scmp.eq.s32.totalorder %s29, 1
    %p425 = scmp.ne.s32.totalorder %s420, %s422
    %p426 = scmp.eq.s32.totalorder %s29, 0
    %p427 = por %p425, %p426
    %p428 = scmp.ne.s32.totalorder %s420, %s422
    %p429 = scmp.eq.s32.totalorder %s34, 1
    %p430 = por %p428, %p429
    %p431 = scmp.ne.s32.totalorder %s422, %s423
    %p432 = scmp.eq.s32.totalorder %s34, 0
    %p433 = por %p431, %p432
    %p434 = scmp.ne.s32.totalorder %s422, %s423
    %p435 = scmp.eq.s32.totalorder %s35, 1
    %p436 = por %p434, %p435
    %p438 = scmp.ne.s32.totalorder %s423, %s437
    %p439 = scmp.eq.s32.totalorder %s35, 0
    %p440 = por %p438, %p439
    %s442 = sadd.s32 %s441, 1
    %p445 = scmp.eq.s32.totalorder %s29, 1
    %p446 = scmp.ne.s32.totalorder %s441, %s443
    %p447 = scmp.eq.s32.totalorder %s29, 0
    %p448 = por %p446, %p447
    %p449 = scmp.ne.s32.totalorder %s441, %s443
    %p450 = scmp.eq.s32.totalorder %s34, 1
    %p451 = por %p449, %p450
    %p452 = scmp.ne.s32.totalorder %s443, %s444
    %p453 = scmp.eq.s32.totalorder %s34, 0
    %p454 = por %p452, %p453
    %p455 = scmp.ne.s32.totalorder %s443, %s444
    %p456 = scmp.eq.s32.totalorder %s35, 1
    %p457 = por %p455, %p456
    %p459 = scmp.ne.s32.totalorder %s444, %s458
    %p460 = scmp.eq.s32.totalorder %s35, 0
    %p461 = por %p459, %p460
    %s463 = sadd.s32 %s462, 1
    %p466 = scmp.eq.s32.totalorder %s29, 1
    %p467 = scmp.ne.s32.totalorder %s462, %s464
    %p468 = scmp.eq.s32.totalorder %s29, 0
    %p469 = por %p467, %p468
    %p470 = scmp.ne.s32.totalorder %s462, %s464
    %p471 = scmp.eq.s32.totalorder %s34, 1
    %p472 = por %p470, %p471
    %p473 = scmp.ne.s32.totalorder %s464, %s465
    %p474 = scmp.eq.s32.totalorder %s34, 0
    %p475 = por %p473, %p474
    %p476 = scmp.ne.s32.totalorder %s464, %s465
    %p477 = scmp.eq.s32.totalorder %s35, 1
    %p478 = por %p476, %p477
    %p480 = scmp.ne.s32.totalorder %s465, %s479
    %p481 = scmp.eq.s32.totalorder %s35, 0
    %p482 = por %p480, %p481
    %s484 = sadd.s32 %s483, 1
    %p487 = scmp.eq.s32.totalorder %s29, 1
    %p488 = scmp.ne.s32.totalorder %s483, %s485
    %p489 = scmp.eq.s32.totalorder %s29, 0
    %p490 = por %p488, %p489
    %p491 = scmp.ne.s32.totalorder %s483, %s485
    %p492 = scmp.eq.s32.totalorder %s34, 1
    %p493 = por %p491, %p492
    %p494 = scmp.ne.s32.totalorder %s485, %s486
    %p495 = scmp.eq.s32.totalorder %s34, 0
    %p496 = por %p494, %p495
    %p497 = scmp.ne.s32.totalorder %s485, %s486
    %p498 = scmp.eq.s32.totalorder %s35, 1
    %p499 = por %p497, %p498
    %p501 = scmp.ne.s32.totalorder %s486, %s500
    %p502 = scmp.eq.s32.totalorder %s35, 0
    %p503 = por %p501, %p502
    %s505 = sadd.s32 %s504, 1
    %p508 = scmp.eq.s32.totalorder %s29, 1
    %p509 = scmp.ne.s32.totalorder %s504, %s506
    %p510 = scmp.eq.s32.totalorder %s29, 0
    %p511 = por %p509, %p510
    %p512 = scmp.ne.s32.totalorder %s504, %s506
    %p513 = scmp.eq.s32.totalorder %s34, 1
    %p514 = por %p512, %p513
    %p515 = scmp.ne.s32.totalorder %s506, %s507
    %p516 = scmp.eq.s32.totalorder %s34, 0
    %p517 = por %p515, %p516
    %p518 = scmp.ne.s32.totalorder %s506, %s507
    %p519 = scmp.eq.s32.totalorder %s35, 1
    %p520 = por %p518, %p519
    %p522 = scmp.ne.s32.totalorder %s507, %s521
    %p523 = scmp.eq.s32.totalorder %s35, 0
    %p524 = por %p522, %p523
    %s525 = ssub.s32 %s29, %s36
    %p526 = scmp.eq.s32.totalorder %s525, 0
    %s528 = sadd.s32 %s527, 1
    %s529 = scalar_select %p526, %s527, %s528
    %p532 = pneg %p526
    %p533 = scmp.eq.s32.totalorder %s29, 1
    %p534 = por %p532, %p533
    %p535 = scmp.ne.s32.totalorder %s527, %s530
    %p536 = scmp.eq.s32.totalorder %s29, 0
    %p537 = por %p535, %p536
    %p538 = scmp.ne.s32.totalorder %s527, %s530
    %p539 = scmp.eq.s32.totalorder %s34, 1
    %p540 = por %p538, %p539
    %p541 = scmp.ne.s32.totalorder %s530, %s531
    %p542 = scmp.eq.s32.totalorder %s34, 0
    %p543 = por %p541, %p542
    %p544 = scmp.ne.s32.totalorder %s530, %s531
    %p545 = scmp.eq.s32.totalorder %s35, 1
    %p546 = por %p544, %p545
    %p548 = scmp.ne.s32.totalorder %s531, %s547
    %p549 = scmp.eq.s32.totalorder %s35, 0
    %p550 = por %p548, %p549
    %p551 = scmp.le.s32.totalorder 1, %s29
    %p552 = scmp.lt.s32.totalorder %s29, 3
    %p553 = pnand %p551, %p552
    %p554 = pneg %p553
    // Predicated region
    $region9: #{temporal_conv_net.1} parent=5 // pred_check
      _
    $region10: #{temporal_conv_net.1} parent=5 // pred_check_branch
      %556 = sbr.rel (%p553) target = $region12
    $region11: #{temporal_conv_net.1} parent=5 // pred_region
      %s557 = ssub.s32 %s29, 1
      // Predicated region
      $region13: #{temporal_conv_net.1} parent=11 // pred_check
        %p558 = pneg %p76
      $region14: #{temporal_conv_net.1} parent=11 // pred_check_branch
        %560 = sbr.rel (%p558) target = $region16
      $region15: #{temporal_conv_net.1} parent=11 // pred_region
        _
      $region16: #{temporal_conv_net.1} parent=11 // pred_fallthru
        _
      // Predicated region
      $region17: #{temporal_conv_net.1} parent=11 // pred_check
        %p561 = pneg %p97
      $region18: #{temporal_conv_net.1} parent=11 // pred_check_branch
        %563 = sbr.rel (%p561) target = $region20
      $region19: #{temporal_conv_net.1} parent=11 // pred_region
        _
      $region20: #{temporal_conv_net.1} parent=11 // pred_fallthru
        _
      // Predicated region
      $region21: #{temporal_conv_net.1} parent=11 // pred_check
        %p564 = pneg %p118
      $region22: #{temporal_conv_net.1} parent=11 // pred_check_branch
        %566 = sbr.rel (%p564) target = $region24
      $region23: #{temporal_conv_net.1} parent=11 // pred_region
        _
      $region24: #{temporal_conv_net.1} parent=11 // pred_fallthru
        _
      // Predicated region
      $region25: #{temporal_conv_net.1} parent=11 // pred_check
        %p567 = pneg %p139
      $region26: #{temporal_conv_net.1} parent=11 // pred_check_branch
        %569 = sbr.rel (%p567) target = $region28
      $region27: #{temporal_conv_net.1} parent=11 // pred_region
        _
      $region28: #{temporal_conv_net.1} parent=11 // pred_fallthru
        _
      // Predicated region
      $region29: #{temporal_conv_net.1} parent=11 // pred_check
        %p570 = pneg %p160
      $region30: #{temporal_conv_net.1} parent=11 // pred_check_branch
        %572 = sbr.rel (%p570) target = $region32
      $region31: #{temporal_conv_net.1} parent=11 // pred_region
        _
      $region32: #{temporal_conv_net.1} parent=11 // pred_fallthru
        _
      // Predicated region
      $region33: #{temporal_conv_net.1} parent=11 // pred_check
        %p573 = pneg %p181
      $region34: #{temporal_conv_net.1} parent=11 // pred_check_branch
        %575 = sbr.rel (%p573) target = $region36
      $region35: #{temporal_conv_net.1} parent=11 // pred_region
        _
      $region36: #{temporal_conv_net.1} parent=11 // pred_fallthru
        _
      // Predicated region
      $region37: #{temporal_conv_net.1} parent=11 // pred_check
        %p576 = pneg %p202
      $region38: #{temporal_conv_net.1} parent=11 // pred_check_branch
        %578 = sbr.rel (%p576) target = $region40
      $region39: #{temporal_conv_net.1} parent=11 // pred_region
        _
      $region40: #{temporal_conv_net.1} parent=11 // pred_fallthru
        _
      // Predicated region
      $region41: #{temporal_conv_net.1} parent=11 // pred_check
        %p579 = pneg %p223
      $region42: #{temporal_conv_net.1} parent=11 // pred_check_branch
        %581 = sbr.rel (%p579) target = $region44
      $region43: #{temporal_conv_net.1} parent=11 // pred_region
        _
      $region44: #{temporal_conv_net.1} parent=11 // pred_fallthru
        _
      // Predicated region
      $region45: #{temporal_conv_net.1} parent=11 // pred_check
        %p582 = pneg %p244
      $region46: #{temporal_conv_net.1} parent=11 // pred_check_branch
        %584 = sbr.rel (%p582) target = $region48
      $region47: #{temporal_conv_net.1} parent=11 // pred_region
        _
      $region48: #{temporal_conv_net.1} parent=11 // pred_fallthru
        _
      // Predicated region
      $region49: #{temporal_conv_net.1} parent=11 // pred_check
        %p585 = pneg %p265
      $region50: #{temporal_conv_net.1} parent=11 // pred_check_branch
        %587 = sbr.rel (%p585) target = $region52
      $region51: #{temporal_conv_net.1} parent=11 // pred_region
        _
      $region52: #{temporal_conv_net.1} parent=11 // pred_fallthru
        _
      // Predicated region
      $region53: #{temporal_conv_net.1} parent=11 // pred_check
        %p588 = pneg %p286
      $region54: #{temporal_conv_net.1} parent=11 // pred_check_branch
        %590 = sbr.rel (%p588) target = $region56
      $region55: #{temporal_conv_net.1} parent=11 // pred_region
        _
      $region56: #{temporal_conv_net.1} parent=11 // pred_fallthru
        _
      // Predicated region
      $region57: #{temporal_conv_net.1} parent=11 // pred_check
        %p591 = pneg %p307
      $region58: #{temporal_conv_net.1} parent=11 // pred_check_branch
        %593 = sbr.rel (%p591) target = $region60
      $region59: #{temporal_conv_net.1} parent=11 // pred_region
        _
      $region60: #{temporal_conv_net.1} parent=11 // pred_fallthru
        _
      // Predicated region
      $region61: #{temporal_conv_net.1} parent=11 // pred_check
        %p594 = pneg %p328
      $region62: #{temporal_conv_net.1} parent=11 // pred_check_branch
        %596 = sbr.rel (%p594) target = $region64
      $region63: #{temporal_conv_net.1} parent=11 // pred_region
        _
      $region64: #{temporal_conv_net.1} parent=11 // pred_fallthru
        _
      // Predicated region
      $region65: #{temporal_conv_net.1} parent=11 // pred_check
        %p597 = pneg %p349
      $region66: #{temporal_conv_net.1} parent=11 // pred_check_branch
        %599 = sbr.rel (%p597) target = $region68
      $region67: #{temporal_conv_net.1} parent=11 // pred_region
        _
      $region68: #{temporal_conv_net.1} parent=11 // pred_fallthru
        _
      // Predicated region
      $region69: #{temporal_conv_net.1} parent=11 // pred_check
        %p600 = pneg %p370
      $region70: #{temporal_conv_net.1} parent=11 // pred_check_branch
        %602 = sbr.rel (%p600) target = $region72
      $region71: #{temporal_conv_net.1} parent=11 // pred_region
        _
      $region72: #{temporal_conv_net.1} parent=11 // pred_fallthru
        _
      // Predicated region
      $region73: #{temporal_conv_net.1} parent=11 // pred_check
        %p603 = pneg %p391
      $region74: #{temporal_conv_net.1} parent=11 // pred_check_branch
        %605 = sbr.rel (%p603) target = $region76
      $region75: #{temporal_conv_net.1} parent=11 // pred_region
        _
      $region76: #{temporal_conv_net.1} parent=11 // pred_fallthru
        _
      // Predicated region
      $region77: #{temporal_conv_net.1} parent=11 // pred_check
        %p606 = pneg %p412
      $region78: #{temporal_conv_net.1} parent=11 // pred_check_branch
        %608 = sbr.rel (%p606) target = $region80
      $region79: #{temporal_conv_net.1} parent=11 // pred_region
        _
      $region80: #{temporal_conv_net.1} parent=11 // pred_fallthru
        _
      // Predicated region
      $region81: #{temporal_conv_net.1} parent=11 // pred_check
        %p609 = pneg %p433
      $region82: #{temporal_conv_net.1} parent=11 // pred_check_branch
        %611 = sbr.rel (%p609) target = $region84
      $region83: #{temporal_conv_net.1} parent=11 // pred_region
        _
      $region84: #{temporal_conv_net.1} parent=11 // pred_fallthru
        _
      // Predicated region
      $region85: #{temporal_conv_net.1} parent=11 // pred_check
        %p612 = pneg %p454
      $region86: #{temporal_conv_net.1} parent=11 // pred_check_branch
        %614 = sbr.rel (%p612) target = $region88
      $region87: #{temporal_conv_net.1} parent=11 // pred_region
        _
      $region88: #{temporal_conv_net.1} parent=11 // pred_fallthru
        _
      // Predicated region
      $region89: #{temporal_conv_net.1} parent=11 // pred_check
        %p615 = pneg %p475
      $region90: #{temporal_conv_net.1} parent=11 // pred_check_branch
        %617 = sbr.rel (%p615) target = $region92
      $region91: #{temporal_conv_net.1} parent=11 // pred_region
        _
      $region92: #{temporal_conv_net.1} parent=11 // pred_fallthru
        _
      // Predicated region
      $region93: #{temporal_conv_net.1} parent=11 // pred_check
        %p618 = pneg %p496
      $region94: #{temporal_conv_net.1} parent=11 // pred_check_branch
        %620 = sbr.rel (%p618) target = $region96
      $region95: #{temporal_conv_net.1} parent=11 // pred_region
        _
      $region96: #{temporal_conv_net.1} parent=11 // pred_fallthru
        _
      // Predicated region
      $region97: #{temporal_conv_net.1} parent=11 // pred_check
        %p621 = pneg %p517
      $region98: #{temporal_conv_net.1} parent=11 // pred_check_branch
        %623 = sbr.rel (%p621) target = $region100
      $region99: #{temporal_conv_net.1} parent=11 // pred_region
        _
      $region100: #{temporal_conv_net.1} parent=11 // pred_fallthru
        _
    $region12: #{temporal_conv_net.1} parent=5 // pred_fallthru
      _
    %p624 = scmp.lt.s32.totalorder %s29, 2
    // Predicated region
    $region101: #{temporal_conv_net.1} parent=5 // pred_check
      %p625 = pneg %p624
    $region102: #{temporal_conv_net.1} parent=5 // pred_check_branch
      %627 = sbr.rel (%p625) target = $region104
    $region103: #{temporal_conv_net.1} parent=5 // pred_region
      // Predicated region
      $region105: #{temporal_conv_net.1} parent=103 // pred_check
        %p628 = pneg %p49
      $region106: #{temporal_conv_net.1} parent=103 // pred_check_branch
        %630 = sbr.rel (%p628) target = $region108
      $region107: #{temporal_conv_net.1} parent=103 // pred_region
        %s631 = smul.u32 2, %s29
        %p632 = scmp.lt.s32.totalorder %s631, 3
        %s633 = scalar_select %p632, %s631, 3
        %s634 = smul.addr %s633, 4
        %s635 = smul.addr %s634, 4
        %s636 = scalar_lea.vmem %s0, %s635
        %s637 = smul.u32 2, %s29
      $region108: #{temporal_conv_net.1} parent=103 // pred_fallthru
        _
    $region104: #{temporal_conv_net.1} parent=5 // pred_fallthru
      _
    %p638 = scmp.le.s32.totalorder 1, %s29
    %p639 = scmp.lt.s32.totalorder %s29, 3
    %p640 = pnand %p638, %p639
    %p641 = pneg %p640
    // Predicated region
    $region109: #{temporal_conv_net.1} parent=5 // pred_check
      _
    $region110: #{temporal_conv_net.1} parent=5 // pred_check_branch
      %643 = sbr.rel (%p640) target = $region112
    $region111: #{temporal_conv_net.1} parent=5 // pred_region
      %s644 = ssub.s32 %s29, 1
      %s645 = smul.u32 2, %s34
      %p646 = scmp.lt.s32.totalorder %s645, 3
      %s647 = scalar_select %p646, %s645, 3
      %s648 = smul.addr %s647, 4
      %s649 = smul.addr %s648, 4
      %s650 = scalar_lea.vmem %s0, %s649
      %p651 = pneg %p55
      %p652 = pneg %p52
      %p653 = pneg %p76
      %p654 = pneg %p73
      %p655 = pneg %p97
      %p656 = pneg %p94
      %p657 = pneg %p118
      %p658 = pneg %p115
      %p659 = pneg %p139
      %p660 = pneg %p136
      %p661 = pneg %p160
      %p662 = pneg %p157
      %p663 = pneg %p181
      %p664 = pneg %p178
      %p665 = pneg %p202
      %p666 = pneg %p199
      %p667 = pneg %p223
      %p668 = pneg %p220
      %p669 = pneg %p244
      %p670 = pneg %p241
      %p671 = pneg %p265
      %p672 = pneg %p262
      %p673 = pneg %p286
      %p674 = pneg %p283
      %p675 = pneg %p307
      %p676 = pneg %p304
      %p677 = pneg %p328
      %p678 = pneg %p325
      %p679 = pneg %p349
      %p680 = pneg %p346
      %p681 = pneg %p370
      %p682 = pneg %p367
      %p683 = pneg %p391
      %p684 = pneg %p388
      %p685 = pneg %p412
      %p686 = pneg %p409
      %p687 = pneg %p433
      %p688 = pneg %p430
      %p689 = pneg %p454
      %p690 = pneg %p451
      %p691 = pneg %p475
      %p692 = pneg %p472
      %p693 = pneg %p496
      %p694 = pneg %p493
      %p695 = pneg %p517
      %p696 = pneg %p514
      %p697 = pneg %p543
      %p698 = pneg %p540
      %s699 = smul.u32 2, %s34
      %p700 = scmp.lt.s32.totalorder %s699, 3
      %s701 = scalar_select %p700, %s699, 3
      %s702 = smul.addr %s701, 4
      %s703 = smul.addr %s702, 8
      %s704 = scalar_lea.vmem %s23, %s703
      %s705 = smul.u32 2, %s34
      %p706 = scmp.lt.s32.totalorder %s705, 3
      %s707 = scalar_select %p706, %s705, 3
      %s708 = smul.addr %s707, 4
      %s709 = smul.addr %s708, 4
      %s710 = scalar_lea.vmem %s0, %s709
      %s711 = smul.u32 2, %s34
      %s712 = smul.u32 2, %s34
      %p713 = scmp.lt.s32.totalorder %s712, 3
      %s714 = scalar_select %p713, %s712, 3
      %s715 = smul.addr %s714, 4
      %s716 = smul.addr %s715, 8
      %s717 = scalar_lea.vmem %s23, %s716
      %s718 = smul.u32 2, %s34
      %720 = vst [vmem:[#allocation2] sm:$0xf] 0
      %721 = vst [vmem:[#allocation2 + $0x4] sm:$0xf] 0
      %722 = vst [vmem:[#allocation2 + $0x1c] sm:$0xf] 0
      %723 = vst [vmem:[#allocation2 + $0x20] sm:$0xf] 0
      %vm724 = vcmask 1043458
      %vm725 = vsmask.f32 7946
      %vm726 = vmand %vm724, %vm725
      %v727 = vld [vmem:[#allocation2 + $0x14] sm:$0xc]
      %v728 = vsel %vm726, 0, %v727
      %729 = vst [vmem:[#allocation2 + $0x14] sm:$0xc] %v728
      %730 = vst [vmem:[#allocation2 + $0x18] sm:$0x3] 0
      %v731 = vld [vmem:[#allocation2 + $0x30] sm:$0xc]
      %v732 = vsel %vm726, 0, %v731
      %733 = vst [vmem:[#allocation2 + $0x30] sm:$0xc] %v732
      %734 = vst [vmem:[#allocation2 + $0x34] sm:$0x3] 0
      %v735 = vld [vmem:[%s710] sm:$0xf]
      %v736 = vld [vmem:[%s710 + $0x4] sm:$0xf]
      %v737 = vld [vmem:[%s710 + $0x8] sm:$0xf]
      %v738 = vld [vmem:[%s710 + $0xc] sm:$0xf]
      %v739 = vld [vmem:[%s710 + $0x10] sm:$0xf]
      %v740 = vld [vmem:[%s710 + $0x14] sm:$0xf]
      %v741 = vld [vmem:[%s710 + $0x18] sm:$0xf]
      %v742 = vld [vmem:[%s710 + $0x1c] sm:$0xf]
      %v743 = vunpack.c.l.bf16 %v735
      %v744 = vunpack.c.l.bf16 %v736
      %v745 = vunpack.c.l.bf16 %v737
      %v746 = vunpack.c.l.bf16 %v738
      %v747 = vunpack.c.l.bf16 %v739
      %v748 = vunpack.c.l.bf16 %v740
      %v749 = vunpack.c.l.bf16 %v741
      %v750 = vunpack.c.l.bf16 %v742
      %v751 = vpack.c.bf16 %v743, %v743
      %v752 = vpack.c.bf16 %v744, %v744
      %v753 = vpack.c.bf16 %v745, %v745
      %v754 = vpack.c.bf16 %v746, %v746
      %v755 = vpack.c.bf16 %v747, %v747
      %v756 = vpack.c.bf16 %v748, %v748
      %v757 = vpack.c.bf16 %v749, %v749
      %v758 = vpack.c.bf16 %v750, %v750
      %759 = vst [vmem:[#allocation2 + $0x8] sm:$0xf] %v751
      %760 = vst [vmem:[#allocation2 + $0xc] sm:$0xf] %v752
      %761 = vst [vmem:[#allocation2 + $0x10] sm:$0xf] %v753
      %vm762 = vcmask 1042432
      %vm763 = vsmask.f32 2304
      %vm764 = vmand %vm762, %vm763
      %v765 = vld [vmem:[#allocation2 + $0x14] sm:$0x7]
      %v766 = vsel %vm764, %v754, %v765
      %767 = vst [vmem:[#allocation2 + $0x14] sm:$0x7] %v766
      %768 = vst [vmem:[#allocation2 + $0x24] sm:$0xf] %v755
      %769 = vst [vmem:[#allocation2 + $0x28] sm:$0xf] %v756
      %770 = vst [vmem:[#allocation2 + $0x2c] sm:$0xf] %v757
      %v771 = vld [vmem:[#allocation2 + $0x30] sm:$0x7]
      %v772 = vsel %vm764, %v758, %v771
      %773 = vst [vmem:[#allocation2 + $0x30] sm:$0x7] %v772
      %v774 = vld [vmem:[#allocation2 + $0x4] sm:$0x8]
      %v775 = vld [vmem:[#allocation2 + $0x8] sm:$0xf]
      %v776 = vld [vmem:[#allocation2 + $0xc] sm:$0xf]
      %v777 = vld [vmem:[#allocation2 + $0x10] sm:$0xf]
      %v778 = vld [vmem:[#allocation2 + $0x14] sm:$0xf]
      %v779 = vld [vmem:[#allocation2 + $0x20] sm:$0x8]
      %v780 = vld [vmem:[#allocation2 + $0x24] sm:$0xf]
      %v781 = vld [vmem:[#allocation2 + $0x28] sm:$0xf]
      %v782 = vld [vmem:[#allocation2 + $0x2c] sm:$0xf]
      %v783 = vld [vmem:[#allocation2 + $0x30] sm:$0xf]
      %vm784 = vsmask.f32 256
      %vm785 = vsmask.f32 4368
      %vm786 = vmor %vm784, %vm785
      %v788 = vshrl.u32 %v774, 16
      %v790 = vrot.slane %v788, 7
      %v791 = vrot.slane %v790, 4
      %v793 = vshrl.u32 %v775, 16
      %v795 = vrot.slane %v793, 7
      %v796 = vshll.u32 %v775, 16
      %v798 = vor.u32 %v795, %v796
      %v799 = vsel %vm786, %v791, %v798
      %v800 = vrot.slane %v795, 4
      %v802 = vshrl.u32 %v776, 16
      %v804 = vrot.slane %v802, 7
      %v805 = vshll.u32 %v776, 16
      %v807 = vor.u32 %v804, %v805
      %v808 = vsel %vm786, %v800, %v807
      %v809 = vrot.slane %v804, 4
      %v811 = vshrl.u32 %v777, 16
      %v813 = vrot.slane %v811, 7
      %v814 = vshll.u32 %v777, 16
      %v816 = vor.u32 %v813, %v814
      %v817 = vsel %vm786, %v809, %v816
      %v818 = vrot.slane %v813, 4
      %v820 = vshrl.u32 %v778, 16
      %v822 = vrot.slane %v820, 7
      %v823 = vshll.u32 %v778, 16
      %v825 = vor.u32 %v822, %v823
      %v826 = vsel %vm786, %v818, %v825
      %v828 = vshrl.u32 %v779, 16
      %v830 = vrot.slane %v828, 7
      %v831 = vrot.slane %v830, 4
      %v833 = vshrl.u32 %v780, 16
      %v835 = vrot.slane %v833, 7
      %v836 = vshll.u32 %v780, 16
      %v838 = vor.u32 %v835, %v836
      %v839 = vsel %vm786, %v831, %v838
      %v840 = vrot.slane %v835, 4
      %v842 = vshrl.u32 %v781, 16
      %v844 = vrot.slane %v842, 7
      %v845 = vshll.u32 %v781, 16
      %v847 = vor.u32 %v844, %v845
      %v848 = vsel %vm786, %v840, %v847
      %v849 = vrot.slane %v844, 4
      %v851 = vshrl.u32 %v782, 16
      %v853 = vrot.slane %v851, 7
      %v854 = vshll.u32 %v782, 16
      %v856 = vor.u32 %v853, %v854
      %v857 = vsel %vm786, %v849, %v856
      %v858 = vrot.slane %v853, 4
      %v860 = vshrl.u32 %v783, 16
      %v862 = vrot.slane %v860, 7
      %v863 = vshll.u32 %v783, 16
      %v865 = vor.u32 %v862, %v863
      %v866 = vsel %vm786, %v858, %v865
      %v867 = vld [vmem:[%s1] sm:$0xf]
      %v868 = vld [vmem:[%s1 + $0x4] sm:$0xf]
      %v869 = vld [vmem:[%s1 + $0x8] sm:$0xf]
      %v870 = vld [vmem:[%s1 + $0xc] sm:$0xf]
      %v871 = vld [vmem:[%s1 + $0x10] sm:$0xf]
      %v872 = vld [vmem:[%s1 + $0x14] sm:$0xf]
      %v873 = vld [vmem:[%s1 + $0x18] sm:$0xf]
      %v874 = vld [vmem:[%s1 + $0x1c] sm:$0xf]
      %v875 = vld [vmem:[%s1 + $0x20] sm:$0xf]
      %v876 = vld [vmem:[%s1 + $0x24] sm:$0xf]
      %v877 = vld [vmem:[%s1 + $0x28] sm:$0xf]
      %v878 = vld [vmem:[%s1 + $0x2c] sm:$0xf]
      %v879 = vld [vmem:[%s1 + $0x30] sm:$0xf]
      %v880 = vld [vmem:[%s1 + $0x34] sm:$0xf]
      %v881 = vld [vmem:[%s1 + $0x38] sm:$0xf]
      %v882 = vld [vmem:[%s1 + $0x3c] sm:$0xf]
      %s883 = scalar_lea.vmem %s1, 64
      %v884 = vld [vmem:[%s883] sm:$0xf]
      %v885 = vld [vmem:[%s883 + $0x4] sm:$0xf]
      %v886 = vld [vmem:[%s883 + $0x8] sm:$0xf]
      %v887 = vld [vmem:[%s883 + $0xc] sm:$0xf]
      %v888 = vld [vmem:[%s883 + $0x10] sm:$0xf]
      %v889 = vld [vmem:[%s883 + $0x14] sm:$0xf]
      %v890 = vld [vmem:[%s883 + $0x18] sm:$0xf]
      %v891 = vld [vmem:[%s883 + $0x1c] sm:$0xf]
      %v892 = vld [vmem:[%s883 + $0x20] sm:$0xf]
      %v893 = vld [vmem:[%s883 + $0x24] sm:$0xf]
      %v894 = vld [vmem:[%s883 + $0x28] sm:$0xf]
      %v895 = vld [vmem:[%s883 + $0x2c] sm:$0xf]
      %v896 = vld [vmem:[%s883 + $0x30] sm:$0xf]
      %v897 = vld [vmem:[%s883 + $0x34] sm:$0xf]
      %v898 = vld [vmem:[%s883 + $0x38] sm:$0xf]
      %v899 = vld [vmem:[%s883 + $0x3c] sm:$0xf]
      %v908 = vunpack.c.l.b16 %v775
      %v909 = vunpack.c.l.b16 %v776
      %v910 = vunpack.c.l.b16 %v777
      %v911 = vunpack.c.l.b16 %v778
      %v912 = vunpack.c.l.b16 %v780
      %v913 = vunpack.c.l.b16 %v781
      %v914 = vunpack.c.l.b16 %v782
      %v915 = vunpack.c.l.b16 %v783
      %v916 = vpack.c.b16 %v909, %v908
      %v917 = vpack.c.b16 %v911, %v910
      %v918 = vpack.c.b16 %v913, %v912
      %v919 = vpack.c.b16 %v915, %v914
      %v940 = vunpack.c.l.b16 %v884
      %v941 = vunpack.c.l.b16 %v885
      %v942 = vunpack.c.l.b16 %v886
      %v943 = vunpack.c.l.b16 %v887
      %v944 = vunpack.c.l.b16 %v888
      %v945 = vunpack.c.l.b16 %v889
      %v946 = vunpack.c.l.b16 %v890
      %v947 = vunpack.c.l.b16 %v891
      %v948 = vunpack.c.l.b16 %v892
      %v949 = vunpack.c.l.b16 %v893
      %v950 = vunpack.c.l.b16 %v894
      %v951 = vunpack.c.l.b16 %v895
      %v952 = vunpack.c.l.b16 %v896
      %v953 = vunpack.c.l.b16 %v897
      %v954 = vunpack.c.l.b16 %v898
      %v955 = vunpack.c.l.b16 %v899
      %v956 = vpack.c.b16 %v941, %v940
      %v957 = vpack.c.b16 %v943, %v942
      %v958 = vpack.c.b16 %v945, %v944
      %v959 = vpack.c.b16 %v947, %v946
      %v960 = vpack.c.b16 %v949, %v948
      %v961 = vpack.c.b16 %v951, %v950
      %v962 = vpack.c.b16 %v953, %v952
      %v963 = vpack.c.b16 %v955, %v954
      %972 = vmatpush.bf16.msra.mxu0 %v963
      %973 = vmatpush.bf16.msra.mxu0 %v962
      %974 = vmatpush.bf16.msra.mxu0 %v961
      %975 = vmatpush.bf16.msra.mxu0 %v960
      %976 = vmatpush.bf16.msra.mxu0 %v959
      %977 = vmatpush.bf16.msra.mxu0 %v958
      %978 = vmatpush.bf16.msra.mxu0 %v957
      %979 = vmatpush.bf16.msra.mxu0 %v956
      %980 = vmatmul.bf16.gmra.mxu0 %v916
      %v981 = vpop.f32.mrf.mxu0
      %v982 = vadd.f32 0.0, %v981
      %v983 = vpop.f32.mrf.mxu0
      %v984 = vadd.f32 0.0, %v983
      %985 = vmatmul.bf16.gmra.mxu0 %v917
      %v986 = vpop.f32.mrf.mxu0
      %v987 = vadd.f32 0.0, %v986
      %v988 = vpop.f32.mrf.mxu0
      %v989 = vadd.f32 0.0, %v988
      %990 = vmatmul.bf16.gmra.mxu0 %v918
      %v991 = vpop.f32.mrf.mxu0
      %v992 = vadd.f32 0.0, %v991
      %v993 = vpop.f32.mrf.mxu0
      %v994 = vadd.f32 0.0, %v993
      %995 = vmatmul.bf16.gmra.mxu0 %v919
      %v996 = vpop.f32.mrf.mxu0
      %v997 = vadd.f32 0.0, %v996
      %v998 = vpop.f32.mrf.mxu0
      %v999 = vadd.f32 0.0, %v998
      %1000 = vdwg.mxu0
      %v1001 = vunpack.c.l.b16 %v799
      %v1002 = vunpack.c.l.b16 %v808
      %v1003 = vunpack.c.l.b16 %v817
      %v1004 = vunpack.c.l.b16 %v826
      %v1005 = vunpack.c.l.b16 %v839
      %v1006 = vunpack.c.l.b16 %v848
      %v1007 = vunpack.c.l.b16 %v857
      %v1008 = vunpack.c.l.b16 %v866
      %v1009 = vpack.c.b16 %v1002, %v1001
      %v1010 = vpack.c.b16 %v1004, %v1003
      %v1011 = vpack.c.b16 %v1006, %v1005
      %v1012 = vpack.c.b16 %v1008, %v1007
      %v1033 = vunpack.c.l.b16 %v867
      %v1034 = vunpack.c.l.b16 %v868
      %v1035 = vunpack.c.l.b16 %v869
      %v1036 = vunpack.c.l.b16 %v870
      %v1037 = vunpack.c.l.b16 %v871
      %v1038 = vunpack.c.l.b16 %v872
      %v1039 = vunpack.c.l.b16 %v873
      %v1040 = vunpack.c.l.b16 %v874
      %v1041 = vunpack.c.l.b16 %v875
      %v1042 = vunpack.c.l.b16 %v876
      %v1043 = vunpack.c.l.b16 %v877
      %v1044 = vunpack.c.l.b16 %v878
      %v1045 = vunpack.c.l.b16 %v879
      %v1046 = vunpack.c.l.b16 %v880
      %v1047 = vunpack.c.l.b16 %v881
      %v1048 = vunpack.c.l.b16 %v882
      %v1049 = vpack.c.b16 %v1034, %v1033
      %v1050 = vpack.c.b16 %v1036, %v1035
      %v1051 = vpack.c.b16 %v1038, %v1037
      %v1052 = vpack.c.b16 %v1040, %v1039
      %v1053 = vpack.c.b16 %v1042, %v1041
      %v1054 = vpack.c.b16 %v1044, %v1043
      %v1055 = vpack.c.b16 %v1046, %v1045
      %v1056 = vpack.c.b16 %v1048, %v1047
      %1065 = vmatpush.bf16.msra.mxu0 %v1056
      %1066 = vmatpush.bf16.msra.mxu0 %v1055
      %1067 = vmatpush.bf16.msra.mxu0 %v1054
      %1068 = vmatpush.bf16.msra.mxu0 %v1053
      %1069 = vmatpush.bf16.msra.mxu0 %v1052
      %1070 = vmatpush.bf16.msra.mxu0 %v1051
      %1071 = vmatpush.bf16.msra.mxu0 %v1050
      %1072 = vmatpush.bf16.msra.mxu0 %v1049
      %1073 = vmatmul.bf16.gmra.mxu0 %v1009
      %v1074 = vpop.f32.mrf.mxu0
      %v1075 = vadd.f32 %v982, %v1074
      %v1076 = vpop.f32.mrf.mxu0
      %v1077 = vadd.f32 %v984, %v1076
      %1078 = vmatmul.bf16.gmra.mxu0 %v1010
      %v1079 = vpop.f32.mrf.mxu0
      %v1080 = vadd.f32 %v987, %v1079
      %v1081 = vpop.f32.mrf.mxu0
      %v1082 = vadd.f32 %v989, %v1081
      %1083 = vmatmul.bf16.gmra.mxu0 %v1011
      %v1084 = vpop.f32.mrf.mxu0
      %v1085 = vadd.f32 %v992, %v1084
      %v1086 = vpop.f32.mrf.mxu0
      %v1087 = vadd.f32 %v994, %v1086
      %1088 = vmatmul.bf16.gmra.mxu0 %v1012
      %v1089 = vpop.f32.mrf.mxu0
      %v1090 = vadd.f32 %v997, %v1089
      %v1091 = vpop.f32.mrf.mxu0
      %v1092 = vadd.f32 %v999, %v1091
      %1093 = vdwg.mxu0
      %v1094 = vld [vmem:[#allocation2 + $0x8] sm:$0xf]
      %v1095 = vld [vmem:[#allocation2 + $0xc] sm:$0xf]
      %v1096 = vld [vmem:[#allocation2 + $0x10] sm:$0xf]
      %v1097 = vld [vmem:[#allocation2 + $0x14] sm:$0xf]
      %v1098 = vld [vmem:[#allocation2 + $0x18] sm:$0x1]
      %v1099 = vld [vmem:[#allocation2 + $0x24] sm:$0xf]
      %v1100 = vld [vmem:[#allocation2 + $0x28] sm:$0xf]
      %v1101 = vld [vmem:[#allocation2 + $0x2c] sm:$0xf]
      %v1102 = vld [vmem:[#allocation2 + $0x30] sm:$0xf]
      %v1103 = vld [vmem:[#allocation2 + $0x34] sm:$0x1]
      %vm1104 = vsmask.f32 3328
      %vm1105 = vsmask.f32 7440
      %vm1106 = vmor %vm1104, %vm1105
      %v1108 = vshrl.u32 %v1094, 16
      %v1110 = vrot.slane %v1108, 4
      %v1111 = vshll.u32 %v1094, 16
      %v1113 = vrot.slane %v1111, 5
      %v1114 = vor.u32 %v1110, %v1113
      %v1115 = vrot.slane %v1114, 4
      %v1117 = vshll.u32 %v1095, 16
      %v1119 = vrot.slane %v1117, 5
      %v1120 = vsel %vm1106, %v1115, %v1119
      %v1121 = vshrl.u32 %v1095, 16
      %v1123 = vrot.slane %v1121, 4
      %v1124 = vor.u32 %v1123, %v1119
      %v1125 = vrot.slane %v1124, 4
      %v1127 = vshll.u32 %v1096, 16
      %v1129 = vrot.slane %v1127, 5
      %v1130 = vsel %vm1106, %v1125, %v1129
      %v1131 = vshrl.u32 %v1096, 16
      %v1133 = vrot.slane %v1131, 4
      %v1134 = vor.u32 %v1133, %v1129
      %v1135 = vrot.slane %v1134, 4
      %v1137 = vshll.u32 %v1097, 16
      %v1139 = vrot.slane %v1137, 5
      %v1140 = vsel %vm1106, %v1135, %v1139
      %v1141 = vshrl.u32 %v1097, 16
      %v1143 = vrot.slane %v1141, 4
      %v1144 = vor.u32 %v1143, %v1139
      %v1145 = vrot.slane %v1144, 4
      %v1147 = vshll.u32 %v1098, 16
      %v1149 = vrot.slane %v1147, 5
      %v1150 = vsel %vm1106, %v1145, %v1149
      %v1152 = vshrl.u32 %v1099, 16
      %v1154 = vrot.slane %v1152, 4
      %v1155 = vshll.u32 %v1099, 16
      %v1157 = vrot.slane %v1155, 5
      %v1158 = vor.u32 %v1154, %v1157
      %v1159 = vrot.slane %v1158, 4
      %v1161 = vshll.u32 %v1100, 16
      %v1163 = vrot.slane %v1161, 5
      %v1164 = vsel %vm1106, %v1159, %v1163
      %v1165 = vshrl.u32 %v1100, 16
      %v1167 = vrot.slane %v1165, 4
      %v1168 = vor.u32 %v1167, %v1163
      %v1169 = vrot.slane %v1168, 4
      %v1171 = vshll.u32 %v1101, 16
      %v1173 = vrot.slane %v1171, 5
      %v1174 = vsel %vm1106, %v1169, %v1173
      %v1175 = vshrl.u32 %v1101, 16
      %v1177 = vrot.slane %v1175, 4
      %v1178 = vor.u32 %v1177, %v1173
      %v1179 = vrot.slane %v1178, 4
      %v1181 = vshll.u32 %v1102, 16
      %v1183 = vrot.slane %v1181, 5
      %v1184 = vsel %vm1106, %v1179, %v1183
      %v1185 = vshrl.u32 %v1102, 16
      %v1187 = vrot.slane %v1185, 4
      %v1188 = vor.u32 %v1187, %v1183
      %v1189 = vrot.slane %v1188, 4
      %v1191 = vshll.u32 %v1103, 16
      %v1193 = vrot.slane %v1191, 5
      %v1194 = vsel %vm1106, %v1189, %v1193
      %s1195 = scalar_lea.vmem %s1, 128
      %v1196 = vld [vmem:[%s1195] sm:$0xf]
      %v1197 = vld [vmem:[%s1195 + $0x4] sm:$0xf]
      %v1198 = vld [vmem:[%s1195 + $0x8] sm:$0xf]
      %v1199 = vld [vmem:[%s1195 + $0xc] sm:$0xf]
      %v1200 = vld [vmem:[%s1195 + $0x10] sm:$0xf]
      %v1201 = vld [vmem:[%s1195 + $0x14] sm:$0xf]
      %v1202 = vld [vmem:[%s1195 + $0x18] sm:$0xf]
      %v1203 = vld [vmem:[%s1195 + $0x1c] sm:$0xf]
      %v1204 = vld [vmem:[%s1195 + $0x20] sm:$0xf]
      %v1205 = vld [vmem:[%s1195 + $0x24] sm:$0xf]
      %v1206 = vld [vmem:[%s1195 + $0x28] sm:$0xf]
      %v1207 = vld [vmem:[%s1195 + $0x2c] sm:$0xf]
      %v1208 = vld [vmem:[%s1195 + $0x30] sm:$0xf]
      %v1209 = vld [vmem:[%s1195 + $0x34] sm:$0xf]
      %v1210 = vld [vmem:[%s1195 + $0x38] sm:$0xf]
      %v1211 = vld [vmem:[%s1195 + $0x3c] sm:$0xf]
      %v1212 = vunpack.c.l.b16 %v1120
      %v1213 = vunpack.c.l.b16 %v1130
      %v1214 = vunpack.c.l.b16 %v1140
      %v1215 = vunpack.c.l.b16 %v1150
      %v1216 = vunpack.c.l.b16 %v1164
      %v1217 = vunpack.c.l.b16 %v1174
      %v1218 = vunpack.c.l.b16 %v1184
      %v1219 = vunpack.c.l.b16 %v1194
      %v1220 = vpack.c.b16 %v1213, %v1212
      %v1221 = vpack.c.b16 %v1215, %v1214
      %v1222 = vpack.c.b16 %v1217, %v1216
      %v1223 = vpack.c.b16 %v1219, %v1218
      %v1244 = vunpack.c.l.b16 %v1196
      %v1245 = vunpack.c.l.b16 %v1197
      %v1246 = vunpack.c.l.b16 %v1198
      %v1247 = vunpack.c.l.b16 %v1199
      %v1248 = vunpack.c.l.b16 %v1200
      %v1249 = vunpack.c.l.b16 %v1201
      %v1250 = vunpack.c.l.b16 %v1202
      %v1251 = vunpack.c.l.b16 %v1203
      %v1252 = vunpack.c.l.b16 %v1204
      %v1253 = vunpack.c.l.b16 %v1205
      %v1254 = vunpack.c.l.b16 %v1206
      %v1255 = vunpack.c.l.b16 %v1207
      %v1256 = vunpack.c.l.b16 %v1208
      %v1257 = vunpack.c.l.b16 %v1209
      %v1258 = vunpack.c.l.b16 %v1210
      %v1259 = vunpack.c.l.b16 %v1211
      %v1260 = vpack.c.b16 %v1245, %v1244
      %v1261 = vpack.c.b16 %v1247, %v1246
      %v1262 = vpack.c.b16 %v1249, %v1248
      %v1263 = vpack.c.b16 %v1251, %v1250
      %v1264 = vpack.c.b16 %v1253, %v1252
      %v1265 = vpack.c.b16 %v1255, %v1254
      %v1266 = vpack.c.b16 %v1257, %v1256
      %v1267 = vpack.c.b16 %v1259, %v1258
      %1276 = vmatpush.bf16.msra.mxu0 %v1267
      %1277 = vmatpush.bf16.msra.mxu0 %v1266
      %1278 = vmatpush.bf16.msra.mxu0 %v1265
      %1279 = vmatpush.bf16.msra.mxu0 %v1264
      %1280 = vmatpush.bf16.msra.mxu0 %v1263
      %1281 = vmatpush.bf16.msra.mxu0 %v1262
      %1282 = vmatpush.bf16.msra.mxu0 %v1261
      %1283 = vmatpush.bf16.msra.mxu0 %v1260
      %1284 = vmatmul.bf16.gmra.mxu0 %v1220
      %v1285 = vpop.f32.mrf.mxu0
      %v1286 = vadd.f32 0.0, %v1285
      %v1287 = vpop.f32.mrf.mxu0
      %v1288 = vadd.f32 0.0, %v1287
      %1289 = vmatmul.bf16.gmra.mxu0 %v1221
      %v1290 = vpop.f32.mrf.mxu0
      %v1291 = vadd.f32 0.0, %v1290
      %v1292 = vpop.f32.mrf.mxu0
      %v1293 = vadd.f32 0.0, %v1292
      %1294 = vmatmul.bf16.gmra.mxu0 %v1222
      %v1295 = vpop.f32.mrf.mxu0
      %v1296 = vadd.f32 0.0, %v1295
      %v1297 = vpop.f32.mrf.mxu0
      %v1298 = vadd.f32 0.0, %v1297
      %1299 = vmatmul.bf16.gmra.mxu0 %v1223
      %v1300 = vpop.f32.mrf.mxu0
      %v1301 = vadd.f32 0.0, %v1300
      %v1302 = vpop.f32.mrf.mxu0
      %v1303 = vadd.f32 0.0, %v1302
      %1304 = vdwg.mxu0
      %v1305 = vadd.f32 %v1075, %v1286
      %v1306 = vadd.f32 %v1077, %v1288
      %v1307 = vadd.f32 %v1080, %v1291
      %v1308 = vadd.f32 %v1082, %v1293
      %v1309 = vadd.f32 %v1085, %v1296
      %v1310 = vadd.f32 %v1087, %v1298
      %v1311 = vadd.f32 %v1090, %v1301
      %v1312 = vadd.f32 %v1092, %v1303
      %v1313 = vld [vmem:[%s2] sm:$0x1]
      %v1315 = vperm.slane %v1313, 0
      %v1317 = vmul.f32 %v1305, %v1315
      %v1318 = vmul.f32 %v1306, %v1315
      %v1319 = vmul.f32 %v1307, %v1315
      %v1320 = vmul.f32 %v1308, %v1315
      %v1321 = vmul.f32 %v1309, %v1315
      %v1322 = vmul.f32 %v1310, %v1315
      %v1323 = vmul.f32 %v1311, %v1315
      %v1324 = vmul.f32 %v1312, %v1315
      %v1325 = vld [vmem:[%s3] sm:$0x1]
      %v1327 = vperm.slane %v1325, 0
      %v1329 = vadd.f32 %v1317, %v1327
      %v1330 = vadd.f32 %v1318, %v1327
      %v1331 = vadd.f32 %v1319, %v1327
      %v1332 = vadd.f32 %v1320, %v1327
      %v1333 = vadd.f32 %v1321, %v1327
      %v1334 = vadd.f32 %v1322, %v1327
      %v1335 = vadd.f32 %v1323, %v1327
      %v1336 = vadd.f32 %v1324, %v1327
      %v1337 = vmax.f32 %v1329, 0.0
      %v1338 = vmax.f32 %v1330, 0.0
      %v1339 = vmax.f32 %v1331, 0.0
      %v1340 = vmax.f32 %v1332, 0.0
      %v1341 = vmax.f32 %v1333, 0.0
      %v1342 = vmax.f32 %v1334, 0.0
      %v1343 = vmax.f32 %v1335, 0.0
      %v1344 = vmax.f32 %v1336, 0.0
      %v1345 = vpack.c.bf16 %v1337, %v1337
      %v1346 = vpack.c.bf16 %v1338, %v1338
      %v1347 = vpack.c.bf16 %v1339, %v1339
      %v1348 = vpack.c.bf16 %v1340, %v1340
      %v1349 = vpack.c.bf16 %v1341, %v1341
      %v1350 = vpack.c.bf16 %v1342, %v1342
      %v1351 = vpack.c.bf16 %v1343, %v1343
      %v1352 = vpack.c.bf16 %v1344, %v1344
      %1353 = vst [vmem:[#allocation2 + $0x8] sm:$0xf] %v1345
      %1354 = vst [vmem:[#allocation2 + $0xc] sm:$0xf] %v1346
      %1355 = vst [vmem:[#allocation2 + $0x10] sm:$0xf] %v1347
      %v1356 = vld [vmem:[#allocation2 + $0x14] sm:$0x7]
      %v1357 = vsel %vm764, %v1348, %v1356
      %1358 = vst [vmem:[#allocation2 + $0x14] sm:$0x7] %v1357
      %1359 = vst [vmem:[#allocation2 + $0x24] sm:$0xf] %v1349
      %1360 = vst [vmem:[#allocation2 + $0x28] sm:$0xf] %v1350
      %1361 = vst [vmem:[#allocation2 + $0x2c] sm:$0xf] %v1351
      %v1362 = vld [vmem:[#allocation2 + $0x30] sm:$0x7]
      %v1363 = vsel %vm764, %v1352, %v1362
      %1364 = vst [vmem:[#allocation2 + $0x30] sm:$0x7] %v1363
      %v1365 = vld [vmem:[#allocation2 + $0x4] sm:$0x8]
      %v1366 = vld [vmem:[#allocation2 + $0x8] sm:$0xf]
      %v1367 = vld [vmem:[#allocation2 + $0xc] sm:$0xf]
      %v1368 = vld [vmem:[#allocation2 + $0x10] sm:$0xf]
      %v1369 = vld [vmem:[#allocation2 + $0x14] sm:$0xf]
      %v1370 = vld [vmem:[#allocation2 + $0x20] sm:$0x8]
      %v1371 = vld [vmem:[#allocation2 + $0x24] sm:$0xf]
      %v1372 = vld [vmem:[#allocation2 + $0x28] sm:$0xf]
      %v1373 = vld [vmem:[#allocation2 + $0x2c] sm:$0xf]
      %v1374 = vld [vmem:[#allocation2 + $0x30] sm:$0xf]
      %v1376 = vshrl.u32 %v1365, 16
      %v1378 = vrot.slane %v1376, 7
      %v1379 = vrot.slane %v1378, 4
      %v1381 = vshrl.u32 %v1366, 16
      %v1383 = vrot.slane %v1381, 7
      %v1384 = vshll.u32 %v1366, 16
      %v1386 = vor.u32 %v1383, %v1384
      %v1387 = vsel %vm786, %v1379, %v1386
      %v1388 = vrot.slane %v1383, 4
      %v1390 = vshrl.u32 %v1367, 16
      %v1392 = vrot.slane %v1390, 7
      %v1393 = vshll.u32 %v1367, 16
      %v1395 = vor.u32 %v1392, %v1393
      %v1396 = vsel %vm786, %v1388, %v1395
      %v1397 = vrot.slane %v1392, 4
      %v1399 = vshrl.u32 %v1368, 16
      %v1401 = vrot.slane %v1399, 7
      %v1402 = vshll.u32 %v1368, 16
      %v1404 = vor.u32 %v1401, %v1402
      %v1405 = vsel %vm786, %v1397, %v1404
      %v1406 = vrot.slane %v1401, 4
      %v1408 = vshrl.u32 %v1369, 16
      %v1410 = vrot.slane %v1408, 7
      %v1411 = vshll.u32 %v1369, 16
      %v1413 = vor.u32 %v1410, %v1411
      %v1414 = vsel %vm786, %v1406, %v1413
      %v1416 = vshrl.u32 %v1370, 16
      %v1418 = vrot.slane %v1416, 7
      %v1419 = vrot.slane %v1418, 4
      %v1421 = vshrl.u32 %v1371, 16
      %v1423 = vrot.slane %v1421, 7
      %v1424 = vshll.u32 %v1371, 16
      %v1426 = vor.u32 %v1423, %v1424
      %v1427 = vsel %vm786, %v1419, %v1426
      %v1428 = vrot.slane %v1423, 4
      %v1430 = vshrl.u32 %v1372, 16
      %v1432 = vrot.slane %v1430, 7
      %v1433 = vshll.u32 %v1372, 16
      %v1435 = vor.u32 %v1432, %v1433
      %v1436 = vsel %vm786, %v1428, %v1435
      %v1437 = vrot.slane %v1432, 4
      %v1439 = vshrl.u32 %v1373, 16
      %v1441 = vrot.slane %v1439, 7
      %v1442 = vshll.u32 %v1373, 16
      %v1444 = vor.u32 %v1441, %v1442
      %v1445 = vsel %vm786, %v1437, %v1444
      %v1446 = vrot.slane %v1441, 4
      %v1448 = vshrl.u32 %v1374, 16
      %v1450 = vrot.slane %v1448, 7
      %v1451 = vshll.u32 %v1374, 16
      %v1453 = vor.u32 %v1450, %v1451
      %v1454 = vsel %vm786, %v1446, %v1453
      %v1455 = vld [vmem:[%s4] sm:$0xf]
      %v1456 = vld [vmem:[%s4 + $0x4] sm:$0xf]
      %v1457 = vld [vmem:[%s4 + $0x8] sm:$0xf]
      %v1458 = vld [vmem:[%s4 + $0xc] sm:$0xf]
      %v1459 = vld [vmem:[%s4 + $0x10] sm:$0xf]
      %v1460 = vld [vmem:[%s4 + $0x14] sm:$0xf]
      %v1461 = vld [vmem:[%s4 + $0x18] sm:$0xf]
      %v1462 = vld [vmem:[%s4 + $0x1c] sm:$0xf]
      %v1463 = vld [vmem:[%s4 + $0x20] sm:$0xf]
      %v1464 = vld [vmem:[%s4 + $0x24] sm:$0xf]
      %v1465 = vld [vmem:[%s4 + $0x28] sm:$0xf]
      %v1466 = vld [vmem:[%s4 + $0x2c] sm:$0xf]
      %v1467 = vld [vmem:[%s4 + $0x30] sm:$0xf]
      %v1468 = vld [vmem:[%s4 + $0x34] sm:$0xf]
      %v1469 = vld [vmem:[%s4 + $0x38] sm:$0xf]
      %v1470 = vld [vmem:[%s4 + $0x3c] sm:$0xf]
      %s1471 = scalar_lea.vmem %s4, 64
      %v1472 = vld [vmem:[%s1471] sm:$0xf]
      %v1473 = vld [vmem:[%s1471 + $0x4] sm:$0xf]
      %v1474 = vld [vmem:[%s1471 + $0x8] sm:$0xf]
      %v1475 = vld [vmem:[%s1471 + $0xc] sm:$0xf]
      %v1476 = vld [vmem:[%s1471 + $0x10] sm:$0xf]
      %v1477 = vld [vmem:[%s1471 + $0x14] sm:$0xf]
      %v1478 = vld [vmem:[%s1471 + $0x18] sm:$0xf]
      %v1479 = vld [vmem:[%s1471 + $0x1c] sm:$0xf]
      %v1480 = vld [vmem:[%s1471 + $0x20] sm:$0xf]
      %v1481 = vld [vmem:[%s1471 + $0x24] sm:$0xf]
      %v1482 = vld [vmem:[%s1471 + $0x28] sm:$0xf]
      %v1483 = vld [vmem:[%s1471 + $0x2c] sm:$0xf]
      %v1484 = vld [vmem:[%s1471 + $0x30] sm:$0xf]
      %v1485 = vld [vmem:[%s1471 + $0x34] sm:$0xf]
      %v1486 = vld [vmem:[%s1471 + $0x38] sm:$0xf]
      %v1487 = vld [vmem:[%s1471 + $0x3c] sm:$0xf]
      %v1496 = vunpack.c.l.b16 %v1366
      %v1497 = vunpack.c.l.b16 %v1367
      %v1498 = vunpack.c.l.b16 %v1368
      %v1499 = vunpack.c.l.b16 %v1369
      %v1500 = vunpack.c.l.b16 %v1371
      %v1501 = vunpack.c.l.b16 %v1372
      %v1502 = vunpack.c.l.b16 %v1373
      %v1503 = vunpack.c.l.b16 %v1374
      %v1504 = vpack.c.b16 %v1497, %v1496
      %v1505 = vpack.c.b16 %v1499, %v1498
      %v1506 = vpack.c.b16 %v1501, %v1500
      %v1507 = vpack.c.b16 %v1503, %v1502
      %v1528 = vunpack.c.l.b16 %v1472
      %v1529 = vunpack.c.l.b16 %v1473
      %v1530 = vunpack.c.l.b16 %v1474
      %v1531 = vunpack.c.l.b16 %v1475
      %v1532 = vunpack.c.l.b16 %v1476
      %v1533 = vunpack.c.l.b16 %v1477
      %v1534 = vunpack.c.l.b16 %v1478
      %v1535 = vunpack.c.l.b16 %v1479
      %v1536 = vunpack.c.l.b16 %v1480
      %v1537 = vunpack.c.l.b16 %v1481
      %v1538 = vunpack.c.l.b16 %v1482
      %v1539 = vunpack.c.l.b16 %v1483
      %v1540 = vunpack.c.l.b16 %v1484
      %v1541 = vunpack.c.l.b16 %v1485
      %v1542 = vunpack.c.l.b16 %v1486
      %v1543 = vunpack.c.l.b16 %v1487
      %v1544 = vpack.c.b16 %v1529, %v1528
      %v1545 = vpack.c.b16 %v1531, %v1530
      %v1546 = vpack.c.b16 %v1533, %v1532
      %v1547 = vpack.c.b16 %v1535, %v1534
      %v1548 = vpack.c.b16 %v1537, %v1536
      %v1549 = vpack.c.b16 %v1539, %v1538
      %v1550 = vpack.c.b16 %v1541, %v1540
      %v1551 = vpack.c.b16 %v1543, %v1542
      %1560 = vmatpush.bf16.msra.mxu0 %v1551
      %1561 = vmatpush.bf16.msra.mxu0 %v1550
      %1562 = vmatpush.bf16.msra.mxu0 %v1549
      %1563 = vmatpush.bf16.msra.mxu0 %v1548
      %1564 = vmatpush.bf16.msra.mxu0 %v1547
      %1565 = vmatpush.bf16.msra.mxu0 %v1546
      %1566 = vmatpush.bf16.msra.mxu0 %v1545
      %1567 = vmatpush.bf16.msra.mxu0 %v1544
      %1568 = vmatmul.bf16.gmra.mxu0 %v1504
      %v1569 = vpop.f32.mrf.mxu0
      %v1570 = vadd.f32 0.0, %v1569
      %v1571 = vpop.f32.mrf.mxu0
      %v1572 = vadd.f32 0.0, %v1571
      %1573 = vmatmul.bf16.gmra.mxu0 %v1505
      %v1574 = vpop.f32.mrf.mxu0
      %v1575 = vadd.f32 0.0, %v1574
      %v1576 = vpop.f32.mrf.mxu0
      %v1577 = vadd.f32 0.0, %v1576
      %1578 = vmatmul.bf16.gmra.mxu0 %v1506
      %v1579 = vpop.f32.mrf.mxu0
      %v1580 = vadd.f32 0.0, %v1579
      %v1581 = vpop.f32.mrf.mxu0
      %v1582 = vadd.f32 0.0, %v1581
      %1583 = vmatmul.bf16.gmra.mxu0 %v1507
      %v1584 = vpop.f32.mrf.mxu0
      %v1585 = vadd.f32 0.0, %v1584
      %v1586 = vpop.f32.mrf.mxu0
      %v1587 = vadd.f32 0.0, %v1586
      %1588 = vdwg.mxu0
      %v1589 = vunpack.c.l.b16 %v1387
      %v1590 = vunpack.c.l.b16 %v1396
      %v1591 = vunpack.c.l.b16 %v1405
      %v1592 = vunpack.c.l.b16 %v1414
      %v1593 = vunpack.c.l.b16 %v1427
      %v1594 = vunpack.c.l.b16 %v1436
      %v1595 = vunpack.c.l.b16 %v1445
      %v1596 = vunpack.c.l.b16 %v1454
      %v1597 = vpack.c.b16 %v1590, %v1589
      %v1598 = vpack.c.b16 %v1592, %v1591
      %v1599 = vpack.c.b16 %v1594, %v1593
      %v1600 = vpack.c.b16 %v1596, %v1595
      %v1621 = vunpack.c.l.b16 %v1455
      %v1622 = vunpack.c.l.b16 %v1456
      %v1623 = vunpack.c.l.b16 %v1457
      %v1624 = vunpack.c.l.b16 %v1458
      %v1625 = vunpack.c.l.b16 %v1459
      %v1626 = vunpack.c.l.b16 %v1460
      %v1627 = vunpack.c.l.b16 %v1461
      %v1628 = vunpack.c.l.b16 %v1462
      %v1629 = vunpack.c.l.b16 %v1463
      %v1630 = vunpack.c.l.b16 %v1464
      %v1631 = vunpack.c.l.b16 %v1465
      %v1632 = vunpack.c.l.b16 %v1466
      %v1633 = vunpack.c.l.b16 %v1467
      %v1634 = vunpack.c.l.b16 %v1468
      %v1635 = vunpack.c.l.b16 %v1469
      %v1636 = vunpack.c.l.b16 %v1470
      %v1637 = vpack.c.b16 %v1622, %v1621
      %v1638 = vpack.c.b16 %v1624, %v1623
      %v1639 = vpack.c.b16 %v1626, %v1625
      %v1640 = vpack.c.b16 %v1628, %v1627
      %v1641 = vpack.c.b16 %v1630, %v1629
      %v1642 = vpack.c.b16 %v1632, %v1631
      %v1643 = vpack.c.b16 %v1634, %v1633
      %v1644 = vpack.c.b16 %v1636, %v1635
      %1653 = vmatpush.bf16.msra.mxu0 %v1644
      %1654 = vmatpush.bf16.msra.mxu0 %v1643
      %1655 = vmatpush.bf16.msra.mxu0 %v1642
      %1656 = vmatpush.bf16.msra.mxu0 %v1641
      %1657 = vmatpush.bf16.msra.mxu0 %v1640
      %1658 = vmatpush.bf16.msra.mxu0 %v1639
      %1659 = vmatpush.bf16.msra.mxu0 %v1638
      %1660 = vmatpush.bf16.msra.mxu0 %v1637
      %1661 = vmatmul.bf16.gmra.mxu0 %v1597
      %v1662 = vpop.f32.mrf.mxu0
      %v1663 = vadd.f32 %v1570, %v1662
      %v1664 = vpop.f32.mrf.mxu0
      %v1665 = vadd.f32 %v1572, %v1664
      %1666 = vmatmul.bf16.gmra.mxu0 %v1598
      %v1667 = vpop.f32.mrf.mxu0
      %v1668 = vadd.f32 %v1575, %v1667
      %v1669 = vpop.f32.mrf.mxu0
      %v1670 = vadd.f32 %v1577, %v1669
      %1671 = vmatmul.bf16.gmra.mxu0 %v1599
      %v1672 = vpop.f32.mrf.mxu0
      %v1673 = vadd.f32 %v1580, %v1672
      %v1674 = vpop.f32.mrf.mxu0
      %v1675 = vadd.f32 %v1582, %v1674
      %1676 = vmatmul.bf16.gmra.mxu0 %v1600
      %v1677 = vpop.f32.mrf.mxu0
      %v1678 = vadd.f32 %v1585, %v1677
      %v1679 = vpop.f32.mrf.mxu0
      %v1680 = vadd.f32 %v1587, %v1679
      %1681 = vdwg.mxu0
      %v1682 = vld [vmem:[#allocation2 + $0x8] sm:$0xf]
      %v1683 = vld [vmem:[#allocation2 + $0xc] sm:$0xf]
      %v1684 = vld [vmem:[#allocation2 + $0x10] sm:$0xf]
      %v1685 = vld [vmem:[#allocation2 + $0x14] sm:$0xf]
      %v1686 = vld [vmem:[#allocation2 + $0x18] sm:$0x1]
      %v1687 = vld [vmem:[#allocation2 + $0x24] sm:$0xf]
      %v1688 = vld [vmem:[#allocation2 + $0x28] sm:$0xf]
      %v1689 = vld [vmem:[#allocation2 + $0x2c] sm:$0xf]
      %v1690 = vld [vmem:[#allocation2 + $0x30] sm:$0xf]
      %v1691 = vld [vmem:[#allocation2 + $0x34] sm:$0x1]
      %v1693 = vshrl.u32 %v1682, 16
      %v1695 = vrot.slane %v1693, 4
      %v1696 = vshll.u32 %v1682, 16
      %v1698 = vrot.slane %v1696, 5
      %v1699 = vor.u32 %v1695, %v1698
      %v1700 = vrot.slane %v1699, 4
      %v1702 = vshll.u32 %v1683, 16
      %v1704 = vrot.slane %v1702, 5
      %v1705 = vsel %vm1106, %v1700, %v1704
      %v1706 = vshrl.u32 %v1683, 16
      %v1708 = vrot.slane %v1706, 4
      %v1709 = vor.u32 %v1708, %v1704
      %v1710 = vrot.slane %v1709, 4
      %v1712 = vshll.u32 %v1684, 16
      %v1714 = vrot.slane %v1712, 5
      %v1715 = vsel %vm1106, %v1710, %v1714
      %v1716 = vshrl.u32 %v1684, 16
      %v1718 = vrot.slane %v1716, 4
      %v1719 = vor.u32 %v1718, %v1714
      %v1720 = vrot.slane %v1719, 4
      %v1722 = vshll.u32 %v1685, 16
      %v1724 = vrot.slane %v1722, 5
      %v1725 = vsel %vm1106, %v1720, %v1724
      %v1726 = vshrl.u32 %v1685, 16
      %v1728 = vrot.slane %v1726, 4
      %v1729 = vor.u32 %v1728, %v1724
      %v1730 = vrot.slane %v1729, 4
      %v1732 = vshll.u32 %v1686, 16
      %v1734 = vrot.slane %v1732, 5
      %v1735 = vsel %vm1106, %v1730, %v1734
      %v1737 = vshrl.u32 %v1687, 16
      %v1739 = vrot.slane %v1737, 4
      %v1740 = vshll.u32 %v1687, 16
      %v1742 = vrot.slane %v1740, 5
      %v1743 = vor.u32 %v1739, %v1742
      %v1744 = vrot.slane %v1743, 4
      %v1746 = vshll.u32 %v1688, 16
      %v1748 = vrot.slane %v1746, 5
      %v1749 = vsel %vm1106, %v1744, %v1748
      %v1750 = vshrl.u32 %v1688, 16
      %v1752 = vrot.slane %v1750, 4
      %v1753 = vor.u32 %v1752, %v1748
      %v1754 = vrot.slane %v1753, 4
      %v1756 = vshll.u32 %v1689, 16
      %v1758 = vrot.slane %v1756, 5
      %v1759 = vsel %vm1106, %v1754, %v1758
      %v1760 = vshrl.u32 %v1689, 16
      %v1762 = vrot.slane %v1760, 4
      %v1763 = vor.u32 %v1762, %v1758
      %v1764 = vrot.slane %v1763, 4
      %v1766 = vshll.u32 %v1690, 16
      %v1768 = vrot.slane %v1766, 5
      %v1769 = vsel %vm1106, %v1764, %v1768
      %v1770 = vshrl.u32 %v1690, 16
      %v1772 = vrot.slane %v1770, 4
      %v1773 = vor.u32 %v1772, %v1768
      %v1774 = vrot.slane %v1773, 4
      %v1776 = vshll.u32 %v1691, 16
      %v1778 = vrot.slane %v1776, 5
      %v1779 = vsel %vm1106, %v1774, %v1778
      %s1780 = scalar_lea.vmem %s4, 128
      %v1781 = vld [vmem:[%s1780] sm:$0xf]
      %v1782 = vld [vmem:[%s1780 + $0x4] sm:$0xf]
      %v1783 = vld [vmem:[%s1780 + $0x8] sm:$0xf]
      %v1784 = vld [vmem:[%s1780 + $0xc] sm:$0xf]
      %v1785 = vld [vmem:[%s1780 + $0x10] sm:$0xf]
      %v1786 = vld [vmem:[%s1780 + $0x14] sm:$0xf]
      %v1787 = vld [vmem:[%s1780 + $0x18] sm:$0xf]
      %v1788 = vld [vmem:[%s1780 + $0x1c] sm:$0xf]
      %v1789 = vld [vmem:[%s1780 + $0x20] sm:$0xf]
      %v1790 = vld [vmem:[%s1780 + $0x24] sm:$0xf]
      %v1791 = vld [vmem:[%s1780 + $0x28] sm:$0xf]
      %v1792 = vld [vmem:[%s1780 + $0x2c] sm:$0xf]
      %v1793 = vld [vmem:[%s1780 + $0x30] sm:$0xf]
      %v1794 = vld [vmem:[%s1780 + $0x34] sm:$0xf]
      %v1795 = vld [vmem:[%s1780 + $0x38] sm:$0xf]
      %v1796 = vld [vmem:[%s1780 + $0x3c] sm:$0xf]
      %v1797 = vunpack.c.l.b16 %v1705
      %v1798 = vunpack.c.l.b16 %v1715
      %v1799 = vunpack.c.l.b16 %v1725
      %v1800 = vunpack.c.l.b16 %v1735
      %v1801 = vunpack.c.l.b16 %v1749
      %v1802 = vunpack.c.l.b16 %v1759
      %v1803 = vunpack.c.l.b16 %v1769
      %v1804 = vunpack.c.l.b16 %v1779
      %v1805 = vpack.c.b16 %v1798, %v1797
      %v1806 = vpack.c.b16 %v1800, %v1799
      %v1807 = vpack.c.b16 %v1802, %v1801
      %v1808 = vpack.c.b16 %v1804, %v1803
      %v1829 = vunpack.c.l.b16 %v1781
      %v1830 = vunpack.c.l.b16 %v1782
      %v1831 = vunpack.c.l.b16 %v1783
      %v1832 = vunpack.c.l.b16 %v1784
      %v1833 = vunpack.c.l.b16 %v1785
      %v1834 = vunpack.c.l.b16 %v1786
      %v1835 = vunpack.c.l.b16 %v1787
      %v1836 = vunpack.c.l.b16 %v1788
      %v1837 = vunpack.c.l.b16 %v1789
      %v1838 = vunpack.c.l.b16 %v1790
      %v1839 = vunpack.c.l.b16 %v1791
      %v1840 = vunpack.c.l.b16 %v1792
      %v1841 = vunpack.c.l.b16 %v1793
      %v1842 = vunpack.c.l.b16 %v1794
      %v1843 = vunpack.c.l.b16 %v1795
      %v1844 = vunpack.c.l.b16 %v1796
      %v1845 = vpack.c.b16 %v1830, %v1829
      %v1846 = vpack.c.b16 %v1832, %v1831
      %v1847 = vpack.c.b16 %v1834, %v1833
      %v1848 = vpack.c.b16 %v1836, %v1835
      %v1849 = vpack.c.b16 %v1838, %v1837
      %v1850 = vpack.c.b16 %v1840, %v1839
      %v1851 = vpack.c.b16 %v1842, %v1841
      %v1852 = vpack.c.b16 %v1844, %v1843
      %1861 = vmatpush.bf16.msra.mxu0 %v1852
      %1862 = vmatpush.bf16.msra.mxu0 %v1851
      %1863 = vmatpush.bf16.msra.mxu0 %v1850
      %1864 = vmatpush.bf16.msra.mxu0 %v1849
      %1865 = vmatpush.bf16.msra.mxu0 %v1848
      %1866 = vmatpush.bf16.msra.mxu0 %v1847
      %1867 = vmatpush.bf16.msra.mxu0 %v1846
      %1868 = vmatpush.bf16.msra.mxu0 %v1845
      %1869 = vmatmul.bf16.gmra.mxu0 %v1805
      %v1870 = vpop.f32.mrf.mxu0
      %v1871 = vadd.f32 0.0, %v1870
      %v1872 = vpop.f32.mrf.mxu0
      %v1873 = vadd.f32 0.0, %v1872
      %1874 = vmatmul.bf16.gmra.mxu0 %v1806
      %v1875 = vpop.f32.mrf.mxu0
      %v1876 = vadd.f32 0.0, %v1875
      %v1877 = vpop.f32.mrf.mxu0
      %v1878 = vadd.f32 0.0, %v1877
      %1879 = vmatmul.bf16.gmra.mxu0 %v1807
      %v1880 = vpop.f32.mrf.mxu0
      %v1881 = vadd.f32 0.0, %v1880
      %v1882 = vpop.f32.mrf.mxu0
      %v1883 = vadd.f32 0.0, %v1882
      %1884 = vmatmul.bf16.gmra.mxu0 %v1808
      %v1885 = vpop.f32.mrf.mxu0
      %v1886 = vadd.f32 0.0, %v1885
      %v1887 = vpop.f32.mrf.mxu0
      %v1888 = vadd.f32 0.0, %v1887
      %1889 = vdwg.mxu0
      %v1890 = vadd.f32 %v1663, %v1871
      %v1891 = vadd.f32 %v1665, %v1873
      %v1892 = vadd.f32 %v1668, %v1876
      %v1893 = vadd.f32 %v1670, %v1878
      %v1894 = vadd.f32 %v1673, %v1881
      %v1895 = vadd.f32 %v1675, %v1883
      %v1896 = vadd.f32 %v1678, %v1886
      %v1897 = vadd.f32 %v1680, %v1888
      %v1898 = vld [vmem:[%s5] sm:$0x1]
      %v1900 = vperm.slane %v1898, 0
      %v1902 = vmul.f32 %v1890, %v1900
      %v1903 = vmul.f32 %v1891, %v1900
      %v1904 = vmul.f32 %v1892, %v1900
      %v1905 = vmul.f32 %v1893, %v1900
      %v1906 = vmul.f32 %v1894, %v1900
      %v1907 = vmul.f32 %v1895, %v1900
      %v1908 = vmul.f32 %v1896, %v1900
      %v1909 = vmul.f32 %v1897, %v1900
      %v1910 = vld [vmem:[%s6] sm:$0x1]
      %v1912 = vperm.slane %v1910, 0
      %v1914 = vadd.f32 %v1902, %v1912
      %v1915 = vadd.f32 %v1903, %v1912
      %v1916 = vadd.f32 %v1904, %v1912
      %v1917 = vadd.f32 %v1905, %v1912
      %v1918 = vadd.f32 %v1906, %v1912
      %v1919 = vadd.f32 %v1907, %v1912
      %v1920 = vadd.f32 %v1908, %v1912
      %v1921 = vadd.f32 %v1909, %v1912
      %v1922 = vmax.f32 %v1914, 0.0
      %v1923 = vmax.f32 %v1915, 0.0
      %v1924 = vmax.f32 %v1916, 0.0
      %v1925 = vmax.f32 %v1917, 0.0
      %v1926 = vmax.f32 %v1918, 0.0
      %v1927 = vmax.f32 %v1919, 0.0
      %v1928 = vmax.f32 %v1920, 0.0
      %v1929 = vmax.f32 %v1921, 0.0
      %v1930 = vld [vmem:[%s7] sm:$0xf]
      %v1931 = vld [vmem:[%s7 + $0x4] sm:$0xf]
      %v1932 = vld [vmem:[%s7 + $0x8] sm:$0xf]
      %v1933 = vld [vmem:[%s7 + $0xc] sm:$0xf]
      %v1934 = vld [vmem:[%s7 + $0x10] sm:$0xf]
      %v1935 = vld [vmem:[%s7 + $0x14] sm:$0xf]
      %v1936 = vld [vmem:[%s7 + $0x18] sm:$0xf]
      %v1937 = vld [vmem:[%s7 + $0x1c] sm:$0xf]
      %v1938 = vld [vmem:[%s7 + $0x20] sm:$0xf]
      %v1939 = vld [vmem:[%s7 + $0x24] sm:$0xf]
      %v1940 = vld [vmem:[%s7 + $0x28] sm:$0xf]
      %v1941 = vld [vmem:[%s7 + $0x2c] sm:$0xf]
      %v1942 = vld [vmem:[%s7 + $0x30] sm:$0xf]
      %v1943 = vld [vmem:[%s7 + $0x34] sm:$0xf]
      %v1944 = vld [vmem:[%s7 + $0x38] sm:$0xf]
      %v1945 = vld [vmem:[%s7 + $0x3c] sm:$0xf]
      %v1946 = vld [vmem:[%s8] sm:$0x1]
      %v1948 = vperm.slane %v1946, 0
      %v1958 = vunpack.c.l.b16 %v751
      %v1959 = vunpack.c.l.b16 %v752
      %v1960 = vunpack.c.l.b16 %v753
      %v1961 = vunpack.c.l.b16 %v754
      %v1962 = vunpack.c.l.b16 %v755
      %v1963 = vunpack.c.l.b16 %v756
      %v1964 = vunpack.c.l.b16 %v757
      %v1965 = vunpack.c.l.b16 %v758
      %v1966 = vpack.c.b16 %v1959, %v1958
      %v1967 = vpack.c.b16 %v1961, %v1960
      %v1968 = vpack.c.b16 %v1963, %v1962
      %v1969 = vpack.c.b16 %v1965, %v1964
      %v1990 = vunpack.c.l.b16 %v1930
      %v1991 = vunpack.c.l.b16 %v1931
      %v1992 = vunpack.c.l.b16 %v1932
      %v1993 = vunpack.c.l.b16 %v1933
      %v1994 = vunpack.c.l.b16 %v1934
      %v1995 = vunpack.c.l.b16 %v1935
      %v1996 = vunpack.c.l.b16 %v1936
      %v1997 = vunpack.c.l.b16 %v1937
      %v1998 = vunpack.c.l.b16 %v1938
      %v1999 = vunpack.c.l.b16 %v1939
      %v2000 = vunpack.c.l.b16 %v1940
      %v2001 = vunpack.c.l.b16 %v1941
      %v2002 = vunpack.c.l.b16 %v1942
      %v2003 = vunpack.c.l.b16 %v1943
      %v2004 = vunpack.c.l.b16 %v1944
      %v2005 = vunpack.c.l.b16 %v1945
      %v2006 = vpack.c.b16 %v1991, %v1990
      %v2007 = vpack.c.b16 %v1993, %v1992
      %v2008 = vpack.c.b16 %v1995, %v1994
      %v2009 = vpack.c.b16 %v1997, %v1996
      %v2010 = vpack.c.b16 %v1999, %v1998
      %v2011 = vpack.c.b16 %v2001, %v2000
      %v2012 = vpack.c.b16 %v2003, %v2002
      %v2013 = vpack.c.b16 %v2005, %v2004
      %2022 = vmatpush.bf16.msra.mxu0 %v2013
      %2023 = vmatpush.bf16.msra.mxu0 %v2012
      %2024 = vmatpush.bf16.msra.mxu0 %v2011
      %2025 = vmatpush.bf16.msra.mxu0 %v2010
      %2026 = vmatpush.bf16.msra.mxu0 %v2009
      %2027 = vmatpush.bf16.msra.mxu0 %v2008
      %2028 = vmatpush.bf16.msra.mxu0 %v2007
      %2029 = vmatpush.bf16.msra.mxu0 %v2006
      %2030 = vmatmul.bf16.gmra.mxu0 %v1966
      %v2031 = vpop.f32.mrf.mxu0
      %v2032 = vadd.f32 %v1948, %v2031
      %v2033 = vpop.f32.mrf.mxu0
      %v2034 = vadd.f32 %v1948, %v2033
      %2035 = vmatmul.bf16.gmra.mxu0 %v1967
      %v2036 = vpop.f32.mrf.mxu0
      %v2037 = vadd.f32 %v1948, %v2036
      %v2038 = vpop.f32.mrf.mxu0
      %v2039 = vadd.f32 %v1948, %v2038
      %2040 = vmatmul.bf16.gmra.mxu0 %v1968
      %v2041 = vpop.f32.mrf.mxu0
      %v2042 = vadd.f32 %v1948, %v2041
      %v2043 = vpop.f32.mrf.mxu0
      %v2044 = vadd.f32 %v1948, %v2043
      %2045 = vmatmul.bf16.gmra.mxu0 %v1969
      %v2046 = vpop.f32.mrf.mxu0
      %v2047 = vadd.f32 %v1948, %v2046
      %v2048 = vpop.f32.mrf.mxu0
      %v2049 = vadd.f32 %v1948, %v2048
      %2050 = vdwg.mxu0
      %v2051 = vadd.f32 %v1922, %v2032
      %v2052 = vadd.f32 %v1923, %v2034
      %v2053 = vadd.f32 %v1924, %v2037
      %v2054 = vadd.f32 %v1925, %v2039
      %v2055 = vadd.f32 %v1926, %v2042
      %v2056 = vadd.f32 %v1927, %v2044
      %v2057 = vadd.f32 %v1928, %v2047
      %v2058 = vadd.f32 %v1929, %v2049
      %v2059 = vmax.f32 %v2051, 0.0
      %v2060 = vmax.f32 %v2052, 0.0
      %v2061 = vmax.f32 %v2053, 0.0
      %v2062 = vmax.f32 %v2054, 0.0
      %v2063 = vmax.f32 %v2055, 0.0
      %v2064 = vmax.f32 %v2056, 0.0
      %v2065 = vmax.f32 %v2057, 0.0
      %v2066 = vmax.f32 %v2058, 0.0
      %v2067 = vpack.c.bf16 %v2059, %v2059
      %v2068 = vpack.c.bf16 %v2060, %v2060
      %v2069 = vpack.c.bf16 %v2061, %v2061
      %v2070 = vpack.c.bf16 %v2062, %v2062
      %v2071 = vpack.c.bf16 %v2063, %v2063
      %v2072 = vpack.c.bf16 %v2064, %v2064
      %v2073 = vpack.c.bf16 %v2065, %v2065
      %v2074 = vpack.c.bf16 %v2066, %v2066
      %2075 = vst [vmem:[#allocation2 + $0x8] sm:$0xf] %v2067
      %2076 = vst [vmem:[#allocation2 + $0xc] sm:$0xf] %v2068
      %2077 = vst [vmem:[#allocation2 + $0x10] sm:$0xf] %v2069
      %v2078 = vld [vmem:[#allocation2 + $0x14] sm:$0x7]
      %v2079 = vsel %vm764, %v2070, %v2078
      %2080 = vst [vmem:[#allocation2 + $0x14] sm:$0x7] %v2079
      %2081 = vst [vmem:[#allocation2 + $0x24] sm:$0xf] %v2071
      %2082 = vst [vmem:[#allocation2 + $0x28] sm:$0xf] %v2072
      %2083 = vst [vmem:[#allocation2 + $0x2c] sm:$0xf] %v2073
      %v2084 = vld [vmem:[#allocation2 + $0x30] sm:$0x7]
      %v2085 = vsel %vm764, %v2074, %v2084
      %2086 = vst [vmem:[#allocation2 + $0x30] sm:$0x7] %v2085
      %v2087 = vld [vmem:[#allocation2 + $0x4] sm:$0x8]
      %v2088 = vld [vmem:[#allocation2 + $0x8] sm:$0xf]
      %v2089 = vld [vmem:[#allocation2 + $0xc] sm:$0xf]
      %v2090 = vld [vmem:[#allocation2 + $0x10] sm:$0xf]
      %v2091 = vld [vmem:[#allocation2 + $0x14] sm:$0x7]
      %v2092 = vld [vmem:[#allocation2 + $0x20] sm:$0x8]
      %v2093 = vld [vmem:[#allocation2 + $0x24] sm:$0xf]
      %v2094 = vld [vmem:[#allocation2 + $0x28] sm:$0xf]
      %v2095 = vld [vmem:[#allocation2 + $0x2c] sm:$0xf]
      %v2096 = vld [vmem:[#allocation2 + $0x30] sm:$0x7]
      %vm2107 = vcmask 1040384
      %vm2108 = vcmask 1044484
      %vm2109 = vmor %vm2107, %vm2108
      %v2110 = vrot.slane %v2087, 7
      %v2111 = vrot.slane %v2110, 4
      %v2112 = vrot.slane %v2088, 7
      %v2113 = vsel %vm2109, %v2111, %v2112
      %v2114 = vrot.slane %v2112, 4
      %v2115 = vrot.slane %v2089, 7
      %v2116 = vsel %vm2109, %v2114, %v2115
      %v2117 = vrot.slane %v2115, 4
      %v2118 = vrot.slane %v2090, 7
      %v2119 = vsel %vm2109, %v2117, %v2118
      %v2120 = vrot.slane %v2118, 4
      %v2121 = vrot.slane %v2091, 7
      %v2122 = vsel %vm2109, %v2120, %v2121
      %v2123 = vrot.slane %v2092, 7
      %v2124 = vrot.slane %v2123, 4
      %v2125 = vrot.slane %v2093, 7
      %v2126 = vsel %vm2109, %v2124, %v2125
      %v2127 = vrot.slane %v2125, 4
      %v2128 = vrot.slane %v2094, 7
      %v2129 = vsel %vm2109, %v2127, %v2128
      %v2130 = vrot.slane %v2128, 4
      %v2131 = vrot.slane %v2095, 7
      %v2132 = vsel %vm2109, %v2130, %v2131
      %v2133 = vrot.slane %v2131, 4
      %v2134 = vrot.slane %v2096, 7
      %v2135 = vsel %vm2109, %v2133, %v2134
      %v2136 = vld [vmem:[%s9] sm:$0xf]
      %v2137 = vld [vmem:[%s9 + $0x4] sm:$0xf]
      %v2138 = vld [vmem:[%s9 + $0x8] sm:$0xf]
      %v2139 = vld [vmem:[%s9 + $0xc] sm:$0xf]
      %v2140 = vld [vmem:[%s9 + $0x10] sm:$0xf]
      %v2141 = vld [vmem:[%s9 + $0x14] sm:$0xf]
      %v2142 = vld [vmem:[%s9 + $0x18] sm:$0xf]
      %v2143 = vld [vmem:[%s9 + $0x1c] sm:$0xf]
      %v2144 = vld [vmem:[%s9 + $0x20] sm:$0xf]
      %v2145 = vld [vmem:[%s9 + $0x24] sm:$0xf]
      %v2146 = vld [vmem:[%s9 + $0x28] sm:$0xf]
      %v2147 = vld [vmem:[%s9 + $0x2c] sm:$0xf]
      %v2148 = vld [vmem:[%s9 + $0x30] sm:$0xf]
      %v2149 = vld [vmem:[%s9 + $0x34] sm:$0xf]
      %v2150 = vld [vmem:[%s9 + $0x38] sm:$0xf]
      %v2151 = vld [vmem:[%s9 + $0x3c] sm:$0xf]
      %v2152 = vld [vmem:[#allocation2 + $0x14] sm:$0xf]
      %v2153 = vld [vmem:[#allocation2 + $0x30] sm:$0xf]
      %s2154 = scalar_lea.vmem %s9, 64
      %v2155 = vld [vmem:[%s2154] sm:$0xf]
      %v2156 = vld [vmem:[%s2154 + $0x4] sm:$0xf]
      %v2157 = vld [vmem:[%s2154 + $0x8] sm:$0xf]
      %v2158 = vld [vmem:[%s2154 + $0xc] sm:$0xf]
      %v2159 = vld [vmem:[%s2154 + $0x10] sm:$0xf]
      %v2160 = vld [vmem:[%s2154 + $0x14] sm:$0xf]
      %v2161 = vld [vmem:[%s2154 + $0x18] sm:$0xf]
      %v2162 = vld [vmem:[%s2154 + $0x1c] sm:$0xf]
      %v2163 = vld [vmem:[%s2154 + $0x20] sm:$0xf]
      %v2164 = vld [vmem:[%s2154 + $0x24] sm:$0xf]
      %v2165 = vld [vmem:[%s2154 + $0x28] sm:$0xf]
      %v2166 = vld [vmem:[%s2154 + $0x2c] sm:$0xf]
      %v2167 = vld [vmem:[%s2154 + $0x30] sm:$0xf]
      %v2168 = vld [vmem:[%s2154 + $0x34] sm:$0xf]
      %v2169 = vld [vmem:[%s2154 + $0x38] sm:$0xf]
      %v2170 = vld [vmem:[%s2154 + $0x3c] sm:$0xf]
      %v2173 = vunpack.c.l.b16 %v2088
      %v2174 = vunpack.c.l.b16 %v2089
      %v2175 = vunpack.c.l.b16 %v2090
      %v2176 = vunpack.c.l.b16 %v2152
      %v2177 = vunpack.c.l.b16 %v2093
      %v2178 = vunpack.c.l.b16 %v2094
      %v2179 = vunpack.c.l.b16 %v2095
      %v2180 = vunpack.c.l.b16 %v2153
      %v2181 = vpack.c.b16 %v2174, %v2173
      %v2182 = vpack.c.b16 %v2176, %v2175
      %v2183 = vpack.c.b16 %v2178, %v2177
      %v2184 = vpack.c.b16 %v2180, %v2179
      %v2205 = vunpack.c.l.b16 %v2155
      %v2206 = vunpack.c.l.b16 %v2156
      %v2207 = vunpack.c.l.b16 %v2157
      %v2208 = vunpack.c.l.b16 %v2158
      %v2209 = vunpack.c.l.b16 %v2159
      %v2210 = vunpack.c.l.b16 %v2160
      %v2211 = vunpack.c.l.b16 %v2161
      %v2212 = vunpack.c.l.b16 %v2162
      %v2213 = vunpack.c.l.b16 %v2163
      %v2214 = vunpack.c.l.b16 %v2164
      %v2215 = vunpack.c.l.b16 %v2165
      %v2216 = vunpack.c.l.b16 %v2166
      %v2217 = vunpack.c.l.b16 %v2167
      %v2218 = vunpack.c.l.b16 %v2168
      %v2219 = vunpack.c.l.b16 %v2169
      %v2220 = vunpack.c.l.b16 %v2170
      %v2221 = vpack.c.b16 %v2206, %v2205
      %v2222 = vpack.c.b16 %v2208, %v2207
      %v2223 = vpack.c.b16 %v2210, %v2209
      %v2224 = vpack.c.b16 %v2212, %v2211
      %v2225 = vpack.c.b16 %v2214, %v2213
      %v2226 = vpack.c.b16 %v2216, %v2215
      %v2227 = vpack.c.b16 %v2218, %v2217
      %v2228 = vpack.c.b16 %v2220, %v2219
      %2237 = vmatpush.bf16.msra.mxu0 %v2228
      %2238 = vmatpush.bf16.msra.mxu0 %v2227
      %2239 = vmatpush.bf16.msra.mxu0 %v2226
      %2240 = vmatpush.bf16.msra.mxu0 %v2225
      %2241 = vmatpush.bf16.msra.mxu0 %v2224
      %2242 = vmatpush.bf16.msra.mxu0 %v2223
      %2243 = vmatpush.bf16.msra.mxu0 %v2222
      %2244 = vmatpush.bf16.msra.mxu0 %v2221
      %2245 = vmatmul.bf16.gmra.mxu0 %v2181
      %v2246 = vpop.f32.mrf.mxu0
      %v2247 = vadd.f32 0.0, %v2246
      %v2248 = vpop.f32.mrf.mxu0
      %v2249 = vadd.f32 0.0, %v2248
      %2250 = vmatmul.bf16.gmra.mxu0 %v2182
      %v2251 = vpop.f32.mrf.mxu0
      %v2252 = vadd.f32 0.0, %v2251
      %v2253 = vpop.f32.mrf.mxu0
      %v2254 = vadd.f32 0.0, %v2253
      %2255 = vmatmul.bf16.gmra.mxu0 %v2183
      %v2256 = vpop.f32.mrf.mxu0
      %v2257 = vadd.f32 0.0, %v2256
      %v2258 = vpop.f32.mrf.mxu0
      %v2259 = vadd.f32 0.0, %v2258
      %2260 = vmatmul.bf16.gmra.mxu0 %v2184
      %v2261 = vpop.f32.mrf.mxu0
      %v2262 = vadd.f32 0.0, %v2261
      %v2263 = vpop.f32.mrf.mxu0
      %v2264 = vadd.f32 0.0, %v2263
      %2265 = vdwg.mxu0
      %v2266 = vunpack.c.l.b16 %v2113
      %v2267 = vunpack.c.l.b16 %v2116
      %v2268 = vunpack.c.l.b16 %v2119
      %v2269 = vunpack.c.l.b16 %v2122
      %v2270 = vunpack.c.l.b16 %v2126
      %v2271 = vunpack.c.l.b16 %v2129
      %v2272 = vunpack.c.l.b16 %v2132
      %v2273 = vunpack.c.l.b16 %v2135
      %v2274 = vpack.c.b16 %v2267, %v2266
      %v2275 = vpack.c.b16 %v2269, %v2268
      %v2276 = vpack.c.b16 %v2271, %v2270
      %v2277 = vpack.c.b16 %v2273, %v2272
      %v2298 = vunpack.c.l.b16 %v2136
      %v2299 = vunpack.c.l.b16 %v2137
      %v2300 = vunpack.c.l.b16 %v2138
      %v2301 = vunpack.c.l.b16 %v2139
      %v2302 = vunpack.c.l.b16 %v2140
      %v2303 = vunpack.c.l.b16 %v2141
      %v2304 = vunpack.c.l.b16 %v2142
      %v2305 = vunpack.c.l.b16 %v2143
      %v2306 = vunpack.c.l.b16 %v2144
      %v2307 = vunpack.c.l.b16 %v2145
      %v2308 = vunpack.c.l.b16 %v2146
      %v2309 = vunpack.c.l.b16 %v2147
      %v2310 = vunpack.c.l.b16 %v2148
      %v2311 = vunpack.c.l.b16 %v2149
      %v2312 = vunpack.c.l.b16 %v2150
      %v2313 = vunpack.c.l.b16 %v2151
      %v2314 = vpack.c.b16 %v2299, %v2298
      %v2315 = vpack.c.b16 %v2301, %v2300
      %v2316 = vpack.c.b16 %v2303, %v2302
      %v2317 = vpack.c.b16 %v2305, %v2304
      %v2318 = vpack.c.b16 %v2307, %v2306
      %v2319 = vpack.c.b16 %v2309, %v2308
      %v2320 = vpack.c.b16 %v2311, %v2310
      %v2321 = vpack.c.b16 %v2313, %v2312
      %2330 = vmatpush.bf16.msra.mxu0 %v2321
      %2331 = vmatpush.bf16.msra.mxu0 %v2320
      %2332 = vmatpush.bf16.msra.mxu0 %v2319
      %2333 = vmatpush.bf16.msra.mxu0 %v2318
      %2334 = vmatpush.bf16.msra.mxu0 %v2317
      %2335 = vmatpush.bf16.msra.mxu0 %v2316
      %2336 = vmatpush.bf16.msra.mxu0 %v2315
      %2337 = vmatpush.bf16.msra.mxu0 %v2314
      %2338 = vmatmul.bf16.gmra.mxu0 %v2274
      %v2339 = vpop.f32.mrf.mxu0
      %v2340 = vadd.f32 %v2247, %v2339
      %v2341 = vpop.f32.mrf.mxu0
      %v2342 = vadd.f32 %v2249, %v2341
      %2343 = vmatmul.bf16.gmra.mxu0 %v2275
      %v2344 = vpop.f32.mrf.mxu0
      %v2345 = vadd.f32 %v2252, %v2344
      %v2346 = vpop.f32.mrf.mxu0
      %v2347 = vadd.f32 %v2254, %v2346
      %2348 = vmatmul.bf16.gmra.mxu0 %v2276
      %v2349 = vpop.f32.mrf.mxu0
      %v2350 = vadd.f32 %v2257, %v2349
      %v2351 = vpop.f32.mrf.mxu0
      %v2352 = vadd.f32 %v2259, %v2351
      %2353 = vmatmul.bf16.gmra.mxu0 %v2277
      %v2354 = vpop.f32.mrf.mxu0
      %v2355 = vadd.f32 %v2262, %v2354
      %v2356 = vpop.f32.mrf.mxu0
      %v2357 = vadd.f32 %v2264, %v2356
      %2358 = vdwg.mxu0
      %v2359 = vld [vmem:[#allocation2 + $0x8] sm:$0xe]
      %v2360 = vld [vmem:[#allocation2 + $0xc] sm:$0xf]
      %v2361 = vld [vmem:[#allocation2 + $0x10] sm:$0xf]
      %v2362 = vld [vmem:[#allocation2 + $0x14] sm:$0xf]
      %v2363 = vld [vmem:[#allocation2 + $0x18] sm:$0x1]
      %v2364 = vld [vmem:[#allocation2 + $0x24] sm:$0xe]
      %v2365 = vld [vmem:[#allocation2 + $0x28] sm:$0xf]
      %v2366 = vld [vmem:[#allocation2 + $0x2c] sm:$0xf]
      %v2367 = vld [vmem:[#allocation2 + $0x30] sm:$0xf]
      %v2368 = vld [vmem:[#allocation2 + $0x34] sm:$0x1]
      %vm2379 = vcmask 1046532
      %vm2380 = vmor %vm762, %vm2379
      %v2381 = vrot.slane %v2359, 5
      %v2382 = vrot.slane %v2381, 4
      %v2383 = vrot.slane %v2360, 5
      %v2384 = vsel %vm2380, %v2382, %v2383
      %v2385 = vrot.slane %v2383, 4
      %v2386 = vrot.slane %v2361, 5
      %v2387 = vsel %vm2380, %v2385, %v2386
      %v2388 = vrot.slane %v2386, 4
      %v2389 = vrot.slane %v2362, 5
      %v2390 = vsel %vm2380, %v2388, %v2389
      %v2391 = vrot.slane %v2389, 4
      %v2392 = vrot.slane %v2363, 5
      %v2393 = vsel %vm2380, %v2391, %v2392
      %v2394 = vrot.slane %v2364, 5
      %v2395 = vrot.slane %v2394, 4
      %v2396 = vrot.slane %v2365, 5
      %v2397 = vsel %vm2380, %v2395, %v2396
      %v2398 = vrot.slane %v2396, 4
      %v2399 = vrot.slane %v2366, 5
      %v2400 = vsel %vm2380, %v2398, %v2399
      %v2401 = vrot.slane %v2399, 4
      %v2402 = vrot.slane %v2367, 5
      %v2403 = vsel %vm2380, %v2401, %v2402
      %v2404 = vrot.slane %v2402, 4
      %v2405 = vrot.slane %v2368, 5
      %v2406 = vsel %vm2380, %v2404, %v2405
      %s2407 = scalar_lea.vmem %s9, 128
      %v2408 = vld [vmem:[%s2407] sm:$0xf]
      %v2409 = vld [vmem:[%s2407 + $0x4] sm:$0xf]
      %v2410 = vld [vmem:[%s2407 + $0x8] sm:$0xf]
      %v2411 = vld [vmem:[%s2407 + $0xc] sm:$0xf]
      %v2412 = vld [vmem:[%s2407 + $0x10] sm:$0xf]
      %v2413 = vld [vmem:[%s2407 + $0x14] sm:$0xf]
      %v2414 = vld [vmem:[%s2407 + $0x18] sm:$0xf]
      %v2415 = vld [vmem:[%s2407 + $0x1c] sm:$0xf]
      %v2416 = vld [vmem:[%s2407 + $0x20] sm:$0xf]
      %v2417 = vld [vmem:[%s2407 + $0x24] sm:$0xf]
      %v2418 = vld [vmem:[%s2407 + $0x28] sm:$0xf]
      %v2419 = vld [vmem:[%s2407 + $0x2c] sm:$0xf]
      %v2420 = vld [vmem:[%s2407 + $0x30] sm:$0xf]
      %v2421 = vld [vmem:[%s2407 + $0x34] sm:$0xf]
      %v2422 = vld [vmem:[%s2407 + $0x38] sm:$0xf]
      %v2423 = vld [vmem:[%s2407 + $0x3c] sm:$0xf]
      %v2424 = vunpack.c.l.b16 %v2384
      %v2425 = vunpack.c.l.b16 %v2387
      %v2426 = vunpack.c.l.b16 %v2390
      %v2427 = vunpack.c.l.b16 %v2393
      %v2428 = vunpack.c.l.b16 %v2397
      %v2429 = vunpack.c.l.b16 %v2400
      %v2430 = vunpack.c.l.b16 %v2403
      %v2431 = vunpack.c.l.b16 %v2406
      %v2432 = vpack.c.b16 %v2425, %v2424
      %v2433 = vpack.c.b16 %v2427, %v2426
      %v2434 = vpack.c.b16 %v2429, %v2428
      %v2435 = vpack.c.b16 %v2431, %v2430
      %v2456 = vunpack.c.l.b16 %v2408
      %v2457 = vunpack.c.l.b16 %v2409
      %v2458 = vunpack.c.l.b16 %v2410
      %v2459 = vunpack.c.l.b16 %v2411
      %v2460 = vunpack.c.l.b16 %v2412
      %v2461 = vunpack.c.l.b16 %v2413
      %v2462 = vunpack.c.l.b16 %v2414
      %v2463 = vunpack.c.l.b16 %v2415
      %v2464 = vunpack.c.l.b16 %v2416
      %v2465 = vunpack.c.l.b16 %v2417
      %v2466 = vunpack.c.l.b16 %v2418
      %v2467 = vunpack.c.l.b16 %v2419
      %v2468 = vunpack.c.l.b16 %v2420
      %v2469 = vunpack.c.l.b16 %v2421
      %v2470 = vunpack.c.l.b16 %v2422
      %v2471 = vunpack.c.l.b16 %v2423
      %v2472 = vpack.c.b16 %v2457, %v2456
      %v2473 = vpack.c.b16 %v2459, %v2458
      %v2474 = vpack.c.b16 %v2461, %v2460
      %v2475 = vpack.c.b16 %v2463, %v2462
      %v2476 = vpack.c.b16 %v2465, %v2464
      %v2477 = vpack.c.b16 %v2467, %v2466
      %v2478 = vpack.c.b16 %v2469, %v2468
      %v2479 = vpack.c.b16 %v2471, %v2470
      %2488 = vmatpush.bf16.msra.mxu0 %v2479
      %2489 = vmatpush.bf16.msra.mxu0 %v2478
      %2490 = vmatpush.bf16.msra.mxu0 %v2477
      %2491 = vmatpush.bf16.msra.mxu0 %v2476
      %2492 = vmatpush.bf16.msra.mxu0 %v2475
      %2493 = vmatpush.bf16.msra.mxu0 %v2474
      %2494 = vmatpush.bf16.msra.mxu0 %v2473
      %2495 = vmatpush.bf16.msra.mxu0 %v2472
      %2496 = vmatmul.bf16.gmra.mxu0 %v2432
      %v2497 = vpop.f32.mrf.mxu0
      %v2498 = vadd.f32 0.0, %v2497
      %v2499 = vpop.f32.mrf.mxu0
      %v2500 = vadd.f32 0.0, %v2499
      %2501 = vmatmul.bf16.gmra.mxu0 %v2433
      %v2502 = vpop.f32.mrf.mxu0
      %v2503 = vadd.f32 0.0, %v2502
      %v2504 = vpop.f32.mrf.mxu0
      %v2505 = vadd.f32 0.0, %v2504
      %2506 = vmatmul.bf16.gmra.mxu0 %v2434
      %v2507 = vpop.f32.mrf.mxu0
      %v2508 = vadd.f32 0.0, %v2507
      %v2509 = vpop.f32.mrf.mxu0
      %v2510 = vadd.f32 0.0, %v2509
      %2511 = vmatmul.bf16.gmra.mxu0 %v2435
      %v2512 = vpop.f32.mrf.mxu0
      %v2513 = vadd.f32 0.0, %v2512
      %v2514 = vpop.f32.mrf.mxu0
      %v2515 = vadd.f32 0.0, %v2514
      %2516 = vdwg.mxu0
      %v2517 = vadd.f32 %v2340, %v2498
      %v2518 = vadd.f32 %v2342, %v2500
      %v2519 = vadd.f32 %v2345, %v2503
      %v2520 = vadd.f32 %v2347, %v2505
      %v2521 = vadd.f32 %v2350, %v2508
      %v2522 = vadd.f32 %v2352, %v2510
      %v2523 = vadd.f32 %v2355, %v2513
      %v2524 = vadd.f32 %v2357, %v2515
      %v2525 = vld [vmem:[%s10] sm:$0x1]
      %v2527 = vperm.slane %v2525, 0
      %v2529 = vmul.f32 %v2517, %v2527
      %v2530 = vmul.f32 %v2518, %v2527
      %v2531 = vmul.f32 %v2519, %v2527
      %v2532 = vmul.f32 %v2520, %v2527
      %v2533 = vmul.f32 %v2521, %v2527
      %v2534 = vmul.f32 %v2522, %v2527
      %v2535 = vmul.f32 %v2523, %v2527
      %v2536 = vmul.f32 %v2524, %v2527
      %v2537 = vld [vmem:[%s11] sm:$0x1]
      %v2539 = vperm.slane %v2537, 0
      %v2541 = vadd.f32 %v2529, %v2539
      %v2542 = vadd.f32 %v2530, %v2539
      %v2543 = vadd.f32 %v2531, %v2539
      %v2544 = vadd.f32 %v2532, %v2539
      %v2545 = vadd.f32 %v2533, %v2539
      %v2546 = vadd.f32 %v2534, %v2539
      %v2547 = vadd.f32 %v2535, %v2539
      %v2548 = vadd.f32 %v2536, %v2539
      %v2549 = vmax.f32 %v2541, 0.0
      %v2550 = vmax.f32 %v2542, 0.0
      %v2551 = vmax.f32 %v2543, 0.0
      %v2552 = vmax.f32 %v2544, 0.0
      %v2553 = vmax.f32 %v2545, 0.0
      %v2554 = vmax.f32 %v2546, 0.0
      %v2555 = vmax.f32 %v2547, 0.0
      %v2556 = vmax.f32 %v2548, 0.0
      %v2557 = vpack.c.bf16 %v2549, %v2549
      %v2558 = vpack.c.bf16 %v2550, %v2550
      %v2559 = vpack.c.bf16 %v2551, %v2551
      %v2560 = vpack.c.bf16 %v2552, %v2552
      %v2561 = vpack.c.bf16 %v2553, %v2553
      %v2562 = vpack.c.bf16 %v2554, %v2554
      %v2563 = vpack.c.bf16 %v2555, %v2555
      %v2564 = vpack.c.bf16 %v2556, %v2556
      %2565 = vst [vmem:[#allocation2 + $0x8] sm:$0xf] %v2557
      %2566 = vst [vmem:[#allocation2 + $0xc] sm:$0xf] %v2558
      %2567 = vst [vmem:[#allocation2 + $0x10] sm:$0xf] %v2559
      %v2568 = vld [vmem:[#allocation2 + $0x14] sm:$0x7]
      %v2569 = vsel %vm764, %v2560, %v2568
      %2570 = vst [vmem:[#allocation2 + $0x14] sm:$0x7] %v2569
      %2571 = vst [vmem:[#allocation2 + $0x24] sm:$0xf] %v2561
      %2572 = vst [vmem:[#allocation2 + $0x28] sm:$0xf] %v2562
      %2573 = vst [vmem:[#allocation2 + $0x2c] sm:$0xf] %v2563
      %v2574 = vld [vmem:[#allocation2 + $0x30] sm:$0x7]
      %v2575 = vsel %vm764, %v2564, %v2574
      %2576 = vst [vmem:[#allocation2 + $0x30] sm:$0x7] %v2575
      %v2577 = vld [vmem:[#allocation2 + $0x4] sm:$0x8]
      %v2578 = vld [vmem:[#allocation2 + $0x8] sm:$0xf]
      %v2579 = vld [vmem:[#allocation2 + $0xc] sm:$0xf]
      %v2580 = vld [vmem:[#allocation2 + $0x10] sm:$0xf]
      %v2581 = vld [vmem:[#allocation2 + $0x14] sm:$0x7]
      %v2582 = vld [vmem:[#allocation2 + $0x20] sm:$0x8]
      %v2583 = vld [vmem:[#allocation2 + $0x24] sm:$0xf]
      %v2584 = vld [vmem:[#allocation2 + $0x28] sm:$0xf]
      %v2585 = vld [vmem:[#allocation2 + $0x2c] sm:$0xf]
      %v2586 = vld [vmem:[#allocation2 + $0x30] sm:$0x7]
      %v2597 = vrot.slane %v2577, 7
      %v2598 = vrot.slane %v2597, 4
      %v2599 = vrot.slane %v2578, 7
      %v2600 = vsel %vm2109, %v2598, %v2599
      %v2601 = vrot.slane %v2599, 4
      %v2602 = vrot.slane %v2579, 7
      %v2603 = vsel %vm2109, %v2601, %v2602
      %v2604 = vrot.slane %v2602, 4
      %v2605 = vrot.slane %v2580, 7
      %v2606 = vsel %vm2109, %v2604, %v2605
      %v2607 = vrot.slane %v2605, 4
      %v2608 = vrot.slane %v2581, 7
      %v2609 = vsel %vm2109, %v2607, %v2608
      %v2610 = vrot.slane %v2582, 7
      %v2611 = vrot.slane %v2610, 4
      %v2612 = vrot.slane %v2583, 7
      %v2613 = vsel %vm2109, %v2611, %v2612
      %v2614 = vrot.slane %v2612, 4
      %v2615 = vrot.slane %v2584, 7
      %v2616 = vsel %vm2109, %v2614, %v2615
      %v2617 = vrot.slane %v2615, 4
      %v2618 = vrot.slane %v2585, 7
      %v2619 = vsel %vm2109, %v2617, %v2618
      %v2620 = vrot.slane %v2618, 4
      %v2621 = vrot.slane %v2586, 7
      %v2622 = vsel %vm2109, %v2620, %v2621
      %v2623 = vld [vmem:[%s12] sm:$0xf]
      %v2624 = vld [vmem:[%s12 + $0x4] sm:$0xf]
      %v2625 = vld [vmem:[%s12 + $0x8] sm:$0xf]
      %v2626 = vld [vmem:[%s12 + $0xc] sm:$0xf]
      %v2627 = vld [vmem:[%s12 + $0x10] sm:$0xf]
      %v2628 = vld [vmem:[%s12 + $0x14] sm:$0xf]
      %v2629 = vld [vmem:[%s12 + $0x18] sm:$0xf]
      %v2630 = vld [vmem:[%s12 + $0x1c] sm:$0xf]
      %v2631 = vld [vmem:[%s12 + $0x20] sm:$0xf]
      %v2632 = vld [vmem:[%s12 + $0x24] sm:$0xf]
      %v2633 = vld [vmem:[%s12 + $0x28] sm:$0xf]
      %v2634 = vld [vmem:[%s12 + $0x2c] sm:$0xf]
      %v2635 = vld [vmem:[%s12 + $0x30] sm:$0xf]
      %v2636 = vld [vmem:[%s12 + $0x34] sm:$0xf]
      %v2637 = vld [vmem:[%s12 + $0x38] sm:$0xf]
      %v2638 = vld [vmem:[%s12 + $0x3c] sm:$0xf]
      %v2639 = vld [vmem:[#allocation2 + $0x14] sm:$0xf]
      %v2640 = vld [vmem:[#allocation2 + $0x30] sm:$0xf]
      %s2641 = scalar_lea.vmem %s12, 64
      %v2642 = vld [vmem:[%s2641] sm:$0xf]
      %v2643 = vld [vmem:[%s2641 + $0x4] sm:$0xf]
      %v2644 = vld [vmem:[%s2641 + $0x8] sm:$0xf]
      %v2645 = vld [vmem:[%s2641 + $0xc] sm:$0xf]
      %v2646 = vld [vmem:[%s2641 + $0x10] sm:$0xf]
      %v2647 = vld [vmem:[%s2641 + $0x14] sm:$0xf]
      %v2648 = vld [vmem:[%s2641 + $0x18] sm:$0xf]
      %v2649 = vld [vmem:[%s2641 + $0x1c] sm:$0xf]
      %v2650 = vld [vmem:[%s2641 + $0x20] sm:$0xf]
      %v2651 = vld [vmem:[%s2641 + $0x24] sm:$0xf]
      %v2652 = vld [vmem:[%s2641 + $0x28] sm:$0xf]
      %v2653 = vld [vmem:[%s2641 + $0x2c] sm:$0xf]
      %v2654 = vld [vmem:[%s2641 + $0x30] sm:$0xf]
      %v2655 = vld [vmem:[%s2641 + $0x34] sm:$0xf]
      %v2656 = vld [vmem:[%s2641 + $0x38] sm:$0xf]
      %v2657 = vld [vmem:[%s2641 + $0x3c] sm:$0xf]
      %v2660 = vunpack.c.l.b16 %v2578
      %v2661 = vunpack.c.l.b16 %v2579
      %v2662 = vunpack.c.l.b16 %v2580
      %v2663 = vunpack.c.l.b16 %v2639
      %v2664 = vunpack.c.l.b16 %v2583
      %v2665 = vunpack.c.l.b16 %v2584
      %v2666 = vunpack.c.l.b16 %v2585
      %v2667 = vunpack.c.l.b16 %v2640
      %v2668 = vpack.c.b16 %v2661, %v2660
      %v2669 = vpack.c.b16 %v2663, %v2662
      %v2670 = vpack.c.b16 %v2665, %v2664
      %v2671 = vpack.c.b16 %v2667, %v2666
      %v2692 = vunpack.c.l.b16 %v2642
      %v2693 = vunpack.c.l.b16 %v2643
      %v2694 = vunpack.c.l.b16 %v2644
      %v2695 = vunpack.c.l.b16 %v2645
      %v2696 = vunpack.c.l.b16 %v2646
      %v2697 = vunpack.c.l.b16 %v2647
      %v2698 = vunpack.c.l.b16 %v2648
      %v2699 = vunpack.c.l.b16 %v2649
      %v2700 = vunpack.c.l.b16 %v2650
      %v2701 = vunpack.c.l.b16 %v2651
      %v2702 = vunpack.c.l.b16 %v2652
      %v2703 = vunpack.c.l.b16 %v2653
      %v2704 = vunpack.c.l.b16 %v2654
      %v2705 = vunpack.c.l.b16 %v2655
      %v2706 = vunpack.c.l.b16 %v2656
      %v2707 = vunpack.c.l.b16 %v2657
      %v2708 = vpack.c.b16 %v2693, %v2692
      %v2709 = vpack.c.b16 %v2695, %v2694
      %v2710 = vpack.c.b16 %v2697, %v2696
      %v2711 = vpack.c.b16 %v2699, %v2698
      %v2712 = vpack.c.b16 %v2701, %v2700
      %v2713 = vpack.c.b16 %v2703, %v2702
      %v2714 = vpack.c.b16 %v2705, %v2704
      %v2715 = vpack.c.b16 %v2707, %v2706
      %2724 = vmatpush.bf16.msra.mxu0 %v2715
      %2725 = vmatpush.bf16.msra.mxu0 %v2714
      %2726 = vmatpush.bf16.msra.mxu0 %v2713
      %2727 = vmatpush.bf16.msra.mxu0 %v2712
      %2728 = vmatpush.bf16.msra.mxu0 %v2711
      %2729 = vmatpush.bf16.msra.mxu0 %v2710
      %2730 = vmatpush.bf16.msra.mxu0 %v2709
      %2731 = vmatpush.bf16.msra.mxu0 %v2708
      %2732 = vmatmul.bf16.gmra.mxu0 %v2668
      %v2733 = vpop.f32.mrf.mxu0
      %v2734 = vadd.f32 0.0, %v2733
      %v2735 = vpop.f32.mrf.mxu0
      %v2736 = vadd.f32 0.0, %v2735
      %2737 = vmatmul.bf16.gmra.mxu0 %v2669
      %v2738 = vpop.f32.mrf.mxu0
      %v2739 = vadd.f32 0.0, %v2738
      %v2740 = vpop.f32.mrf.mxu0
      %v2741 = vadd.f32 0.0, %v2740
      %2742 = vmatmul.bf16.gmra.mxu0 %v2670
      %v2743 = vpop.f32.mrf.mxu0
      %v2744 = vadd.f32 0.0, %v2743
      %v2745 = vpop.f32.mrf.mxu0
      %v2746 = vadd.f32 0.0, %v2745
      %2747 = vmatmul.bf16.gmra.mxu0 %v2671
      %v2748 = vpop.f32.mrf.mxu0
      %v2749 = vadd.f32 0.0, %v2748
      %v2750 = vpop.f32.mrf.mxu0
      %v2751 = vadd.f32 0.0, %v2750
      %2752 = vdwg.mxu0
      %v2753 = vunpack.c.l.b16 %v2600
      %v2754 = vunpack.c.l.b16 %v2603
      %v2755 = vunpack.c.l.b16 %v2606
      %v2756 = vunpack.c.l.b16 %v2609
      %v2757 = vunpack.c.l.b16 %v2613
      %v2758 = vunpack.c.l.b16 %v2616
      %v2759 = vunpack.c.l.b16 %v2619
      %v2760 = vunpack.c.l.b16 %v2622
      %v2761 = vpack.c.b16 %v2754, %v2753
      %v2762 = vpack.c.b16 %v2756, %v2755
      %v2763 = vpack.c.b16 %v2758, %v2757
      %v2764 = vpack.c.b16 %v2760, %v2759
      %v2785 = vunpack.c.l.b16 %v2623
      %v2786 = vunpack.c.l.b16 %v2624
      %v2787 = vunpack.c.l.b16 %v2625
      %v2788 = vunpack.c.l.b16 %v2626
      %v2789 = vunpack.c.l.b16 %v2627
      %v2790 = vunpack.c.l.b16 %v2628
      %v2791 = vunpack.c.l.b16 %v2629
      %v2792 = vunpack.c.l.b16 %v2630
      %v2793 = vunpack.c.l.b16 %v2631
      %v2794 = vunpack.c.l.b16 %v2632
      %v2795 = vunpack.c.l.b16 %v2633
      %v2796 = vunpack.c.l.b16 %v2634
      %v2797 = vunpack.c.l.b16 %v2635
      %v2798 = vunpack.c.l.b16 %v2636
      %v2799 = vunpack.c.l.b16 %v2637
      %v2800 = vunpack.c.l.b16 %v2638
      %v2801 = vpack.c.b16 %v2786, %v2785
      %v2802 = vpack.c.b16 %v2788, %v2787
      %v2803 = vpack.c.b16 %v2790, %v2789
      %v2804 = vpack.c.b16 %v2792, %v2791
      %v2805 = vpack.c.b16 %v2794, %v2793
      %v2806 = vpack.c.b16 %v2796, %v2795
      %v2807 = vpack.c.b16 %v2798, %v2797
      %v2808 = vpack.c.b16 %v2800, %v2799
      %2817 = vmatpush.bf16.msra.mxu0 %v2808
      %2818 = vmatpush.bf16.msra.mxu0 %v2807
      %2819 = vmatpush.bf16.msra.mxu0 %v2806
      %2820 = vmatpush.bf16.msra.mxu0 %v2805
      %2821 = vmatpush.bf16.msra.mxu0 %v2804
      %2822 = vmatpush.bf16.msra.mxu0 %v2803
      %2823 = vmatpush.bf16.msra.mxu0 %v2802
      %2824 = vmatpush.bf16.msra.mxu0 %v2801
      %2825 = vmatmul.bf16.gmra.mxu0 %v2761
      %v2826 = vpop.f32.mrf.mxu0
      %v2827 = vadd.f32 %v2734, %v2826
      %v2828 = vpop.f32.mrf.mxu0
      %v2829 = vadd.f32 %v2736, %v2828
      %2830 = vmatmul.bf16.gmra.mxu0 %v2762
      %v2831 = vpop.f32.mrf.mxu0
      %v2832 = vadd.f32 %v2739, %v2831
      %v2833 = vpop.f32.mrf.mxu0
      %v2834 = vadd.f32 %v2741, %v2833
      %2835 = vmatmul.bf16.gmra.mxu0 %v2763
      %v2836 = vpop.f32.mrf.mxu0
      %v2837 = vadd.f32 %v2744, %v2836
      %v2838 = vpop.f32.mrf.mxu0
      %v2839 = vadd.f32 %v2746, %v2838
      %2840 = vmatmul.bf16.gmra.mxu0 %v2764
      %v2841 = vpop.f32.mrf.mxu0
      %v2842 = vadd.f32 %v2749, %v2841
      %v2843 = vpop.f32.mrf.mxu0
      %v2844 = vadd.f32 %v2751, %v2843
      %2845 = vdwg.mxu0
      %v2846 = vld [vmem:[#allocation2 + $0x8] sm:$0xe]
      %v2847 = vld [vmem:[#allocation2 + $0xc] sm:$0xf]
      %v2848 = vld [vmem:[#allocation2 + $0x10] sm:$0xf]
      %v2849 = vld [vmem:[#allocation2 + $0x14] sm:$0xf]
      %v2850 = vld [vmem:[#allocation2 + $0x18] sm:$0x1]
      %v2851 = vld [vmem:[#allocation2 + $0x24] sm:$0xe]
      %v2852 = vld [vmem:[#allocation2 + $0x28] sm:$0xf]
      %v2853 = vld [vmem:[#allocation2 + $0x2c] sm:$0xf]
      %v2854 = vld [vmem:[#allocation2 + $0x30] sm:$0xf]
      %v2855 = vld [vmem:[#allocation2 + $0x34] sm:$0x1]
      %v2866 = vrot.slane %v2846, 5
      %v2867 = vrot.slane %v2866, 4
      %v2868 = vrot.slane %v2847, 5
      %v2869 = vsel %vm2380, %v2867, %v2868
      %v2870 = vrot.slane %v2868, 4
      %v2871 = vrot.slane %v2848, 5
      %v2872 = vsel %vm2380, %v2870, %v2871
      %v2873 = vrot.slane %v2871, 4
      %v2874 = vrot.slane %v2849, 5
      %v2875 = vsel %vm2380, %v2873, %v2874
      %v2876 = vrot.slane %v2874, 4
      %v2877 = vrot.slane %v2850, 5
      %v2878 = vsel %vm2380, %v2876, %v2877
      %v2879 = vrot.slane %v2851, 5
      %v2880 = vrot.slane %v2879, 4
      %v2881 = vrot.slane %v2852, 5
      %v2882 = vsel %vm2380, %v2880, %v2881
      %v2883 = vrot.slane %v2881, 4
      %v2884 = vrot.slane %v2853, 5
      %v2885 = vsel %vm2380, %v2883, %v2884
      %v2886 = vrot.slane %v2884, 4
      %v2887 = vrot.slane %v2854, 5
      %v2888 = vsel %vm2380, %v2886, %v2887
      %v2889 = vrot.slane %v2887, 4
      %v2890 = vrot.slane %v2855, 5
      %v2891 = vsel %vm2380, %v2889, %v2890
      %s2892 = scalar_lea.vmem %s12, 128
      %v2893 = vld [vmem:[%s2892] sm:$0xf]
      %v2894 = vld [vmem:[%s2892 + $0x4] sm:$0xf]
      %v2895 = vld [vmem:[%s2892 + $0x8] sm:$0xf]
      %v2896 = vld [vmem:[%s2892 + $0xc] sm:$0xf]
      %v2897 = vld [vmem:[%s2892 + $0x10] sm:$0xf]
      %v2898 = vld [vmem:[%s2892 + $0x14] sm:$0xf]
      %v2899 = vld [vmem:[%s2892 + $0x18] sm:$0xf]
      %v2900 = vld [vmem:[%s2892 + $0x1c] sm:$0xf]
      %v2901 = vld [vmem:[%s2892 + $0x20] sm:$0xf]
      %v2902 = vld [vmem:[%s2892 + $0x24] sm:$0xf]
      %v2903 = vld [vmem:[%s2892 + $0x28] sm:$0xf]
      %v2904 = vld [vmem:[%s2892 + $0x2c] sm:$0xf]
      %v2905 = vld [vmem:[%s2892 + $0x30] sm:$0xf]
      %v2906 = vld [vmem:[%s2892 + $0x34] sm:$0xf]
      %v2907 = vld [vmem:[%s2892 + $0x38] sm:$0xf]
      %v2908 = vld [vmem:[%s2892 + $0x3c] sm:$0xf]
      %v2909 = vunpack.c.l.b16 %v2869
      %v2910 = vunpack.c.l.b16 %v2872
      %v2911 = vunpack.c.l.b16 %v2875
      %v2912 = vunpack.c.l.b16 %v2878
      %v2913 = vunpack.c.l.b16 %v2882
      %v2914 = vunpack.c.l.b16 %v2885
      %v2915 = vunpack.c.l.b16 %v2888
      %v2916 = vunpack.c.l.b16 %v2891
      %v2917 = vpack.c.b16 %v2910, %v2909
      %v2918 = vpack.c.b16 %v2912, %v2911
      %v2919 = vpack.c.b16 %v2914, %v2913
      %v2920 = vpack.c.b16 %v2916, %v2915
      %v2941 = vunpack.c.l.b16 %v2893
      %v2942 = vunpack.c.l.b16 %v2894
      %v2943 = vunpack.c.l.b16 %v2895
      %v2944 = vunpack.c.l.b16 %v2896
      %v2945 = vunpack.c.l.b16 %v2897
      %v2946 = vunpack.c.l.b16 %v2898
      %v2947 = vunpack.c.l.b16 %v2899
      %v2948 = vunpack.c.l.b16 %v2900
      %v2949 = vunpack.c.l.b16 %v2901
      %v2950 = vunpack.c.l.b16 %v2902
      %v2951 = vunpack.c.l.b16 %v2903
      %v2952 = vunpack.c.l.b16 %v2904
      %v2953 = vunpack.c.l.b16 %v2905
      %v2954 = vunpack.c.l.b16 %v2906
      %v2955 = vunpack.c.l.b16 %v2907
      %v2956 = vunpack.c.l.b16 %v2908
      %v2957 = vpack.c.b16 %v2942, %v2941
      %v2958 = vpack.c.b16 %v2944, %v2943
      %v2959 = vpack.c.b16 %v2946, %v2945
      %v2960 = vpack.c.b16 %v2948, %v2947
      %v2961 = vpack.c.b16 %v2950, %v2949
      %v2962 = vpack.c.b16 %v2952, %v2951
      %v2963 = vpack.c.b16 %v2954, %v2953
      %v2964 = vpack.c.b16 %v2956, %v2955
      %2973 = vmatpush.bf16.msra.mxu0 %v2964
      %2974 = vmatpush.bf16.msra.mxu0 %v2963
      %2975 = vmatpush.bf16.msra.mxu0 %v2962
      %2976 = vmatpush.bf16.msra.mxu0 %v2961
      %2977 = vmatpush.bf16.msra.mxu0 %v2960
      %2978 = vmatpush.bf16.msra.mxu0 %v2959
      %2979 = vmatpush.bf16.msra.mxu0 %v2958
      %2980 = vmatpush.bf16.msra.mxu0 %v2957
      %2981 = vmatmul.bf16.gmra.mxu0 %v2917
      %v2982 = vpop.f32.mrf.mxu0
      %v2983 = vadd.f32 0.0, %v2982
      %v2984 = vpop.f32.mrf.mxu0
      %v2985 = vadd.f32 0.0, %v2984
      %2986 = vmatmul.bf16.gmra.mxu0 %v2918
      %v2987 = vpop.f32.mrf.mxu0
      %v2988 = vadd.f32 0.0, %v2987
      %v2989 = vpop.f32.mrf.mxu0
      %v2990 = vadd.f32 0.0, %v2989
      %2991 = vmatmul.bf16.gmra.mxu0 %v2919
      %v2992 = vpop.f32.mrf.mxu0
      %v2993 = vadd.f32 0.0, %v2992
      %v2994 = vpop.f32.mrf.mxu0
      %v2995 = vadd.f32 0.0, %v2994
      %2996 = vmatmul.bf16.gmra.mxu0 %v2920
      %v2997 = vpop.f32.mrf.mxu0
      %v2998 = vadd.f32 0.0, %v2997
      %v2999 = vpop.f32.mrf.mxu0
      %v3000 = vadd.f32 0.0, %v2999
      %3001 = vdwg.mxu0
      %v3002 = vadd.f32 %v2827, %v2983
      %v3003 = vadd.f32 %v2829, %v2985
      %v3004 = vadd.f32 %v2832, %v2988
      %v3005 = vadd.f32 %v2834, %v2990
      %v3006 = vadd.f32 %v2837, %v2993
      %v3007 = vadd.f32 %v2839, %v2995
      %v3008 = vadd.f32 %v2842, %v2998
      %v3009 = vadd.f32 %v2844, %v3000
      %v3010 = vld [vmem:[%s13] sm:$0x1]
      %v3012 = vperm.slane %v3010, 0
      %v3014 = vmul.f32 %v3002, %v3012
      %v3015 = vmul.f32 %v3003, %v3012
      %v3016 = vmul.f32 %v3004, %v3012
      %v3017 = vmul.f32 %v3005, %v3012
      %v3018 = vmul.f32 %v3006, %v3012
      %v3019 = vmul.f32 %v3007, %v3012
      %v3020 = vmul.f32 %v3008, %v3012
      %v3021 = vmul.f32 %v3009, %v3012
      %v3022 = vld [vmem:[%s14] sm:$0x1]
      %v3024 = vperm.slane %v3022, 0
      %v3026 = vadd.f32 %v3014, %v3024
      %v3027 = vadd.f32 %v3015, %v3024
      %v3028 = vadd.f32 %v3016, %v3024
      %v3029 = vadd.f32 %v3017, %v3024
      %v3030 = vadd.f32 %v3018, %v3024
      %v3031 = vadd.f32 %v3019, %v3024
      %v3032 = vadd.f32 %v3020, %v3024
      %v3033 = vadd.f32 %v3021, %v3024
      %v3034 = vmax.f32 %v3026, 0.0
      %v3035 = vmax.f32 %v3027, 0.0
      %v3036 = vmax.f32 %v3028, 0.0
      %v3037 = vmax.f32 %v3029, 0.0
      %v3038 = vmax.f32 %v3030, 0.0
      %v3039 = vmax.f32 %v3031, 0.0
      %v3040 = vmax.f32 %v3032, 0.0
      %v3041 = vmax.f32 %v3033, 0.0
      %v3042 = vadd.f32 %v3034, %v2059
      %v3043 = vadd.f32 %v3035, %v2060
      %v3044 = vadd.f32 %v3036, %v2061
      %v3045 = vadd.f32 %v3037, %v2062
      %v3046 = vadd.f32 %v3038, %v2063
      %v3047 = vadd.f32 %v3039, %v2064
      %v3048 = vadd.f32 %v3040, %v2065
      %v3049 = vadd.f32 %v3041, %v2066
      %v3050 = vmax.f32 %v3042, 0.0
      %v3051 = vmax.f32 %v3043, 0.0
      %v3052 = vmax.f32 %v3044, 0.0
      %v3053 = vmax.f32 %v3045, 0.0
      %v3054 = vmax.f32 %v3046, 0.0
      %v3055 = vmax.f32 %v3047, 0.0
      %v3056 = vmax.f32 %v3048, 0.0
      %v3057 = vmax.f32 %v3049, 0.0
      %v3058 = vpack.c.bf16 %v3050, %v3050
      %v3059 = vpack.c.bf16 %v3051, %v3051
      %v3060 = vpack.c.bf16 %v3052, %v3052
      %v3061 = vpack.c.bf16 %v3053, %v3053
      %v3062 = vpack.c.bf16 %v3054, %v3054
      %v3063 = vpack.c.bf16 %v3055, %v3055
      %v3064 = vpack.c.bf16 %v3056, %v3056
      %v3065 = vpack.c.bf16 %v3057, %v3057
      %3066 = vst [vmem:[#allocation2 + $0x8] sm:$0xf] %v3058
      %3067 = vst [vmem:[#allocation2 + $0xc] sm:$0xf] %v3059
      %3068 = vst [vmem:[#allocation2 + $0x10] sm:$0xf] %v3060
      %v3069 = vld [vmem:[#allocation2 + $0x14] sm:$0x7]
      %v3070 = vsel %vm764, %v3061, %v3069
      %3071 = vst [vmem:[#allocation2 + $0x14] sm:$0x7] %v3070
      %3072 = vst [vmem:[#allocation2 + $0x24] sm:$0xf] %v3062
      %3073 = vst [vmem:[#allocation2 + $0x28] sm:$0xf] %v3063
      %3074 = vst [vmem:[#allocation2 + $0x2c] sm:$0xf] %v3064
      %v3075 = vld [vmem:[#allocation2 + $0x30] sm:$0x7]
      %v3076 = vsel %vm764, %v3065, %v3075
      %3077 = vst [vmem:[#allocation2 + $0x30] sm:$0x7] %v3076
      %v3078 = vld [vmem:[#allocation2 + $0x4] sm:$0xc]
      %v3079 = vld [vmem:[#allocation2 + $0x8] sm:$0xf]
      %v3080 = vld [vmem:[#allocation2 + $0xc] sm:$0xf]
      %v3081 = vld [vmem:[#allocation2 + $0x10] sm:$0xf]
      %v3082 = vld [vmem:[#allocation2 + $0x14] sm:$0x3]
      %v3083 = vld [vmem:[#allocation2 + $0x20] sm:$0xc]
      %v3084 = vld [vmem:[#allocation2 + $0x24] sm:$0xf]
      %v3085 = vld [vmem:[#allocation2 + $0x28] sm:$0xf]
      %v3086 = vld [vmem:[#allocation2 + $0x2c] sm:$0xf]
      %v3087 = vld [vmem:[#allocation2 + $0x30] sm:$0x3]
      %vm3098 = vcmask 1041408
      %vm3099 = vcmask 1045508
      %vm3100 = vmor %vm3098, %vm3099
      %v3101 = vrot.slane %v3078, 6
      %v3102 = vrot.slane %v3101, 4
      %v3103 = vrot.slane %v3079, 6
      %v3104 = vsel %vm3100, %v3102, %v3103
      %v3105 = vrot.slane %v3103, 4
      %v3106 = vrot.slane %v3080, 6
      %v3107 = vsel %vm3100, %v3105, %v3106
      %v3108 = vrot.slane %v3106, 4
      %v3109 = vrot.slane %v3081, 6
      %v3110 = vsel %vm3100, %v3108, %v3109
      %v3111 = vrot.slane %v3109, 4
      %v3112 = vrot.slane %v3082, 6
      %v3113 = vsel %vm3100, %v3111, %v3112
      %v3114 = vrot.slane %v3083, 6
      %v3115 = vrot.slane %v3114, 4
      %v3116 = vrot.slane %v3084, 6
      %v3117 = vsel %vm3100, %v3115, %v3116
      %v3118 = vrot.slane %v3116, 4
      %v3119 = vrot.slane %v3085, 6
      %v3120 = vsel %vm3100, %v3118, %v3119
      %v3121 = vrot.slane %v3119, 4
      %v3122 = vrot.slane %v3086, 6
      %v3123 = vsel %vm3100, %v3121, %v3122
      %v3124 = vrot.slane %v3122, 4
      %v3125 = vrot.slane %v3087, 6
      %v3126 = vsel %vm3100, %v3124, %v3125
      %v3127 = vld [vmem:[%s15] sm:$0xf]
      %v3128 = vld [vmem:[%s15 + $0x4] sm:$0xf]
      %v3129 = vld [vmem:[%s15 + $0x8] sm:$0xf]
      %v3130 = vld [vmem:[%s15 + $0xc] sm:$0xf]
      %v3131 = vld [vmem:[%s15 + $0x10] sm:$0xf]
      %v3132 = vld [vmem:[%s15 + $0x14] sm:$0xf]
      %v3133 = vld [vmem:[%s15 + $0x18] sm:$0xf]
      %v3134 = vld [vmem:[%s15 + $0x1c] sm:$0xf]
      %v3135 = vld [vmem:[%s15 + $0x20] sm:$0xf]
      %v3136 = vld [vmem:[%s15 + $0x24] sm:$0xf]
      %v3137 = vld [vmem:[%s15 + $0x28] sm:$0xf]
      %v3138 = vld [vmem:[%s15 + $0x2c] sm:$0xf]
      %v3139 = vld [vmem:[%s15 + $0x30] sm:$0xf]
      %v3140 = vld [vmem:[%s15 + $0x34] sm:$0xf]
      %v3141 = vld [vmem:[%s15 + $0x38] sm:$0xf]
      %v3142 = vld [vmem:[%s15 + $0x3c] sm:$0xf]
      %v3143 = vld [vmem:[#allocation2 + $0x14] sm:$0xf]
      %v3144 = vld [vmem:[#allocation2 + $0x30] sm:$0xf]
      %s3145 = scalar_lea.vmem %s15, 64
      %v3146 = vld [vmem:[%s3145] sm:$0xf]
      %v3147 = vld [vmem:[%s3145 + $0x4] sm:$0xf]
      %v3148 = vld [vmem:[%s3145 + $0x8] sm:$0xf]
      %v3149 = vld [vmem:[%s3145 + $0xc] sm:$0xf]
      %v3150 = vld [vmem:[%s3145 + $0x10] sm:$0xf]
      %v3151 = vld [vmem:[%s3145 + $0x14] sm:$0xf]
      %v3152 = vld [vmem:[%s3145 + $0x18] sm:$0xf]
      %v3153 = vld [vmem:[%s3145 + $0x1c] sm:$0xf]
      %v3154 = vld [vmem:[%s3145 + $0x20] sm:$0xf]
      %v3155 = vld [vmem:[%s3145 + $0x24] sm:$0xf]
      %v3156 = vld [vmem:[%s3145 + $0x28] sm:$0xf]
      %v3157 = vld [vmem:[%s3145 + $0x2c] sm:$0xf]
      %v3158 = vld [vmem:[%s3145 + $0x30] sm:$0xf]
      %v3159 = vld [vmem:[%s3145 + $0x34] sm:$0xf]
      %v3160 = vld [vmem:[%s3145 + $0x38] sm:$0xf]
      %v3161 = vld [vmem:[%s3145 + $0x3c] sm:$0xf]
      %v3164 = vunpack.c.l.b16 %v3079
      %v3165 = vunpack.c.l.b16 %v3080
      %v3166 = vunpack.c.l.b16 %v3081
      %v3167 = vunpack.c.l.b16 %v3143
      %v3168 = vunpack.c.l.b16 %v3084
      %v3169 = vunpack.c.l.b16 %v3085
      %v3170 = vunpack.c.l.b16 %v3086
      %v3171 = vunpack.c.l.b16 %v3144
      %v3172 = vpack.c.b16 %v3165, %v3164
      %v3173 = vpack.c.b16 %v3167, %v3166
      %v3174 = vpack.c.b16 %v3169, %v3168
      %v3175 = vpack.c.b16 %v3171, %v3170
      %v3196 = vunpack.c.l.b16 %v3146
      %v3197 = vunpack.c.l.b16 %v3147
      %v3198 = vunpack.c.l.b16 %v3148
      %v3199 = vunpack.c.l.b16 %v3149
      %v3200 = vunpack.c.l.b16 %v3150
      %v3201 = vunpack.c.l.b16 %v3151
      %v3202 = vunpack.c.l.b16 %v3152
      %v3203 = vunpack.c.l.b16 %v3153
      %v3204 = vunpack.c.l.b16 %v3154
      %v3205 = vunpack.c.l.b16 %v3155
      %v3206 = vunpack.c.l.b16 %v3156
      %v3207 = vunpack.c.l.b16 %v3157
      %v3208 = vunpack.c.l.b16 %v3158
      %v3209 = vunpack.c.l.b16 %v3159
      %v3210 = vunpack.c.l.b16 %v3160
      %v3211 = vunpack.c.l.b16 %v3161
      %v3212 = vpack.c.b16 %v3197, %v3196
      %v3213 = vpack.c.b16 %v3199, %v3198
      %v3214 = vpack.c.b16 %v3201, %v3200
      %v3215 = vpack.c.b16 %v3203, %v3202
      %v3216 = vpack.c.b16 %v3205, %v3204
      %v3217 = vpack.c.b16 %v3207, %v3206
      %v3218 = vpack.c.b16 %v3209, %v3208
      %v3219 = vpack.c.b16 %v3211, %v3210
      %3228 = vmatpush.bf16.msra.mxu0 %v3219
      %3229 = vmatpush.bf16.msra.mxu0 %v3218
      %3230 = vmatpush.bf16.msra.mxu0 %v3217
      %3231 = vmatpush.bf16.msra.mxu0 %v3216
      %3232 = vmatpush.bf16.msra.mxu0 %v3215
      %3233 = vmatpush.bf16.msra.mxu0 %v3214
      %3234 = vmatpush.bf16.msra.mxu0 %v3213
      %3235 = vmatpush.bf16.msra.mxu0 %v3212
      %3236 = vmatmul.bf16.gmra.mxu0 %v3172
      %v3237 = vpop.f32.mrf.mxu0
      %v3238 = vadd.f32 0.0, %v3237
      %v3239 = vpop.f32.mrf.mxu0
      %v3240 = vadd.f32 0.0, %v3239
      %3241 = vmatmul.bf16.gmra.mxu0 %v3173
      %v3242 = vpop.f32.mrf.mxu0
      %v3243 = vadd.f32 0.0, %v3242
      %v3244 = vpop.f32.mrf.mxu0
      %v3245 = vadd.f32 0.0, %v3244
      %3246 = vmatmul.bf16.gmra.mxu0 %v3174
      %v3247 = vpop.f32.mrf.mxu0
      %v3248 = vadd.f32 0.0, %v3247
      %v3249 = vpop.f32.mrf.mxu0
      %v3250 = vadd.f32 0.0, %v3249
      %3251 = vmatmul.bf16.gmra.mxu0 %v3175
      %v3252 = vpop.f32.mrf.mxu0
      %v3253 = vadd.f32 0.0, %v3252
      %v3254 = vpop.f32.mrf.mxu0
      %v3255 = vadd.f32 0.0, %v3254
      %3256 = vdwg.mxu0
      %v3257 = vunpack.c.l.b16 %v3104
      %v3258 = vunpack.c.l.b16 %v3107
      %v3259 = vunpack.c.l.b16 %v3110
      %v3260 = vunpack.c.l.b16 %v3113
      %v3261 = vunpack.c.l.b16 %v3117
      %v3262 = vunpack.c.l.b16 %v3120
      %v3263 = vunpack.c.l.b16 %v3123
      %v3264 = vunpack.c.l.b16 %v3126
      %v3265 = vpack.c.b16 %v3258, %v3257
      %v3266 = vpack.c.b16 %v3260, %v3259
      %v3267 = vpack.c.b16 %v3262, %v3261
      %v3268 = vpack.c.b16 %v3264, %v3263
      %v3289 = vunpack.c.l.b16 %v3127
      %v3290 = vunpack.c.l.b16 %v3128
      %v3291 = vunpack.c.l.b16 %v3129
      %v3292 = vunpack.c.l.b16 %v3130
      %v3293 = vunpack.c.l.b16 %v3131
      %v3294 = vunpack.c.l.b16 %v3132
      %v3295 = vunpack.c.l.b16 %v3133
      %v3296 = vunpack.c.l.b16 %v3134
      %v3297 = vunpack.c.l.b16 %v3135
      %v3298 = vunpack.c.l.b16 %v3136
      %v3299 = vunpack.c.l.b16 %v3137
      %v3300 = vunpack.c.l.b16 %v3138
      %v3301 = vunpack.c.l.b16 %v3139
      %v3302 = vunpack.c.l.b16 %v3140
      %v3303 = vunpack.c.l.b16 %v3141
      %v3304 = vunpack.c.l.b16 %v3142
      %v3305 = vpack.c.b16 %v3290, %v3289
      %v3306 = vpack.c.b16 %v3292, %v3291
      %v3307 = vpack.c.b16 %v3294, %v3293
      %v3308 = vpack.c.b16 %v3296, %v3295
      %v3309 = vpack.c.b16 %v3298, %v3297
      %v3310 = vpack.c.b16 %v3300, %v3299
      %v3311 = vpack.c.b16 %v3302, %v3301
      %v3312 = vpack.c.b16 %v3304, %v3303
      %3321 = vmatpush.bf16.msra.mxu0 %v3312
      %3322 = vmatpush.bf16.msra.mxu0 %v3311
      %3323 = vmatpush.bf16.msra.mxu0 %v3310
      %3324 = vmatpush.bf16.msra.mxu0 %v3309
      %3325 = vmatpush.bf16.msra.mxu0 %v3308
      %3326 = vmatpush.bf16.msra.mxu0 %v3307
      %3327 = vmatpush.bf16.msra.mxu0 %v3306
      %3328 = vmatpush.bf16.msra.mxu0 %v3305
      %3329 = vmatmul.bf16.gmra.mxu0 %v3265
      %v3330 = vpop.f32.mrf.mxu0
      %v3331 = vadd.f32 %v3238, %v3330
      %v3332 = vpop.f32.mrf.mxu0
      %v3333 = vadd.f32 %v3240, %v3332
      %3334 = vmatmul.bf16.gmra.mxu0 %v3266
      %v3335 = vpop.f32.mrf.mxu0
      %v3336 = vadd.f32 %v3243, %v3335
      %v3337 = vpop.f32.mrf.mxu0
      %v3338 = vadd.f32 %v3245, %v3337
      %3339 = vmatmul.bf16.gmra.mxu0 %v3267
      %v3340 = vpop.f32.mrf.mxu0
      %v3341 = vadd.f32 %v3248, %v3340
      %v3342 = vpop.f32.mrf.mxu0
      %v3343 = vadd.f32 %v3250, %v3342
      %3344 = vmatmul.bf16.gmra.mxu0 %v3268
      %v3345 = vpop.f32.mrf.mxu0
      %v3346 = vadd.f32 %v3253, %v3345
      %v3347 = vpop.f32.mrf.mxu0
      %v3348 = vadd.f32 %v3255, %v3347
      %3349 = vdwg.mxu0
      %v3350 = vld [vmem:[#allocation2 + $0x8] sm:$0xc]
      %v3351 = vld [vmem:[#allocation2 + $0xc] sm:$0xf]
      %v3352 = vld [vmem:[#allocation2 + $0x10] sm:$0xf]
      %v3353 = vld [vmem:[#allocation2 + $0x14] sm:$0xf]
      %v3354 = vld [vmem:[#allocation2 + $0x18] sm:$0x3]
      %v3355 = vld [vmem:[#allocation2 + $0x24] sm:$0xc]
      %v3356 = vld [vmem:[#allocation2 + $0x28] sm:$0xf]
      %v3357 = vld [vmem:[#allocation2 + $0x2c] sm:$0xf]
      %v3358 = vld [vmem:[#allocation2 + $0x30] sm:$0xf]
      %v3359 = vld [vmem:[#allocation2 + $0x34] sm:$0x3]
      %v3370 = vrot.slane %v3350, 6
      %v3371 = vrot.slane %v3370, 4
      %v3372 = vrot.slane %v3351, 6
      %v3373 = vsel %vm3100, %v3371, %v3372
      %v3374 = vrot.slane %v3372, 4
      %v3375 = vrot.slane %v3352, 6
      %v3376 = vsel %vm3100, %v3374, %v3375
      %v3377 = vrot.slane %v3375, 4
      %v3378 = vrot.slane %v3353, 6
      %v3379 = vsel %vm3100, %v3377, %v3378
      %v3380 = vrot.slane %v3378, 4
      %v3381 = vrot.slane %v3354, 6
      %v3382 = vsel %vm3100, %v3380, %v3381
      %v3383 = vrot.slane %v3355, 6
      %v3384 = vrot.slane %v3383, 4
      %v3385 = vrot.slane %v3356, 6
      %v3386 = vsel %vm3100, %v3384, %v3385
      %v3387 = vrot.slane %v3385, 4
      %v3388 = vrot.slane %v3357, 6
      %v3389 = vsel %vm3100, %v3387, %v3388
      %v3390 = vrot.slane %v3388, 4
      %v3391 = vrot.slane %v3358, 6
      %v3392 = vsel %vm3100, %v3390, %v3391
      %v3393 = vrot.slane %v3391, 4
      %v3394 = vrot.slane %v3359, 6
      %v3395 = vsel %vm3100, %v3393, %v3394
      %s3396 = scalar_lea.vmem %s15, 128
      %v3397 = vld [vmem:[%s3396] sm:$0xf]
      %v3398 = vld [vmem:[%s3396 + $0x4] sm:$0xf]
      %v3399 = vld [vmem:[%s3396 + $0x8] sm:$0xf]
      %v3400 = vld [vmem:[%s3396 + $0xc] sm:$0xf]
      %v3401 = vld [vmem:[%s3396 + $0x10] sm:$0xf]
      %v3402 = vld [vmem:[%s3396 + $0x14] sm:$0xf]
      %v3403 = vld [vmem:[%s3396 + $0x18] sm:$0xf]
      %v3404 = vld [vmem:[%s3396 + $0x1c] sm:$0xf]
      %v3405 = vld [vmem:[%s3396 + $0x20] sm:$0xf]
      %v3406 = vld [vmem:[%s3396 + $0x24] sm:$0xf]
      %v3407 = vld [vmem:[%s3396 + $0x28] sm:$0xf]
      %v3408 = vld [vmem:[%s3396 + $0x2c] sm:$0xf]
      %v3409 = vld [vmem:[%s3396 + $0x30] sm:$0xf]
      %v3410 = vld [vmem:[%s3396 + $0x34] sm:$0xf]
      %v3411 = vld [vmem:[%s3396 + $0x38] sm:$0xf]
      %v3412 = vld [vmem:[%s3396 + $0x3c] sm:$0xf]
      %v3413 = vunpack.c.l.b16 %v3373
      %v3414 = vunpack.c.l.b16 %v3376
      %v3415 = vunpack.c.l.b16 %v3379
      %v3416 = vunpack.c.l.b16 %v3382
      %v3417 = vunpack.c.l.b16 %v3386
      %v3418 = vunpack.c.l.b16 %v3389
      %v3419 = vunpack.c.l.b16 %v3392
      %v3420 = vunpack.c.l.b16 %v3395
      %v3421 = vpack.c.b16 %v3414, %v3413
      %v3422 = vpack.c.b16 %v3416, %v3415
      %v3423 = vpack.c.b16 %v3418, %v3417
      %v3424 = vpack.c.b16 %v3420, %v3419
      %v3445 = vunpack.c.l.b16 %v3397
      %v3446 = vunpack.c.l.b16 %v3398
      %v3447 = vunpack.c.l.b16 %v3399
      %v3448 = vunpack.c.l.b16 %v3400
      %v3449 = vunpack.c.l.b16 %v3401
      %v3450 = vunpack.c.l.b16 %v3402
      %v3451 = vunpack.c.l.b16 %v3403
      %v3452 = vunpack.c.l.b16 %v3404
      %v3453 = vunpack.c.l.b16 %v3405
      %v3454 = vunpack.c.l.b16 %v3406
      %v3455 = vunpack.c.l.b16 %v3407
      %v3456 = vunpack.c.l.b16 %v3408
      %v3457 = vunpack.c.l.b16 %v3409
      %v3458 = vunpack.c.l.b16 %v3410
      %v3459 = vunpack.c.l.b16 %v3411
      %v3460 = vunpack.c.l.b16 %v3412
      %v3461 = vpack.c.b16 %v3446, %v3445
      %v3462 = vpack.c.b16 %v3448, %v3447
      %v3463 = vpack.c.b16 %v3450, %v3449
      %v3464 = vpack.c.b16 %v3452, %v3451
      %v3465 = vpack.c.b16 %v3454, %v3453
      %v3466 = vpack.c.b16 %v3456, %v3455
      %v3467 = vpack.c.b16 %v3458, %v3457
      %v3468 = vpack.c.b16 %v3460, %v3459
      %3477 = vmatpush.bf16.msra.mxu0 %v3468
      %3478 = vmatpush.bf16.msra.mxu0 %v3467
      %3479 = vmatpush.bf16.msra.mxu0 %v3466
      %3480 = vmatpush.bf16.msra.mxu0 %v3465
      %3481 = vmatpush.bf16.msra.mxu0 %v3464
      %3482 = vmatpush.bf16.msra.mxu0 %v3463
      %3483 = vmatpush.bf16.msra.mxu0 %v3462
      %3484 = vmatpush.bf16.msra.mxu0 %v3461
      %3485 = vmatmul.bf16.gmra.mxu0 %v3421
      %v3486 = vpop.f32.mrf.mxu0
      %v3487 = vadd.f32 0.0, %v3486
      %v3488 = vpop.f32.mrf.mxu0
      %v3489 = vadd.f32 0.0, %v3488
      %3490 = vmatmul.bf16.gmra.mxu0 %v3422
      %v3491 = vpop.f32.mrf.mxu0
      %v3492 = vadd.f32 0.0, %v3491
      %v3493 = vpop.f32.mrf.mxu0
      %v3494 = vadd.f32 0.0, %v3493
      %3495 = vmatmul.bf16.gmra.mxu0 %v3423
      %v3496 = vpop.f32.mrf.mxu0
      %v3497 = vadd.f32 0.0, %v3496
      %v3498 = vpop.f32.mrf.mxu0
      %v3499 = vadd.f32 0.0, %v3498
      %3500 = vmatmul.bf16.gmra.mxu0 %v3424
      %v3501 = vpop.f32.mrf.mxu0
      %v3502 = vadd.f32 0.0, %v3501
      %v3503 = vpop.f32.mrf.mxu0
      %v3504 = vadd.f32 0.0, %v3503
      %3505 = vdwg.mxu0
      %v3506 = vadd.f32 %v3331, %v3487
      %v3507 = vadd.f32 %v3333, %v3489
      %v3508 = vadd.f32 %v3336, %v3492
      %v3509 = vadd.f32 %v3338, %v3494
      %v3510 = vadd.f32 %v3341, %v3497
      %v3511 = vadd.f32 %v3343, %v3499
      %v3512 = vadd.f32 %v3346, %v3502
      %v3513 = vadd.f32 %v3348, %v3504
      %v3514 = vld [vmem:[%s16] sm:$0x1]
      %v3516 = vperm.slane %v3514, 0
      %v3518 = vmul.f32 %v3506, %v3516
      %v3519 = vmul.f32 %v3507, %v3516
      %v3520 = vmul.f32 %v3508, %v3516
      %v3521 = vmul.f32 %v3509, %v3516
      %v3522 = vmul.f32 %v3510, %v3516
      %v3523 = vmul.f32 %v3511, %v3516
      %v3524 = vmul.f32 %v3512, %v3516
      %v3525 = vmul.f32 %v3513, %v3516
      %v3526 = vld [vmem:[%s17] sm:$0x1]
      %v3528 = vperm.slane %v3526, 0
      %v3530 = vadd.f32 %v3518, %v3528
      %v3531 = vadd.f32 %v3519, %v3528
      %v3532 = vadd.f32 %v3520, %v3528
      %v3533 = vadd.f32 %v3521, %v3528
      %v3534 = vadd.f32 %v3522, %v3528
      %v3535 = vadd.f32 %v3523, %v3528
      %v3536 = vadd.f32 %v3524, %v3528
      %v3537 = vadd.f32 %v3525, %v3528
      %v3538 = vmax.f32 %v3530, 0.0
      %v3539 = vmax.f32 %v3531, 0.0
      %v3540 = vmax.f32 %v3532, 0.0
      %v3541 = vmax.f32 %v3533, 0.0
      %v3542 = vmax.f32 %v3534, 0.0
      %v3543 = vmax.f32 %v3535, 0.0
      %v3544 = vmax.f32 %v3536, 0.0
      %v3545 = vmax.f32 %v3537, 0.0
      %v3546 = vpack.c.bf16 %v3538, %v3538
      %v3547 = vpack.c.bf16 %v3539, %v3539
      %v3548 = vpack.c.bf16 %v3540, %v3540
      %v3549 = vpack.c.bf16 %v3541, %v3541
      %v3550 = vpack.c.bf16 %v3542, %v3542
      %v3551 = vpack.c.bf16 %v3543, %v3543
      %v3552 = vpack.c.bf16 %v3544, %v3544
      %v3553 = vpack.c.bf16 %v3545, %v3545
      %3554 = vst [vmem:[#allocation2 + $0x8] sm:$0xf] %v3546
      %3555 = vst [vmem:[#allocation2 + $0xc] sm:$0xf] %v3547
      %3556 = vst [vmem:[#allocation2 + $0x10] sm:$0xf] %v3548
      %v3557 = vld [vmem:[#allocation2 + $0x14] sm:$0x7]
      %v3558 = vsel %vm764, %v3549, %v3557
      %3559 = vst [vmem:[#allocation2 + $0x14] sm:$0x7] %v3558
      %3560 = vst [vmem:[#allocation2 + $0x24] sm:$0xf] %v3550
      %3561 = vst [vmem:[#allocation2 + $0x28] sm:$0xf] %v3551
      %3562 = vst [vmem:[#allocation2 + $0x2c] sm:$0xf] %v3552
      %v3563 = vld [vmem:[#allocation2 + $0x30] sm:$0x7]
      %v3564 = vsel %vm764, %v3553, %v3563
      %3565 = vst [vmem:[#allocation2 + $0x30] sm:$0x7] %v3564
      %v3566 = vld [vmem:[#allocation2 + $0x4] sm:$0xc]
      %v3567 = vld [vmem:[#allocation2 + $0x8] sm:$0xf]
      %v3568 = vld [vmem:[#allocation2 + $0xc] sm:$0xf]
      %v3569 = vld [vmem:[#allocation2 + $0x10] sm:$0xf]
      %v3570 = vld [vmem:[#allocation2 + $0x14] sm:$0x3]
      %v3571 = vld [vmem:[#allocation2 + $0x20] sm:$0xc]
      %v3572 = vld [vmem:[#allocation2 + $0x24] sm:$0xf]
      %v3573 = vld [vmem:[#allocation2 + $0x28] sm:$0xf]
      %v3574 = vld [vmem:[#allocation2 + $0x2c] sm:$0xf]
      %v3575 = vld [vmem:[#allocation2 + $0x30] sm:$0x3]
      %v3586 = vrot.slane %v3566, 6
      %v3587 = vrot.slane %v3586, 4
      %v3588 = vrot.slane %v3567, 6
      %v3589 = vsel %vm3100, %v3587, %v3588
      %v3590 = vrot.slane %v3588, 4
      %v3591 = vrot.slane %v3568, 6
      %v3592 = vsel %vm3100, %v3590, %v3591
      %v3593 = vrot.slane %v3591, 4
      %v3594 = vrot.slane %v3569, 6
      %v3595 = vsel %vm3100, %v3593, %v3594
      %v3596 = vrot.slane %v3594, 4
      %v3597 = vrot.slane %v3570, 6
      %v3598 = vsel %vm3100, %v3596, %v3597
      %v3599 = vrot.slane %v3571, 6
      %v3600 = vrot.slane %v3599, 4
      %v3601 = vrot.slane %v3572, 6
      %v3602 = vsel %vm3100, %v3600, %v3601
      %v3603 = vrot.slane %v3601, 4
      %v3604 = vrot.slane %v3573, 6
      %v3605 = vsel %vm3100, %v3603, %v3604
      %v3606 = vrot.slane %v3604, 4
      %v3607 = vrot.slane %v3574, 6
      %v3608 = vsel %vm3100, %v3606, %v3607
      %v3609 = vrot.slane %v3607, 4
      %v3610 = vrot.slane %v3575, 6
      %v3611 = vsel %vm3100, %v3609, %v3610
      %v3612 = vld [vmem:[%s18] sm:$0xf]
      %v3613 = vld [vmem:[%s18 + $0x4] sm:$0xf]
      %v3614 = vld [vmem:[%s18 + $0x8] sm:$0xf]
      %v3615 = vld [vmem:[%s18 + $0xc] sm:$0xf]
      %v3616 = vld [vmem:[%s18 + $0x10] sm:$0xf]
      %v3617 = vld [vmem:[%s18 + $0x14] sm:$0xf]
      %v3618 = vld [vmem:[%s18 + $0x18] sm:$0xf]
      %v3619 = vld [vmem:[%s18 + $0x1c] sm:$0xf]
      %v3620 = vld [vmem:[%s18 + $0x20] sm:$0xf]
      %v3621 = vld [vmem:[%s18 + $0x24] sm:$0xf]
      %v3622 = vld [vmem:[%s18 + $0x28] sm:$0xf]
      %v3623 = vld [vmem:[%s18 + $0x2c] sm:$0xf]
      %v3624 = vld [vmem:[%s18 + $0x30] sm:$0xf]
      %v3625 = vld [vmem:[%s18 + $0x34] sm:$0xf]
      %v3626 = vld [vmem:[%s18 + $0x38] sm:$0xf]
      %v3627 = vld [vmem:[%s18 + $0x3c] sm:$0xf]
      %v3628 = vld [vmem:[#allocation2 + $0x14] sm:$0xf]
      %v3629 = vld [vmem:[#allocation2 + $0x30] sm:$0xf]
      %s3630 = scalar_lea.vmem %s18, 64
      %v3631 = vld [vmem:[%s3630] sm:$0xf]
      %v3632 = vld [vmem:[%s3630 + $0x4] sm:$0xf]
      %v3633 = vld [vmem:[%s3630 + $0x8] sm:$0xf]
      %v3634 = vld [vmem:[%s3630 + $0xc] sm:$0xf]
      %v3635 = vld [vmem:[%s3630 + $0x10] sm:$0xf]
      %v3636 = vld [vmem:[%s3630 + $0x14] sm:$0xf]
      %v3637 = vld [vmem:[%s3630 + $0x18] sm:$0xf]
      %v3638 = vld [vmem:[%s3630 + $0x1c] sm:$0xf]
      %v3639 = vld [vmem:[%s3630 + $0x20] sm:$0xf]
      %v3640 = vld [vmem:[%s3630 + $0x24] sm:$0xf]
      %v3641 = vld [vmem:[%s3630 + $0x28] sm:$0xf]
      %v3642 = vld [vmem:[%s3630 + $0x2c] sm:$0xf]
      %v3643 = vld [vmem:[%s3630 + $0x30] sm:$0xf]
      %v3644 = vld [vmem:[%s3630 + $0x34] sm:$0xf]
      %v3645 = vld [vmem:[%s3630 + $0x38] sm:$0xf]
      %v3646 = vld [vmem:[%s3630 + $0x3c] sm:$0xf]
      %v3649 = vunpack.c.l.b16 %v3567
      %v3650 = vunpack.c.l.b16 %v3568
      %v3651 = vunpack.c.l.b16 %v3569
      %v3652 = vunpack.c.l.b16 %v3628
      %v3653 = vunpack.c.l.b16 %v3572
      %v3654 = vunpack.c.l.b16 %v3573
      %v3655 = vunpack.c.l.b16 %v3574
      %v3656 = vunpack.c.l.b16 %v3629
      %v3657 = vpack.c.b16 %v3650, %v3649
      %v3658 = vpack.c.b16 %v3652, %v3651
      %v3659 = vpack.c.b16 %v3654, %v3653
      %v3660 = vpack.c.b16 %v3656, %v3655
      %v3681 = vunpack.c.l.b16 %v3631
      %v3682 = vunpack.c.l.b16 %v3632
      %v3683 = vunpack.c.l.b16 %v3633
      %v3684 = vunpack.c.l.b16 %v3634
      %v3685 = vunpack.c.l.b16 %v3635
      %v3686 = vunpack.c.l.b16 %v3636
      %v3687 = vunpack.c.l.b16 %v3637
      %v3688 = vunpack.c.l.b16 %v3638
      %v3689 = vunpack.c.l.b16 %v3639
      %v3690 = vunpack.c.l.b16 %v3640
      %v3691 = vunpack.c.l.b16 %v3641
      %v3692 = vunpack.c.l.b16 %v3642
      %v3693 = vunpack.c.l.b16 %v3643
      %v3694 = vunpack.c.l.b16 %v3644
      %v3695 = vunpack.c.l.b16 %v3645
      %v3696 = vunpack.c.l.b16 %v3646
      %v3697 = vpack.c.b16 %v3682, %v3681
      %v3698 = vpack.c.b16 %v3684, %v3683
      %v3699 = vpack.c.b16 %v3686, %v3685
      %v3700 = vpack.c.b16 %v3688, %v3687
      %v3701 = vpack.c.b16 %v3690, %v3689
      %v3702 = vpack.c.b16 %v3692, %v3691
      %v3703 = vpack.c.b16 %v3694, %v3693
      %v3704 = vpack.c.b16 %v3696, %v3695
      %3713 = vmatpush.bf16.msra.mxu0 %v3704
      %3714 = vmatpush.bf16.msra.mxu0 %v3703
      %3715 = vmatpush.bf16.msra.mxu0 %v3702
      %3716 = vmatpush.bf16.msra.mxu0 %v3701
      %3717 = vmatpush.bf16.msra.mxu0 %v3700
      %3718 = vmatpush.bf16.msra.mxu0 %v3699
      %3719 = vmatpush.bf16.msra.mxu0 %v3698
      %3720 = vmatpush.bf16.msra.mxu0 %v3697
      %3721 = vmatmul.bf16.gmra.mxu0 %v3657
      %v3722 = vpop.f32.mrf.mxu0
      %v3723 = vadd.f32 0.0, %v3722
      %v3724 = vpop.f32.mrf.mxu0
      %v3725 = vadd.f32 0.0, %v3724
      %3726 = vmatmul.bf16.gmra.mxu0 %v3658
      %v3727 = vpop.f32.mrf.mxu0
      %v3728 = vadd.f32 0.0, %v3727
      %v3729 = vpop.f32.mrf.mxu0
      %v3730 = vadd.f32 0.0, %v3729
      %3731 = vmatmul.bf16.gmra.mxu0 %v3659
      %v3732 = vpop.f32.mrf.mxu0
      %v3733 = vadd.f32 0.0, %v3732
      %v3734 = vpop.f32.mrf.mxu0
      %v3735 = vadd.f32 0.0, %v3734
      %3736 = vmatmul.bf16.gmra.mxu0 %v3660
      %v3737 = vpop.f32.mrf.mxu0
      %v3738 = vadd.f32 0.0, %v3737
      %v3739 = vpop.f32.mrf.mxu0
      %v3740 = vadd.f32 0.0, %v3739
      %3741 = vdwg.mxu0
      %v3742 = vunpack.c.l.b16 %v3589
      %v3743 = vunpack.c.l.b16 %v3592
      %v3744 = vunpack.c.l.b16 %v3595
      %v3745 = vunpack.c.l.b16 %v3598
      %v3746 = vunpack.c.l.b16 %v3602
      %v3747 = vunpack.c.l.b16 %v3605
      %v3748 = vunpack.c.l.b16 %v3608
      %v3749 = vunpack.c.l.b16 %v3611
      %v3750 = vpack.c.b16 %v3743, %v3742
      %v3751 = vpack.c.b16 %v3745, %v3744
      %v3752 = vpack.c.b16 %v3747, %v3746
      %v3753 = vpack.c.b16 %v3749, %v3748
      %v3774 = vunpack.c.l.b16 %v3612
      %v3775 = vunpack.c.l.b16 %v3613
      %v3776 = vunpack.c.l.b16 %v3614
      %v3777 = vunpack.c.l.b16 %v3615
      %v3778 = vunpack.c.l.b16 %v3616
      %v3779 = vunpack.c.l.b16 %v3617
      %v3780 = vunpack.c.l.b16 %v3618
      %v3781 = vunpack.c.l.b16 %v3619
      %v3782 = vunpack.c.l.b16 %v3620
      %v3783 = vunpack.c.l.b16 %v3621
      %v3784 = vunpack.c.l.b16 %v3622
      %v3785 = vunpack.c.l.b16 %v3623
      %v3786 = vunpack.c.l.b16 %v3624
      %v3787 = vunpack.c.l.b16 %v3625
      %v3788 = vunpack.c.l.b16 %v3626
      %v3789 = vunpack.c.l.b16 %v3627
      %v3790 = vpack.c.b16 %v3775, %v3774
      %v3791 = vpack.c.b16 %v3777, %v3776
      %v3792 = vpack.c.b16 %v3779, %v3778
      %v3793 = vpack.c.b16 %v3781, %v3780
      %v3794 = vpack.c.b16 %v3783, %v3782
      %v3795 = vpack.c.b16 %v3785, %v3784
      %v3796 = vpack.c.b16 %v3787, %v3786
      %v3797 = vpack.c.b16 %v3789, %v3788
      %3806 = vmatpush.bf16.msra.mxu0 %v3797
      %3807 = vmatpush.bf16.msra.mxu0 %v3796
      %3808 = vmatpush.bf16.msra.mxu0 %v3795
      %3809 = vmatpush.bf16.msra.mxu0 %v3794
      %3810 = vmatpush.bf16.msra.mxu0 %v3793
      %3811 = vmatpush.bf16.msra.mxu0 %v3792
      %3812 = vmatpush.bf16.msra.mxu0 %v3791
      %3813 = vmatpush.bf16.msra.mxu0 %v3790
      %3814 = vmatmul.bf16.gmra.mxu0 %v3750
      %v3815 = vpop.f32.mrf.mxu0
      %v3816 = vadd.f32 %v3723, %v3815
      %v3817 = vpop.f32.mrf.mxu0
      %v3818 = vadd.f32 %v3725, %v3817
      %3819 = vmatmul.bf16.gmra.mxu0 %v3751
      %v3820 = vpop.f32.mrf.mxu0
      %v3821 = vadd.f32 %v3728, %v3820
      %v3822 = vpop.f32.mrf.mxu0
      %v3823 = vadd.f32 %v3730, %v3822
      %3824 = vmatmul.bf16.gmra.mxu0 %v3752
      %v3825 = vpop.f32.mrf.mxu0
      %v3826 = vadd.f32 %v3733, %v3825
      %v3827 = vpop.f32.mrf.mxu0
      %v3828 = vadd.f32 %v3735, %v3827
      %3829 = vmatmul.bf16.gmra.mxu0 %v3753
      %v3830 = vpop.f32.mrf.mxu0
      %v3831 = vadd.f32 %v3738, %v3830
      %v3832 = vpop.f32.mrf.mxu0
      %v3833 = vadd.f32 %v3740, %v3832
      %3834 = vdwg.mxu0
      %v3835 = vld [vmem:[#allocation2 + $0x8] sm:$0xc]
      %v3836 = vld [vmem:[#allocation2 + $0xc] sm:$0xf]
      %v3837 = vld [vmem:[#allocation2 + $0x10] sm:$0xf]
      %v3838 = vld [vmem:[#allocation2 + $0x14] sm:$0xf]
      %v3839 = vld [vmem:[#allocation2 + $0x18] sm:$0x3]
      %v3840 = vld [vmem:[#allocation2 + $0x24] sm:$0xc]
      %v3841 = vld [vmem:[#allocation2 + $0x28] sm:$0xf]
      %v3842 = vld [vmem:[#allocation2 + $0x2c] sm:$0xf]
      %v3843 = vld [vmem:[#allocation2 + $0x30] sm:$0xf]
      %v3844 = vld [vmem:[#allocation2 + $0x34] sm:$0x3]
      %v3855 = vrot.slane %v3835, 6
      %v3856 = vrot.slane %v3855, 4
      %v3857 = vrot.slane %v3836, 6
      %v3858 = vsel %vm3100, %v3856, %v3857
      %v3859 = vrot.slane %v3857, 4
      %v3860 = vrot.slane %v3837, 6
      %v3861 = vsel %vm3100, %v3859, %v3860
      %v3862 = vrot.slane %v3860, 4
      %v3863 = vrot.slane %v3838, 6
      %v3864 = vsel %vm3100, %v3862, %v3863
      %v3865 = vrot.slane %v3863, 4
      %v3866 = vrot.slane %v3839, 6
      %v3867 = vsel %vm3100, %v3865, %v3866
      %v3868 = vrot.slane %v3840, 6
      %v3869 = vrot.slane %v3868, 4
      %v3870 = vrot.slane %v3841, 6
      %v3871 = vsel %vm3100, %v3869, %v3870
      %v3872 = vrot.slane %v3870, 4
      %v3873 = vrot.slane %v3842, 6
      %v3874 = vsel %vm3100, %v3872, %v3873
      %v3875 = vrot.slane %v3873, 4
      %v3876 = vrot.slane %v3843, 6
      %v3877 = vsel %vm3100, %v3875, %v3876
      %v3878 = vrot.slane %v3876, 4
      %v3879 = vrot.slane %v3844, 6
      %v3880 = vsel %vm3100, %v3878, %v3879
      %s3881 = scalar_lea.vmem %s18, 128
      %v3882 = vld [vmem:[%s3881] sm:$0xf]
      %v3883 = vld [vmem:[%s3881 + $0x4] sm:$0xf]
      %v3884 = vld [vmem:[%s3881 + $0x8] sm:$0xf]
      %v3885 = vld [vmem:[%s3881 + $0xc] sm:$0xf]
      %v3886 = vld [vmem:[%s3881 + $0x10] sm:$0xf]
      %v3887 = vld [vmem:[%s3881 + $0x14] sm:$0xf]
      %v3888 = vld [vmem:[%s3881 + $0x18] sm:$0xf]
      %v3889 = vld [vmem:[%s3881 + $0x1c] sm:$0xf]
      %v3890 = vld [vmem:[%s3881 + $0x20] sm:$0xf]
      %v3891 = vld [vmem:[%s3881 + $0x24] sm:$0xf]
      %v3892 = vld [vmem:[%s3881 + $0x28] sm:$0xf]
      %v3893 = vld [vmem:[%s3881 + $0x2c] sm:$0xf]
      %v3894 = vld [vmem:[%s3881 + $0x30] sm:$0xf]
      %v3895 = vld [vmem:[%s3881 + $0x34] sm:$0xf]
      %v3896 = vld [vmem:[%s3881 + $0x38] sm:$0xf]
      %v3897 = vld [vmem:[%s3881 + $0x3c] sm:$0xf]
      %v3898 = vunpack.c.l.b16 %v3858
      %v3899 = vunpack.c.l.b16 %v3861
      %v3900 = vunpack.c.l.b16 %v3864
      %v3901 = vunpack.c.l.b16 %v3867
      %v3902 = vunpack.c.l.b16 %v3871
      %v3903 = vunpack.c.l.b16 %v3874
      %v3904 = vunpack.c.l.b16 %v3877
      %v3905 = vunpack.c.l.b16 %v3880
      %v3906 = vpack.c.b16 %v3899, %v3898
      %v3907 = vpack.c.b16 %v3901, %v3900
      %v3908 = vpack.c.b16 %v3903, %v3902
      %v3909 = vpack.c.b16 %v3905, %v3904
      %v3930 = vunpack.c.l.b16 %v3882
      %v3931 = vunpack.c.l.b16 %v3883
      %v3932 = vunpack.c.l.b16 %v3884
      %v3933 = vunpack.c.l.b16 %v3885
      %v3934 = vunpack.c.l.b16 %v3886
      %v3935 = vunpack.c.l.b16 %v3887
      %v3936 = vunpack.c.l.b16 %v3888
      %v3937 = vunpack.c.l.b16 %v3889
      %v3938 = vunpack.c.l.b16 %v3890
      %v3939 = vunpack.c.l.b16 %v3891
      %v3940 = vunpack.c.l.b16 %v3892
      %v3941 = vunpack.c.l.b16 %v3893
      %v3942 = vunpack.c.l.b16 %v3894
      %v3943 = vunpack.c.l.b16 %v3895
      %v3944 = vunpack.c.l.b16 %v3896
      %v3945 = vunpack.c.l.b16 %v3897
      %v3946 = vpack.c.b16 %v3931, %v3930
      %v3947 = vpack.c.b16 %v3933, %v3932
      %v3948 = vpack.c.b16 %v3935, %v3934
      %v3949 = vpack.c.b16 %v3937, %v3936
      %v3950 = vpack.c.b16 %v3939, %v3938
      %v3951 = vpack.c.b16 %v3941, %v3940
      %v3952 = vpack.c.b16 %v3943, %v3942
      %v3953 = vpack.c.b16 %v3945, %v3944
      %3962 = vmatpush.bf16.msra.mxu0 %v3953
      %3963 = vmatpush.bf16.msra.mxu0 %v3952
      %3964 = vmatpush.bf16.msra.mxu0 %v3951
      %3965 = vmatpush.bf16.msra.mxu0 %v3950
      %3966 = vmatpush.bf16.msra.mxu0 %v3949
      %3967 = vmatpush.bf16.msra.mxu0 %v3948
      %3968 = vmatpush.bf16.msra.mxu0 %v3947
      %3969 = vmatpush.bf16.msra.mxu0 %v3946
      %3970 = vmatmul.bf16.gmra.mxu0 %v3906
      %v3971 = vpop.f32.mrf.mxu0
      %v3972 = vadd.f32 0.0, %v3971
      %v3973 = vpop.f32.mrf.mxu0
      %v3974 = vadd.f32 0.0, %v3973
      %3975 = vmatmul.bf16.gmra.mxu0 %v3907
      %v3976 = vpop.f32.mrf.mxu0
      %v3977 = vadd.f32 0.0, %v3976
      %v3978 = vpop.f32.mrf.mxu0
      %v3979 = vadd.f32 0.0, %v3978
      %3980 = vmatmul.bf16.gmra.mxu0 %v3908
      %v3981 = vpop.f32.mrf.mxu0
      %v3982 = vadd.f32 0.0, %v3981
      %v3983 = vpop.f32.mrf.mxu0
      %v3984 = vadd.f32 0.0, %v3983
      %3985 = vmatmul.bf16.gmra.mxu0 %v3909
      %v3986 = vpop.f32.mrf.mxu0
      %v3987 = vadd.f32 0.0, %v3986
      %v3988 = vpop.f32.mrf.mxu0
      %v3989 = vadd.f32 0.0, %v3988
      %3990 = vdwg.mxu0
      %v3991 = vadd.f32 %v3816, %v3972
      %v3992 = vadd.f32 %v3818, %v3974
      %v3993 = vadd.f32 %v3821, %v3977
      %v3994 = vadd.f32 %v3823, %v3979
      %v3995 = vadd.f32 %v3826, %v3982
      %v3996 = vadd.f32 %v3828, %v3984
      %v3997 = vadd.f32 %v3831, %v3987
      %v3998 = vadd.f32 %v3833, %v3989
      %v3999 = vld [vmem:[%s19] sm:$0x1]
      %v4001 = vperm.slane %v3999, 0
      %v4003 = vmul.f32 %v3991, %v4001
      %v4004 = vmul.f32 %v3992, %v4001
      %v4005 = vmul.f32 %v3993, %v4001
      %v4006 = vmul.f32 %v3994, %v4001
      %v4007 = vmul.f32 %v3995, %v4001
      %v4008 = vmul.f32 %v3996, %v4001
      %v4009 = vmul.f32 %v3997, %v4001
      %v4010 = vmul.f32 %v3998, %v4001
      %v4011 = vld [vmem:[%s20] sm:$0x1]
      %v4013 = vperm.slane %v4011, 0
      %v4015 = vadd.f32 %v4003, %v4013
      %v4016 = vadd.f32 %v4004, %v4013
      %v4017 = vadd.f32 %v4005, %v4013
      %v4018 = vadd.f32 %v4006, %v4013
      %v4019 = vadd.f32 %v4007, %v4013
      %v4020 = vadd.f32 %v4008, %v4013
      %v4021 = vadd.f32 %v4009, %v4013
      %v4022 = vadd.f32 %v4010, %v4013
      %v4023 = vmax.f32 %v4015, 0.0
      %v4024 = vmax.f32 %v4016, 0.0
      %v4025 = vmax.f32 %v4017, 0.0
      %v4026 = vmax.f32 %v4018, 0.0
      %v4027 = vmax.f32 %v4019, 0.0
      %v4028 = vmax.f32 %v4020, 0.0
      %v4029 = vmax.f32 %v4021, 0.0
      %v4030 = vmax.f32 %v4022, 0.0
      %v4031 = vld [vmem:[%s21] sm:$0xf]
      %v4032 = vld [vmem:[%s21 + $0x4] sm:$0xf]
      %v4033 = vld [vmem:[%s21 + $0x8] sm:$0xf]
      %v4034 = vld [vmem:[%s21 + $0xc] sm:$0xf]
      %v4035 = vld [vmem:[%s21 + $0x10] sm:$0xf]
      %v4036 = vld [vmem:[%s21 + $0x14] sm:$0xf]
      %v4037 = vld [vmem:[%s21 + $0x18] sm:$0xf]
      %v4038 = vld [vmem:[%s21 + $0x1c] sm:$0xf]
      %v4039 = vld [vmem:[%s21 + $0x20] sm:$0xf]
      %v4040 = vld [vmem:[%s21 + $0x24] sm:$0xf]
      %v4041 = vld [vmem:[%s21 + $0x28] sm:$0xf]
      %v4042 = vld [vmem:[%s21 + $0x2c] sm:$0xf]
      %v4043 = vld [vmem:[%s21 + $0x30] sm:$0xf]
      %v4044 = vld [vmem:[%s21 + $0x34] sm:$0xf]
      %v4045 = vld [vmem:[%s21 + $0x38] sm:$0xf]
      %v4046 = vld [vmem:[%s21 + $0x3c] sm:$0xf]
      %v4047 = vld [vmem:[%s22] sm:$0x1]
      %v4049 = vperm.slane %v4047, 0
      %v4059 = vunpack.c.l.b16 %v3058
      %v4060 = vunpack.c.l.b16 %v3059
      %v4061 = vunpack.c.l.b16 %v3060
      %v4062 = vunpack.c.l.b16 %v3061
      %v4063 = vunpack.c.l.b16 %v3062
      %v4064 = vunpack.c.l.b16 %v3063
      %v4065 = vunpack.c.l.b16 %v3064
      %v4066 = vunpack.c.l.b16 %v3065
      %v4067 = vpack.c.b16 %v4060, %v4059
      %v4068 = vpack.c.b16 %v4062, %v4061
      %v4069 = vpack.c.b16 %v4064, %v4063
      %v4070 = vpack.c.b16 %v4066, %v4065
      %v4091 = vunpack.c.l.b16 %v4031
      %v4092 = vunpack.c.l.b16 %v4032
      %v4093 = vunpack.c.l.b16 %v4033
      %v4094 = vunpack.c.l.b16 %v4034
      %v4095 = vunpack.c.l.b16 %v4035
      %v4096 = vunpack.c.l.b16 %v4036
      %v4097 = vunpack.c.l.b16 %v4037
      %v4098 = vunpack.c.l.b16 %v4038
      %v4099 = vunpack.c.l.b16 %v4039
      %v4100 = vunpack.c.l.b16 %v4040
      %v4101 = vunpack.c.l.b16 %v4041
      %v4102 = vunpack.c.l.b16 %v4042
      %v4103 = vunpack.c.l.b16 %v4043
      %v4104 = vunpack.c.l.b16 %v4044
      %v4105 = vunpack.c.l.b16 %v4045
      %v4106 = vunpack.c.l.b16 %v4046
      %v4107 = vpack.c.b16 %v4092, %v4091
      %v4108 = vpack.c.b16 %v4094, %v4093
      %v4109 = vpack.c.b16 %v4096, %v4095
      %v4110 = vpack.c.b16 %v4098, %v4097
      %v4111 = vpack.c.b16 %v4100, %v4099
      %v4112 = vpack.c.b16 %v4102, %v4101
      %v4113 = vpack.c.b16 %v4104, %v4103
      %v4114 = vpack.c.b16 %v4106, %v4105
      %4123 = vmatpush.bf16.msra.mxu0 %v4114
      %4124 = vmatpush.bf16.msra.mxu0 %v4113
      %4125 = vmatpush.bf16.msra.mxu0 %v4112
      %4126 = vmatpush.bf16.msra.mxu0 %v4111
      %4127 = vmatpush.bf16.msra.mxu0 %v4110
      %4128 = vmatpush.bf16.msra.mxu0 %v4109
      %4129 = vmatpush.bf16.msra.mxu0 %v4108
      %4130 = vmatpush.bf16.msra.mxu0 %v4107
      %4131 = vmatmul.bf16.gmra.mxu0 %v4067
      %v4132 = vpop.f32.mrf.mxu0
      %v4133 = vadd.f32 %v4049, %v4132
      %v4134 = vpop.f32.mrf.mxu0
      %v4135 = vadd.f32 %v4049, %v4134
      %4136 = vmatmul.bf16.gmra.mxu0 %v4068
      %v4137 = vpop.f32.mrf.mxu0
      %v4138 = vadd.f32 %v4049, %v4137
      %v4139 = vpop.f32.mrf.mxu0
      %v4140 = vadd.f32 %v4049, %v4139
      %4141 = vmatmul.bf16.gmra.mxu0 %v4069
      %v4142 = vpop.f32.mrf.mxu0
      %v4143 = vadd.f32 %v4049, %v4142
      %v4144 = vpop.f32.mrf.mxu0
      %v4145 = vadd.f32 %v4049, %v4144
      %4146 = vmatmul.bf16.gmra.mxu0 %v4070
      %v4147 = vpop.f32.mrf.mxu0
      %v4148 = vadd.f32 %v4049, %v4147
      %v4149 = vpop.f32.mrf.mxu0
      %v4150 = vadd.f32 %v4049, %v4149
      %4151 = vdwg.mxu0
      %v4152 = vadd.f32 %v4023, %v4133
      %v4153 = vadd.f32 %v4024, %v4135
      %v4154 = vadd.f32 %v4025, %v4138
      %v4155 = vadd.f32 %v4026, %v4140
      %v4156 = vadd.f32 %v4027, %v4143
      %v4157 = vadd.f32 %v4028, %v4145
      %v4158 = vadd.f32 %v4029, %v4148
      %v4159 = vadd.f32 %v4030, %v4150
      %v4160 = vmax.f32 %v4152, 0.0
      %v4161 = vmax.f32 %v4153, 0.0
      %v4162 = vmax.f32 %v4154, 0.0
      %v4163 = vmax.f32 %v4155, 0.0
      %v4164 = vmax.f32 %v4156, 0.0
      %v4165 = vmax.f32 %v4157, 0.0
      %v4166 = vmax.f32 %v4158, 0.0
      %v4167 = vmax.f32 %v4159, 0.0
      %4168 = vst [vmem:[%s717] sm:$0xff] %v4160
      %4169 = vst [vmem:[%s717 + $0x8] sm:$0xff] %v4161
      %4170 = vst [vmem:[%s717 + $0x10] sm:$0xff] %v4162
      %4171 = vst [vmem:[%s717 + $0x18] sm:$0xff] %v4163
      %4172 = vst [vmem:[%s717 + $0x20] sm:$0xff] %v4164
      %4173 = vst [vmem:[%s717 + $0x28] sm:$0xff] %v4165
      %4174 = vst [vmem:[%s717 + $0x30] sm:$0xff] %v4166
      %4175 = vst [vmem:[%s717 + $0x38] sm:$0xff] %v4167
      %s4176 = smul.u32 2, %s34
      %p4177 = scmp.lt.s32.totalorder %s4176, 3
      %s4178 = scalar_select %p4177, %s4176, 3
      %s4179 = smul.addr %s4178, 4
      %s4180 = smul.addr %s4179, 8
      %s4181 = scalar_lea.vmem %s23, %s4180
      // Predicated region
      $region113: #{temporal_conv_net.1} parent=111 // pred_check
        %p4182 = pneg %p540
      $region114: #{temporal_conv_net.1} parent=111 // pred_check_branch
        %4184 = sbr.rel (%p4182) target = $region116
      $region115: #{temporal_conv_net.1} parent=111 // pred_region
        %s4185 = smul.u32 2, %s34
      $region116: #{temporal_conv_net.1} parent=111 // pred_fallthru
        _
    $region112: #{temporal_conv_net.1} parent=5 // pred_fallthru
      _
    %p4186 = scmp.le.s32.totalorder 2, %s29
    // Predicated region
    $region117: #{temporal_conv_net.1} parent=5 // pred_check
      %p4187 = pneg %p4186
    $region118: #{temporal_conv_net.1} parent=5 // pred_check_branch
      %4189 = sbr.rel (%p4187) target = $region120
    $region119: #{temporal_conv_net.1} parent=5 // pred_region
      %s4190 = ssub.s32 %s29, 2
      // Predicated region
      $region121: #{temporal_conv_net.1} parent=119 // pred_check
        %p4191 = pneg %p546
      $region122: #{temporal_conv_net.1} parent=119 // pred_check_branch
        %4193 = sbr.rel (%p4191) target = $region124
      $region123: #{temporal_conv_net.1} parent=119 // pred_region
        %s4194 = smul.u32 2, %s35
        %p4195 = scmp.lt.s32.totalorder %s4194, 3
        %s4196 = scalar_select %p4195, %s4194, 3
        %s4197 = smul.addr %s4196, 4
        %s4198 = smul.addr %s4197, 8
        %s4199 = scalar_lea.vmem %s23, %s4198
      $region124: #{temporal_conv_net.1} parent=119 // pred_fallthru
        _
    $region120: #{temporal_conv_net.1} parent=5 // pred_fallthru
      _
  $region6: #{temporal_conv_net.1} parent=0 // loop_footer
    %s33 = sadd.s32 1, %s29
  $region7: #{temporal_conv_net.1} parent=0 // loop_footer_branch
    %28 = sbr.rel target = $region3
  $region8: #{temporal_conv_net.1} parent=0 // loop_exit
    _

</llo_original>
